<compile_context>
chip_gen: v5e
topology: v5e:2x2
jax: 0.10.0
libtpu: 0.0.40
codegen_flags: <defaults>
</compile_context>

<pallas_src>
import functools

import jax
import jax.numpy as jnp
from jax.experimental import pallas as pl
from jax.experimental.pallas import tpu as pltpu

_EPS = 1e-5
_LANE = 128


# ----------------------------- small helpers -----------------------------
def _round_up(x, m):
    return ((x + m - 1) // m) * m


def _pick_row_tile(h, w, target_m=2048):
    """Largest divisor of H such that TH*W <= target_m (rows per conv tile)."""
    cap = max(1, target_m // max(w, 1))
    best = 1
    for d in range(1, min(h, cap) + 1):
        if h % d == 0:
            best = d
    return best


def _pick_bn_tile(m, cap=2048):
    """Row-tile for the elementwise BN/ReLU kernel (multiple of 8 or full M)."""
    if m <= cap:
        return m
    best = m
    for d in range(8, cap + 1, 8):
        if m % d == 0:
            best = d
    return best


# ------------------- kernel A: conv3x3 + bias + BN partial stats -------------------
def _conv3x3_bias_stats_kernel(x_hbm, w_ref, b_ref, y_ref, st_ref, xbuf, sem,
                               *, TH, W):
    """One (batch n, row-tile r) step of a 3x3 / pad=1 convolution.

    x_hbm : (N, H, W, Cin)   bf16, whole array left in HBM (manual halo DMA)
    w_ref : (3, 3, Cin, Cout) bf16 packed weights (resident in VMEM)
    b_ref : (1, Cout)         f32 conv bias
    y_ref : (1, TH, W, Cout)  f32 conv output tile (pre-BN)
    st_ref: (1, 1, 2, Cout)   f32 per-tile [sum, sum_of_squares]
    xbuf  : (TH+2, W, Cin)    bf16 VMEM scratch: row tile + 1-row halos
    """
    n = pl.program_id(0)
    r = pl.program_id(1)
    R = pl.num_programs(1)
    Cin = xbuf.shape[-1]
    Cout = w_ref.shape[-1]

    # ---- bring the haloed row tile into VMEM (3 DMAs, 2 conditional) ----
    def _halo_copy(src_row, dst_row, slot):
        return pltpu.make_async_copy(
            x_hbm.at[n, pl.ds(src_row, 1)],
            xbuf.at[pl.ds(dst_row, 1)],
            sem.at[slot])

    r0 = pl.multiple_of(r * TH, TH)
    mid = pltpu.make_async_copy(
        x_hbm.at[n, pl.ds(r0, TH)], xbuf.at[pl.ds(1, TH)], sem.at[0])
    mid.start()

    @pl.when(r > 0)
    def _():
        _halo_copy(r * TH - 1, 0, 1).start()

    @pl.when(r < R - 1)
    def _():
        _halo_copy(r * TH + TH, TH + 1, 2).start()

    mid.wait()

    @pl.when(r > 0)
    def _():
        _halo_copy(r * TH - 1, 0, 1).wait()

    @pl.when(r < R - 1)
    def _():
        _halo_copy(r * TH + TH, TH + 1, 2).wait()

    # ---- build the zero-padded (TH+2, W+2, Cin) tap source as a value ----
    xv = xbuf[...]
    zero_row = jnp.zeros((1, W, Cin), xv.dtype)
    row_top = jnp.where(r > 0, xv[0:1], zero_row)            # image top border -> 0
    row_bot = jnp.where(r < R - 1, xv[TH + 1:TH + 2], zero_row)
    xv = jnp.concatenate([row_top, xv[1:TH + 1], row_bot], axis=0)
    zero_col = jnp.zeros((TH + 2, 1, Cin), xv.dtype)
    xv = jnp.concatenate([zero_col, xv, zero_col], axis=1)    # left/right borders

    # ---- conv = 9 accumulated MXU matmuls over shifted taps (f32 accumulate) ----
    M = TH * W
    acc = jnp.zeros((M, Cout), jnp.float32)
    for kh in range(3):
        for kw in range(3):
            xs = xv[kh:kh + TH, kw:kw + W, :].reshape(M, Cin)
            acc = acc + jnp.dot(xs, w_ref[kh, kw, :, :],
                                preferred_element_type=jnp.float32)
    acc = acc + b_ref[...]                                    # conv bias

    y_ref[...] = acc.reshape(1, TH, W, Cout)

    # per-tile partial BatchNorm statistics (combined across tiles in the wrapper)
    s1 = jnp.sum(acc, axis=0, keepdims=True)
    s2 = jnp.sum(acc * acc, axis=0, keepdims=True)
    st_ref[...] = jnp.concatenate([s1, s2], axis=0).reshape(1, 1, 2, Cout)


def _conv3x3_bias_stats(x_nhwc, w_packed, bias_row):
    N, H, W, Cin_p = x_nhwc.shape
    Cout_p = w_packed.shape[-1]
    TH = _pick_row_tile(H, W)
    R = H // TH

    kernel = functools.partial(_conv3x3_bias_stats_kernel, TH=TH, W=W)
    y, stats = pl.pallas_call(
        kernel,
        grid=(N, R),
        in_specs=[
            pl.BlockSpec(memory_space=pl.ANY),                          # x stays in HBM
            pl.BlockSpec((3, 3, Cin_p, Cout_p), lambda n, r: (0, 0, 0, 0)),
            pl.BlockSpec((1, Cout_p), lambda n, r: (0, 0)),
        ],
        out_specs=(
            pl.BlockSpec((1, TH, W, Cout_p), lambda n, r: (n, r, 0, 0)),
            pl.BlockSpec((1, 1, 2, Cout_p), lambda n, r: (n, r, 0, 0)),
        ),
        out_shape=(
            jax.ShapeDtypeStruct((N, H, W, Cout_p), jnp.float32),
            jax.ShapeDtypeStruct((N, R, 2, Cout_p), jnp.float32),
        ),
        scratch_shapes=[
            pltpu.VMEM((TH + 2, W, Cin_p), jnp.bfloat16),
            pltpu.SemaphoreType.DMA((3,)),
        ],
        compiler_params=pltpu.CompilerParams(
            dimension_semantics=("parallel", "parallel"),
            vmem_limit_bytes=48 * 1024 * 1024),
    )(x_nhwc, w_packed, bias_row)
    return y, stats


# ------------------- kernel B: BN apply + ReLU (lane-dense, tiled over M) -------------------
def _bn_relu_kernel(y_ref, sc_ref, sh_ref, o_ref):
    o_ref[...] = jnp.maximum(
        y_ref[...] * sc_ref[...] + sh_ref[...], 0.0).astype(o_ref.dtype)


def _bn_relu(y2d, scale_row, shift_row, out_dtype):
    M, C = y2d.shape
    TM = _pick_bn_tile(M)
    return pl.pallas_call(
        _bn_relu_kernel,
        grid=(M // TM,),
        in_specs=[
            pl.BlockSpec((TM, C), lambda i: (i, 0)),
            pl.BlockSpec((1, C), lambda i: (0, 0)),
            pl.BlockSpec((1, C), lambda i: (0, 0)),
        ],
        out_specs=pl.BlockSpec((TM, C), lambda i: (i, 0)),
        out_shape=jax.ShapeDtypeStruct((M, C), out_dtype),
        compiler_params=pltpu.CompilerParams(
            dimension_semantics=("parallel",),
            vmem_limit_bytes=48 * 1024 * 1024),
    )(y2d, scale_row, shift_row)


# ----------------------------- wrapper-side glue -----------------------------
def _bn_scale_shift(stats, gamma_row, beta_row, count):
    """Combine per-tile [sum, sumsq] partials into per-channel scale/shift (f32)."""
    tot = jnp.sum(stats, axis=(0, 1))                         # (2, C)
    mean = tot[0:1] / count
    var = jnp.maximum(tot[1:2] / count - mean * mean, 0.0)    # biased (training) var
    scale = gamma_row * jax.lax.rsqrt(var + _EPS)
    shift = beta_row - mean * scale
    return scale, shift


def _pack_weight(w_oihw, cin_p, cout_p):
    """(O, I, 3, 3) PyTorch conv weight -> zero-padded (3, 3, cin_p, cout_p) bf16."""
    o, i = w_oihw.shape[0], w_oihw.shape[1]
    w = jnp.transpose(w_oihw, (2, 3, 1, 0))                   # (kh, kw, in, out)
    w = jnp.pad(w, ((0, 0), (0, 0), (0, cin_p - i), (0, cout_p - o)))
    return w.astype(jnp.bfloat16)


def _pad_row(v, c_p):
    """1-D per-channel param -> zero-padded (1, c_p) f32 row."""
    return jnp.pad(v, (0, c_p - v.shape[0])).astype(jnp.float32).reshape(1, c_p)


def conv_block_nested_forward(x_nchw, params):
    """(N, C_in, H, W) -> (N, C_out, H, W), matching the PyTorch module (training-mode BN)."""
    w1, b1, g1, be1, w2, b2, g2, be2 = params
    N, Cin, H, W = x_nchw.shape
    Cmid, Cout = w1.shape[0], w2.shape[0]
    Cin_p, Cmid_p, Cout_p = (_round_up(c, _LANE) for c in (Cin, Cmid, Cout))
    count = jnp.float32(N * H * W)

    # NCHW -> NHWC (channels on the lane dim), zero-pad channels, bf16 MXU operands.
    # Zero-padded gamma/beta/bias keep the padded channels exactly 0 through both stages.
    x = jnp.transpose(x_nchw, (0, 2, 3, 1))
    x = jnp.pad(x, ((0, 0), (0, 0), (0, 0), (0, Cin_p - Cin))).astype(jnp.bfloat16)

    # ---- stage 1: conv1 (+bias, +BN partial stats), then BN1-apply + ReLU ----
    y1, st1 = _conv3x3_bias_stats(x, _pack_weight(w1, Cin_p, Cmid_p),
                                  _pad_row(b1, Cmid_p))
    sc1, sh1 = _bn_scale_shift(st1, _pad_row(g1, Cmid_p), _pad_row(be1, Cmid_p), count)
    h1 = _bn_relu(y1.reshape(N * H * W, Cmid_p), sc1, sh1, jnp.bfloat16)
    h1 = h1.reshape(N, H, W, Cmid_p)

    # ---- stage 2: conv2 (+bias, +BN partial stats), then BN2-apply + ReLU ----
    y2, st2 = _conv3x3_bias_stats(h1, _pack_weight(w2, Cmid_p, Cout_p),
                                  _pad_row(b2, Cout_p))
    sc2, sh2 = _bn_scale_shift(st2, _pad_row(g2, Cout_p), _pad_row(be2, Cout_p), count)
    h2 = _bn_relu(y2.reshape(N * H * W, Cout_p), sc2, sh2, jnp.float32)
    h2 = h2.reshape(N, H, W, Cout_p)

    return jnp.transpose(h2[..., :Cout], (0, 3, 1, 2))        # NHWC -> NCHW, drop pad


# ----------------------------- pure-JAX reference -----------------------------
def _ref_forward(x, params, conv_dtype=jnp.float32):
    """Reference forward.  conv_dtype=bfloat16 mirrors the kernel's MXU operand dtype."""
    w1, b1, g1, be1, w2, b2, g2, be2 = params

    def conv(x, w, b):
        y = jax.lax.conv_general_dilated(
            x.astype(conv_dtype), w.astype(conv_dtype),
            window_strides=(1, 1), padding=((1, 1), (1, 1)),
            dimension_numbers=("NCHW", "OIHW", "NCHW"),
            preferred_element_type=jnp.float32)
        return y + b[None, :, None, None]

    def bn(x, g, be):
        mean = jnp.mean(x, axis=(0, 2, 3), keepdims=True)
        var = jnp.mean((x - mean) ** 2, axis=(0, 2, 3), keepdims=True)
        return (x - mean) * jax.lax.rsqrt(var + _EPS) * g[None, :, None, None] \
            + be[None, :, None, None]

    h = jax.nn.relu(bn(conv(x, w1, b1), g1, be1))
    h = h.astype(conv_dtype).astype(jnp.float32)              # kernel stores h1 as bf16
    return jax.nn.relu(bn(conv(h, w2, b2), g2, be2))


if __name__ == "__main__":
    in_ch, mid_ch, out_ch = 4, 8, 8
    N, H, W = 2, 16, 16

    key = jax.random.PRNGKey(0)
    ks = jax.random.split(key, 9)
    x = jax.random.normal(ks[0], (N, in_ch, H, W), jnp.float32)

    # Deterministic synthetic parameters (PyTorch layouts: conv weight OIHW, 1-D bias/BN params)
    w1 = 0.1 * jax.random.normal(ks[1], (mid_ch, in_ch, 3, 3), jnp.float32)
    b1 = 0.1 * jax.random.normal(ks[2], (mid_ch,), jnp.float32)
    g1 = 1.0 + 0.1 * jax.random.normal(ks[3], (mid_ch,), jnp.float32)
    be1 = 0.1 * jax.random.normal(ks[4], (mid_ch,), jnp.float32)
    w2 = 0.1 * jax.random.normal(ks[5], (out_ch, mid_ch, 3, 3), jnp.float32)
    b2 = 0.1 * jax.random.normal(ks[6], (out_ch,), jnp.float32)
    g2 = 1.0 + 0.1 * jax.random.normal(ks[7], (out_ch,), jnp.float32)
    be2 = 0.1 * jax.random.normal(ks[8], (out_ch,), jnp.float32)
    params = (w1, b1, g1, be1, w2, b2, g2, be2)

    out = jax.jit(conv_block_nested_forward)(x, params)
    out = jax.block_until_ready(out)
    assert out.shape == (N, out_ch, H, W), out.shape

    # Tight check against a reference that mirrors the kernel's bf16 MXU operands.
    ref_bf16 = _ref_forward(x, params, conv_dtype=jnp.bfloat16)
    err_bf16 = float(jnp.max(jnp.abs(out - ref_bf16)))
    assert jnp.allclose(out, ref_bf16, atol=2e-3, rtol=2e-3), f"max_err_bf16={err_bf16}"

    # Loose sanity check against the full-f32 PyTorch-equivalent reference
    # (difference comes from bf16 matmul operands, not from kernel structure).
    ref_f32 = _ref_forward(x, params, conv_dtype=jnp.float32)
    err_f32 = float(jnp.max(jnp.abs(out - ref_f32)))
    assert jnp.allclose(out, ref_f32, atol=1e-1, rtol=1e-1), f"max_err_f32={err_f32}"

    print("KERNEL_OK")
</pallas_src>

<mosaic_0001>
module attributes {stable_mosaic.version = 11 : i64} {
  func.func @_conv3x3_bias_stats_kernel(%arg0: i32, %arg1: i32, %arg2: memref<2x16x16x128xbf16, #tpu.memory_space<any>>, %arg3: memref<3x3x128x128xbf16, #tpu.memory_space<vmem>>, %arg4: memref<1x128xf32, #tpu.memory_space<vmem>>, %arg5: memref<1x16x16x128xf32, #tpu.memory_space<vmem>>, %arg6: memref<1x1x2x128xf32, #tpu.memory_space<vmem>>, %arg7: memref<18x16x128xbf16, #tpu.memory_space<vmem>>, %arg8: memref<3x!tpu.dma_semaphore, #tpu.memory_space<semaphore_mem>>) attributes {dimension_semantics = [#tpu.dimension_semantics<parallel>, #tpu.dimension_semantics<parallel>], iteration_bounds = array<i64: 2, 1>, scalar_prefetch = 0 : i64, scratch_operands = 2 : i64, tpu.core_type = #tpu.core_type<tc>, window_params = [{}, {pipeline_mode = #tpu.pipeline_mode<synchronous>, transform_indices = @transform_1, window_bounds = array<i64: 3, 3, 128, 128>}, {pipeline_mode = #tpu.pipeline_mode<synchronous>, transform_indices = @transform_2, window_bounds = array<i64: 1, 128>}, {transform_indices = @transform_3, window_bounds = array<i64: 1, 16, 16, 128>}, {transform_indices = @transform_4, window_bounds = array<i64: 1, 1, 2, 128>}]} {
    %c16_i32 = arith.constant 16 : i32
    %0 = arith.muli %arg1, %c16_i32 : i32
    %1 = tpu.assume_multiple %0, 16 : i32
    %c0_i32 = arith.constant 0 : i32
    %c0_i32_0 = arith.constant 0 : i32
    %c0_i32_1 = arith.constant 0 : i32
    %2 = tpu.memref_slice %arg2[%arg0, %1, %c0_i32_0, %c0_i32_1] : memref<2x16x16x128xbf16, #tpu.memory_space<any>> -> memref<1x16x16x128xbf16, #tpu.memory_space<any>>
    %3 = tpu.memref_squeeze %2 : memref<1x16x16x128xbf16, #tpu.memory_space<any>> -> memref<16x16x128xbf16, #tpu.memory_space<any>>
    %c1_i32 = arith.constant 1 : i32
    %c0_i32_2 = arith.constant 0 : i32
    %c0_i32_3 = arith.constant 0 : i32
    %4 = tpu.memref_slice %arg7[%c1_i32, %c0_i32_2, %c0_i32_3] : memref<18x16x128xbf16, #tpu.memory_space<vmem>> -> memref<16x16x128xbf16, #tpu.memory_space<vmem>>
    %5 = tpu.memref_slice %arg8[%c0_i32] : memref<3x!tpu.dma_semaphore, #tpu.memory_space<semaphore_mem>> -> memref<1x!tpu.dma_semaphore, #tpu.memory_space<semaphore_mem>>
    %6 = tpu.memref_squeeze %5 : memref<1x!tpu.dma_semaphore, #tpu.memory_space<semaphore_mem>> -> memref<!tpu.dma_semaphore, #tpu.memory_space<semaphore_mem>>
    tpu.enqueue_dma source(%3 : memref<16x16x128xbf16, #tpu.memory_space<any>>) target(%4 : memref<16x16x128xbf16, #tpu.memory_space<vmem>>) target_semaphore(%6 : memref<!tpu.dma_semaphore, #tpu.memory_space<semaphore_mem>>)
    %c0_i32_4 = arith.constant 0 : i32
    %7 = arith.cmpi sgt, %arg1, %c0_i32_4 : i32
    %8 = arith.extui %7 : i1 to i32
    %c0_i32_5 = arith.constant 0 : i32
    %9 = arith.cmpi ne, %8, %c0_i32_5 : i32
    scf.if %9 {
      %c16_i32_79 = arith.constant 16 : i32
      %104 = arith.muli %arg1, %c16_i32_79 : i32
      %c1_i32_80 = arith.constant 1 : i32
      %105 = arith.subi %104, %c1_i32_80 : i32
      %c1_i32_81 = arith.constant 1 : i32
      %c0_i32_82 = arith.constant 0 : i32
      %c0_i32_83 = arith.constant 0 : i32
      %106 = tpu.memref_slice %arg2[%arg0, %105, %c0_i32_82, %c0_i32_83] : memref<2x16x16x128xbf16, #tpu.memory_space<any>> -> memref<1x1x16x128xbf16, #tpu.memory_space<any>>
      %107 = tpu.memref_squeeze %106 : memref<1x1x16x128xbf16, #tpu.memory_space<any>> -> memref<1x16x128xbf16, #tpu.memory_space<any>>
      %c0_i32_84 = arith.constant 0 : i32
      %c0_i32_85 = arith.constant 0 : i32
      %c0_i32_86 = arith.constant 0 : i32
      %108 = tpu.memref_slice %arg7[%c0_i32_84, %c0_i32_85, %c0_i32_86] : memref<18x16x128xbf16, #tpu.memory_space<vmem>> -> memref<1x16x128xbf16, #tpu.memory_space<vmem>>
      %109 = tpu.memref_slice %arg8[%c1_i32_81] : memref<3x!tpu.dma_semaphore, #tpu.memory_space<semaphore_mem>> -> memref<1x!tpu.dma_semaphore, #tpu.memory_space<semaphore_mem>>
      %110 = tpu.memref_squeeze %109 : memref<1x!tpu.dma_semaphore, #tpu.memory_space<semaphore_mem>> -> memref<!tpu.dma_semaphore, #tpu.memory_space<semaphore_mem>>
      tpu.enqueue_dma source(%107 : memref<1x16x128xbf16, #tpu.memory_space<any>>) target(%108 : memref<1x16x128xbf16, #tpu.memory_space<vmem>>) target_semaphore(%110 : memref<!tpu.dma_semaphore, #tpu.memory_space<semaphore_mem>>)
    } else {
    }
    %c0_i32_6 = arith.constant 0 : i32
    %10 = arith.cmpi slt, %arg1, %c0_i32_6 : i32
    %11 = arith.extui %10 : i1 to i32
    %c0_i32_7 = arith.constant 0 : i32
    %12 = arith.cmpi ne, %11, %c0_i32_7 : i32
    scf.if %12 {
      %c16_i32_79 = arith.constant 16 : i32
      %104 = arith.muli %arg1, %c16_i32_79 : i32
      %c16_i32_80 = arith.constant 16 : i32
      %105 = arith.addi %104, %c16_i32_80 : i32
      %c2_i32 = arith.constant 2 : i32
      %c0_i32_81 = arith.constant 0 : i32
      %c0_i32_82 = arith.constant 0 : i32
      %106 = tpu.memref_slice %arg2[%arg0, %105, %c0_i32_81, %c0_i32_82] : memref<2x16x16x128xbf16, #tpu.memory_space<any>> -> memref<1x1x16x128xbf16, #tpu.memory_space<any>>
      %107 = tpu.memref_squeeze %106 : memref<1x1x16x128xbf16, #tpu.memory_space<any>> -> memref<1x16x128xbf16, #tpu.memory_space<any>>
      %c17_i32 = arith.constant 17 : i32
      %c0_i32_83 = arith.constant 0 : i32
      %c0_i32_84 = arith.constant 0 : i32
      %108 = tpu.memref_slice %arg7[%c17_i32, %c0_i32_83, %c0_i32_84] : memref<18x16x128xbf16, #tpu.memory_space<vmem>> -> memref<1x16x128xbf16, #tpu.memory_space<vmem>>
      %109 = tpu.memref_slice %arg8[%c2_i32] : memref<3x!tpu.dma_semaphore, #tpu.memory_space<semaphore_mem>> -> memref<1x!tpu.dma_semaphore, #tpu.memory_space<semaphore_mem>>
      %110 = tpu.memref_squeeze %109 : memref<1x!tpu.dma_semaphore, #tpu.memory_space<semaphore_mem>> -> memref<!tpu.dma_semaphore, #tpu.memory_space<semaphore_mem>>
      tpu.enqueue_dma source(%107 : memref<1x16x128xbf16, #tpu.memory_space<any>>) target(%108 : memref<1x16x128xbf16, #tpu.memory_space<vmem>>) target_semaphore(%110 : memref<!tpu.dma_semaphore, #tpu.memory_space<semaphore_mem>>)
    } else {
    }
    %c0_i32_8 = arith.constant 0 : i32
    %c0_i32_9 = arith.constant 0 : i32
    %c0_i32_10 = arith.constant 0 : i32
    %13 = tpu.memref_slice %arg2[%arg0, %1, %c0_i32_9, %c0_i32_10] : memref<2x16x16x128xbf16, #tpu.memory_space<any>> -> memref<1x16x16x128xbf16, #tpu.memory_space<any>>
    %14 = tpu.memref_squeeze %13 : memref<1x16x16x128xbf16, #tpu.memory_space<any>> -> memref<16x16x128xbf16, #tpu.memory_space<any>>
    %c1_i32_11 = arith.constant 1 : i32
    %c0_i32_12 = arith.constant 0 : i32
    %c0_i32_13 = arith.constant 0 : i32
    %15 = tpu.memref_slice %arg7[%c1_i32_11, %c0_i32_12, %c0_i32_13] : memref<18x16x128xbf16, #tpu.memory_space<vmem>> -> memref<16x16x128xbf16, #tpu.memory_space<vmem>>
    %16 = tpu.memref_slice %arg8[%c0_i32_8] : memref<3x!tpu.dma_semaphore, #tpu.memory_space<semaphore_mem>> -> memref<1x!tpu.dma_semaphore, #tpu.memory_space<semaphore_mem>>
    %17 = tpu.memref_squeeze %16 : memref<1x!tpu.dma_semaphore, #tpu.memory_space<semaphore_mem>> -> memref<!tpu.dma_semaphore, #tpu.memory_space<semaphore_mem>>
    tpu.wait_dma2 semaphore(%17 : memref<!tpu.dma_semaphore, #tpu.memory_space<semaphore_mem>>) src(%14 : memref<16x16x128xbf16, #tpu.memory_space<any>>) dst(%15 : memref<16x16x128xbf16, #tpu.memory_space<vmem>>)
    %c0_i32_14 = arith.constant 0 : i32
    %18 = arith.cmpi sgt, %arg1, %c0_i32_14 : i32
    %19 = arith.extui %18 : i1 to i32
    %c0_i32_15 = arith.constant 0 : i32
    %20 = arith.cmpi ne, %19, %c0_i32_15 : i32
    scf.if %20 {
      %c16_i32_79 = arith.constant 16 : i32
      %104 = arith.muli %arg1, %c16_i32_79 : i32
      %c1_i32_80 = arith.constant 1 : i32
      %105 = arith.subi %104, %c1_i32_80 : i32
      %c1_i32_81 = arith.constant 1 : i32
      %c0_i32_82 = arith.constant 0 : i32
      %c0_i32_83 = arith.constant 0 : i32
      %106 = tpu.memref_slice %arg2[%arg0, %105, %c0_i32_82, %c0_i32_83] : memref<2x16x16x128xbf16, #tpu.memory_space<any>> -> memref<1x1x16x128xbf16, #tpu.memory_space<any>>
      %107 = tpu.memref_squeeze %106 : memref<1x1x16x128xbf16, #tpu.memory_space<any>> -> memref<1x16x128xbf16, #tpu.memory_space<any>>
      %c0_i32_84 = arith.constant 0 : i32
      %c0_i32_85 = arith.constant 0 : i32
      %c0_i32_86 = arith.constant 0 : i32
      %108 = tpu.memref_slice %arg7[%c0_i32_84, %c0_i32_85, %c0_i32_86] : memref<18x16x128xbf16, #tpu.memory_space<vmem>> -> memref<1x16x128xbf16, #tpu.memory_space<vmem>>
      %109 = tpu.memref_slice %arg8[%c1_i32_81] : memref<3x!tpu.dma_semaphore, #tpu.memory_space<semaphore_mem>> -> memref<1x!tpu.dma_semaphore, #tpu.memory_space<semaphore_mem>>
      %110 = tpu.memref_squeeze %109 : memref<1x!tpu.dma_semaphore, #tpu.memory_space<semaphore_mem>> -> memref<!tpu.dma_semaphore, #tpu.memory_space<semaphore_mem>>
      tpu.wait_dma2 semaphore(%110 : memref<!tpu.dma_semaphore, #tpu.memory_space<semaphore_mem>>) src(%107 : memref<1x16x128xbf16, #tpu.memory_space<any>>) dst(%108 : memref<1x16x128xbf16, #tpu.memory_space<vmem>>)
    } else {
    }
    %c0_i32_16 = arith.constant 0 : i32
    %21 = arith.cmpi slt, %arg1, %c0_i32_16 : i32
    %22 = arith.extui %21 : i1 to i32
    %c0_i32_17 = arith.constant 0 : i32
    %23 = arith.cmpi ne, %22, %c0_i32_17 : i32
    scf.if %23 {
      %c16_i32_79 = arith.constant 16 : i32
      %104 = arith.muli %arg1, %c16_i32_79 : i32
      %c16_i32_80 = arith.constant 16 : i32
      %105 = arith.addi %104, %c16_i32_80 : i32
      %c2_i32 = arith.constant 2 : i32
      %c0_i32_81 = arith.constant 0 : i32
      %c0_i32_82 = arith.constant 0 : i32
      %106 = tpu.memref_slice %arg2[%arg0, %105, %c0_i32_81, %c0_i32_82] : memref<2x16x16x128xbf16, #tpu.memory_space<any>> -> memref<1x1x16x128xbf16, #tpu.memory_space<any>>
      %107 = tpu.memref_squeeze %106 : memref<1x1x16x128xbf16, #tpu.memory_space<any>> -> memref<1x16x128xbf16, #tpu.memory_space<any>>
      %c17_i32 = arith.constant 17 : i32
      %c0_i32_83 = arith.constant 0 : i32
      %c0_i32_84 = arith.constant 0 : i32
      %108 = tpu.memref_slice %arg7[%c17_i32, %c0_i32_83, %c0_i32_84] : memref<18x16x128xbf16, #tpu.memory_space<vmem>> -> memref<1x16x128xbf16, #tpu.memory_space<vmem>>
      %109 = tpu.memref_slice %arg8[%c2_i32] : memref<3x!tpu.dma_semaphore, #tpu.memory_space<semaphore_mem>> -> memref<1x!tpu.dma_semaphore, #tpu.memory_space<semaphore_mem>>
      %110 = tpu.memref_squeeze %109 : memref<1x!tpu.dma_semaphore, #tpu.memory_space<semaphore_mem>> -> memref<!tpu.dma_semaphore, #tpu.memory_space<semaphore_mem>>
      tpu.wait_dma2 semaphore(%110 : memref<!tpu.dma_semaphore, #tpu.memory_space<semaphore_mem>>) src(%107 : memref<1x16x128xbf16, #tpu.memory_space<any>>) dst(%108 : memref<1x16x128xbf16, #tpu.memory_space<vmem>>)
    } else {
    }
    %c0 = arith.constant 0 : index
    %c0_18 = arith.constant 0 : index
    %c0_19 = arith.constant 0 : index
    %24 = vector.load %arg7[%c0, %c0_18, %c0_19] : memref<18x16x128xbf16, #tpu.memory_space<vmem>>, vector<18x16x128xbf16>
    %cst = arith.constant 0.000000e+00 : bf16
    %25 = vector.broadcast %cst : bf16 to vector<1x16x128xbf16>
    %c0_i32_20 = arith.constant 0 : i32
    %26 = arith.cmpi sgt, %arg1, %c0_i32_20 : i32
    %27 = vector.extract_strided_slice %24 {offsets = [0, 0, 0], sizes = [1, 16, 128], strides = [1, 1, 1]} : vector<18x16x128xbf16> to vector<1x16x128xbf16>
    %28 = arith.select %26, %27, %25 : vector<1x16x128xbf16>
    %c0_i32_21 = arith.constant 0 : i32
    %29 = arith.cmpi slt, %arg1, %c0_i32_21 : i32
    %30 = vector.extract_strided_slice %24 {offsets = [17, 0, 0], sizes = [1, 16, 128], strides = [1, 1, 1]} : vector<18x16x128xbf16> to vector<1x16x128xbf16>
    %31 = arith.select %29, %30, %25 : vector<1x16x128xbf16>
    %32 = vector.extract_strided_slice %24 {offsets = [1, 0, 0], sizes = [16, 16, 128], strides = [1, 1, 1]} : vector<18x16x128xbf16> to vector<16x16x128xbf16>
    %33 = tpu.concatenate %28, %32, %31 in 0 : vector<1x16x128xbf16>, vector<16x16x128xbf16>, vector<1x16x128xbf16> -> vector<18x16x128xbf16>
    %cst_22 = arith.constant 0.000000e+00 : bf16
    %34 = vector.broadcast %cst_22 : bf16 to vector<18x1x128xbf16>
    %35 = tpu.concatenate %34, %33, %34 in 1 : vector<18x1x128xbf16>, vector<18x16x128xbf16>, vector<18x1x128xbf16> -> vector<18x18x128xbf16>
    %cst_23 = arith.constant 0.000000e+00 : f32
    %36 = vector.broadcast %cst_23 : f32 to vector<256x128xf32>
    %37 = vector.extract_strided_slice %35 {offsets = [0, 0, 0], sizes = [16, 16, 128], strides = [1, 1, 1]} : vector<18x18x128xbf16> to vector<16x16x128xbf16>
    %38 = vector.shape_cast %37 : vector<16x16x128xbf16> to vector<256x128xbf16>
    %c0_24 = arith.constant 0 : index
    %c0_25 = arith.constant 0 : index
    %c0_26 = arith.constant 0 : index
    %c0_27 = arith.constant 0 : index
    %39 = vector.load %arg3[%c0_24, %c0_25, %c0_26, %c0_27] : memref<3x3x128x128xbf16, #tpu.memory_space<vmem>>, vector<1x1x128x128xbf16>
    %40 = vector.shape_cast %39 : vector<1x1x128x128xbf16> to vector<128x128xbf16>
    %cst_28 = arith.constant dense<0.000000e+00> : vector<256x128xf32>
    %41 = tpu.matmul %38, %40, %cst_28 {dimension_numbers = #tpu.dot_dimension_numbers<[1], [0], [0], [1], [0, 0, 1, 1], [], []>} : vector<256x128xbf16>, vector<128x128xbf16>, vector<256x128xf32> -> vector<256x128xf32>
    %42 = arith.addf %36, %41 : vector<256x128xf32>
    %43 = vector.extract_strided_slice %35 {offsets = [0, 1, 0], sizes = [16, 16, 128], strides = [1, 1, 1]} : vector<18x18x128xbf16> to vector<16x16x128xbf16>
    %44 = vector.shape_cast %43 : vector<16x16x128xbf16> to vector<256x128xbf16>
    %c0_29 = arith.constant 0 : index
    %c1 = arith.constant 1 : index
    %c0_30 = arith.constant 0 : index
    %c0_31 = arith.constant 0 : index
    %45 = vector.load %arg3[%c0_29, %c1, %c0_30, %c0_31] : memref<3x3x128x128xbf16, #tpu.memory_space<vmem>>, vector<1x1x128x128xbf16>
    %46 = vector.shape_cast %45 : vector<1x1x128x128xbf16> to vector<128x128xbf16>
    %cst_32 = arith.constant dense<0.000000e+00> : vector<256x128xf32>
    %47 = tpu.matmul %44, %46, %cst_32 {dimension_numbers = #tpu.dot_dimension_numbers<[1], [0], [0], [1], [0, 0, 1, 1], [], []>} : vector<256x128xbf16>, vector<128x128xbf16>, vector<256x128xf32> -> vector<256x128xf32>
    %48 = arith.addf %42, %47 : vector<256x128xf32>
    %49 = vector.extract_strided_slice %35 {offsets = [0, 2, 0], sizes = [16, 16, 128], strides = [1, 1, 1]} : vector<18x18x128xbf16> to vector<16x16x128xbf16>
    %50 = vector.shape_cast %49 : vector<16x16x128xbf16> to vector<256x128xbf16>
    %c0_33 = arith.constant 0 : index
    %c2 = arith.constant 2 : index
    %c0_34 = arith.constant 0 : index
    %c0_35 = arith.constant 0 : index
    %51 = vector.load %arg3[%c0_33, %c2, %c0_34, %c0_35] : memref<3x3x128x128xbf16, #tpu.memory_space<vmem>>, vector<1x1x128x128xbf16>
    %52 = vector.shape_cast %51 : vector<1x1x128x128xbf16> to vector<128x128xbf16>
    %cst_36 = arith.constant dense<0.000000e+00> : vector<256x128xf32>
    %53 = tpu.matmul %50, %52, %cst_36 {dimension_numbers = #tpu.dot_dimension_numbers<[1], [0], [0], [1], [0, 0, 1, 1], [], []>} : vector<256x128xbf16>, vector<128x128xbf16>, vector<256x128xf32> -> vector<256x128xf32>
    %54 = arith.addf %48, %53 : vector<256x128xf32>
    %55 = vector.extract_strided_slice %35 {offsets = [1, 0, 0], sizes = [16, 16, 128], strides = [1, 1, 1]} : vector<18x18x128xbf16> to vector<16x16x128xbf16>
    %56 = vector.shape_cast %55 : vector<16x16x128xbf16> to vector<256x128xbf16>
    %c1_37 = arith.constant 1 : index
    %c0_38 = arith.constant 0 : index
    %c0_39 = arith.constant 0 : index
    %c0_40 = arith.constant 0 : index
    %57 = vector.load %arg3[%c1_37, %c0_38, %c0_39, %c0_40] : memref<3x3x128x128xbf16, #tpu.memory_space<vmem>>, vector<1x1x128x128xbf16>
    %58 = vector.shape_cast %57 : vector<1x1x128x128xbf16> to vector<128x128xbf16>
    %cst_41 = arith.constant dense<0.000000e+00> : vector<256x128xf32>
    %59 = tpu.matmul %56, %58, %cst_41 {dimension_numbers = #tpu.dot_dimension_numbers<[1], [0], [0], [1], [0, 0, 1, 1], [], []>} : vector<256x128xbf16>, vector<128x128xbf16>, vector<256x128xf32> -> vector<256x128xf32>
    %60 = arith.addf %54, %59 : vector<256x128xf32>
    %61 = vector.extract_strided_slice %35 {offsets = [1, 1, 0], sizes = [16, 16, 128], strides = [1, 1, 1]} : vector<18x18x128xbf16> to vector<16x16x128xbf16>
    %62 = vector.shape_cast %61 : vector<16x16x128xbf16> to vector<256x128xbf16>
    %c1_42 = arith.constant 1 : index
    %c1_43 = arith.constant 1 : index
    %c0_44 = arith.constant 0 : index
    %c0_45 = arith.constant 0 : index
    %63 = vector.load %arg3[%c1_42, %c1_43, %c0_44, %c0_45] : memref<3x3x128x128xbf16, #tpu.memory_space<vmem>>, vector<1x1x128x128xbf16>
    %64 = vector.shape_cast %63 : vector<1x1x128x128xbf16> to vector<128x128xbf16>
    %cst_46 = arith.constant dense<0.000000e+00> : vector<256x128xf32>
    %65 = tpu.matmul %62, %64, %cst_46 {dimension_numbers = #tpu.dot_dimension_numbers<[1], [0], [0], [1], [0, 0, 1, 1], [], []>} : vector<256x128xbf16>, vector<128x128xbf16>, vector<256x128xf32> -> vector<256x128xf32>
    %66 = arith.addf %60, %65 : vector<256x128xf32>
    %67 = vector.extract_strided_slice %35 {offsets = [1, 2, 0], sizes = [16, 16, 128], strides = [1, 1, 1]} : vector<18x18x128xbf16> to vector<16x16x128xbf16>
    %68 = vector.shape_cast %67 : vector<16x16x128xbf16> to vector<256x128xbf16>
    %c1_47 = arith.constant 1 : index
    %c2_48 = arith.constant 2 : index
    %c0_49 = arith.constant 0 : index
    %c0_50 = arith.constant 0 : index
    %69 = vector.load %arg3[%c1_47, %c2_48, %c0_49, %c0_50] : memref<3x3x128x128xbf16, #tpu.memory_space<vmem>>, vector<1x1x128x128xbf16>
    %70 = vector.shape_cast %69 : vector<1x1x128x128xbf16> to vector<128x128xbf16>
    %cst_51 = arith.constant dense<0.000000e+00> : vector<256x128xf32>
    %71 = tpu.matmul %68, %70, %cst_51 {dimension_numbers = #tpu.dot_dimension_numbers<[1], [0], [0], [1], [0, 0, 1, 1], [], []>} : vector<256x128xbf16>, vector<128x128xbf16>, vector<256x128xf32> -> vector<256x128xf32>
    %72 = arith.addf %66, %71 : vector<256x128xf32>
    %73 = vector.extract_strided_slice %35 {offsets = [2, 0, 0], sizes = [16, 16, 128], strides = [1, 1, 1]} : vector<18x18x128xbf16> to vector<16x16x128xbf16>
    %74 = vector.shape_cast %73 : vector<16x16x128xbf16> to vector<256x128xbf16>
    %c2_52 = arith.constant 2 : index
    %c0_53 = arith.constant 0 : index
    %c0_54 = arith.constant 0 : index
    %c0_55 = arith.constant 0 : index
    %75 = vector.load %arg3[%c2_52, %c0_53, %c0_54, %c0_55] : memref<3x3x128x128xbf16, #tpu.memory_space<vmem>>, vector<1x1x128x128xbf16>
    %76 = vector.shape_cast %75 : vector<1x1x128x128xbf16> to vector<128x128xbf16>
    %cst_56 = arith.constant dense<0.000000e+00> : vector<256x128xf32>
    %77 = tpu.matmul %74, %76, %cst_56 {dimension_numbers = #tpu.dot_dimension_numbers<[1], [0], [0], [1], [0, 0, 1, 1], [], []>} : vector<256x128xbf16>, vector<128x128xbf16>, vector<256x128xf32> -> vector<256x128xf32>
    %78 = arith.addf %72, %77 : vector<256x128xf32>
    %79 = vector.extract_strided_slice %35 {offsets = [2, 1, 0], sizes = [16, 16, 128], strides = [1, 1, 1]} : vector<18x18x128xbf16> to vector<16x16x128xbf16>
    %80 = vector.shape_cast %79 : vector<16x16x128xbf16> to vector<256x128xbf16>
    %c2_57 = arith.constant 2 : index
    %c1_58 = arith.constant 1 : index
    %c0_59 = arith.constant 0 : index
    %c0_60 = arith.constant 0 : index
    %81 = vector.load %arg3[%c2_57, %c1_58, %c0_59, %c0_60] : memref<3x3x128x128xbf16, #tpu.memory_space<vmem>>, vector<1x1x128x128xbf16>
    %82 = vector.shape_cast %81 : vector<1x1x128x128xbf16> to vector<128x128xbf16>
    %cst_61 = arith.constant dense<0.000000e+00> : vector<256x128xf32>
    %83 = tpu.matmul %80, %82, %cst_61 {dimension_numbers = #tpu.dot_dimension_numbers<[1], [0], [0], [1], [0, 0, 1, 1], [], []>} : vector<256x128xbf16>, vector<128x128xbf16>, vector<256x128xf32> -> vector<256x128xf32>
    %84 = arith.addf %78, %83 : vector<256x128xf32>
    %85 = vector.extract_strided_slice %35 {offsets = [2, 2, 0], sizes = [16, 16, 128], strides = [1, 1, 1]} : vector<18x18x128xbf16> to vector<16x16x128xbf16>
    %86 = vector.shape_cast %85 : vector<16x16x128xbf16> to vector<256x128xbf16>
    %c2_62 = arith.constant 2 : index
    %c2_63 = arith.constant 2 : index
    %c0_64 = arith.constant 0 : index
    %c0_65 = arith.constant 0 : index
    %87 = vector.load %arg3[%c2_62, %c2_63, %c0_64, %c0_65] : memref<3x3x128x128xbf16, #tpu.memory_space<vmem>>, vector<1x1x128x128xbf16>
    %88 = vector.shape_cast %87 : vector<1x1x128x128xbf16> to vector<128x128xbf16>
    %cst_66 = arith.constant dense<0.000000e+00> : vector<256x128xf32>
    %89 = tpu.matmul %86, %88, %cst_66 {dimension_numbers = #tpu.dot_dimension_numbers<[1], [0], [0], [1], [0, 0, 1, 1], [], []>} : vector<256x128xbf16>, vector<128x128xbf16>, vector<256x128xf32> -> vector<256x128xf32>
    %90 = arith.addf %84, %89 : vector<256x128xf32>
    %c0_67 = arith.constant 0 : index
    %c0_68 = arith.constant 0 : index
    %91 = vector.load %arg4[%c0_67, %c0_68] : memref<1x128xf32, #tpu.memory_space<vmem>>, vector<1x128xf32>
    %92 = vector.broadcast %91 : vector<1x128xf32> to vector<256x128xf32>
    %93 = arith.addf %90, %92 : vector<256x128xf32>
    %94 = vector.shape_cast %93 : vector<256x128xf32> to vector<1x16x16x128xf32>
    %c0_69 = arith.constant 0 : index
    %c0_70 = arith.constant 0 : index
    %c0_71 = arith.constant 0 : index
    %c0_72 = arith.constant 0 : index
    %95 = vector.load %arg5[%c0_69, %c0_70, %c0_71, %c0_72] : memref<1x16x16x128xf32, #tpu.memory_space<vmem>>, vector<1x16x16x128xf32>
    tpu.vector_store %arg5[%c0_69, %c0_70, %c0_71, %c0_72], %94 {strides = array<i32>} : memref<1x16x16x128xf32, #tpu.memory_space<vmem>>, vector<1x16x16x128xf32>,
    %cst_73 = arith.constant dense<0.000000e+00> : vector<128xf32>
    %96 = vector.multi_reduction <add>, %93, %cst_73 [0] : vector<256x128xf32> to vector<128xf32>
    %97 = vector.shape_cast %96 : vector<128xf32> to vector<1x128xf32>
    %98 = arith.mulf %93, %93 : vector<256x128xf32>
    %cst_74 = arith.constant dense<0.000000e+00> : vector<128xf32>
    %99 = vector.multi_reduction <add>, %98, %cst_74 [0] : vector<256x128xf32> to vector<128xf32>
    %100 = vector.shape_cast %99 : vector<128xf32> to vector<1x128xf32>
    %101 = tpu.concatenate %97, %100 in 0 : vector<1x128xf32>, vector<1x128xf32> -> vector<2x128xf32>
    %102 = vector.shape_cast %101 : vector<2x128xf32> to vector<1x1x2x128xf32>
    %c0_75 = arith.constant 0 : index
    %c0_76 = arith.constant 0 : index
    %c0_77 = arith.constant 0 : index
    %c0_78 = arith.constant 0 : index
    %103 = vector.load %arg6[%c0_75, %c0_76, %c0_77, %c0_78] : memref<1x1x2x128xf32, #tpu.memory_space<vmem>>, vector<1x1x2x128xf32>
    tpu.vector_store %arg6[%c0_75, %c0_76, %c0_77, %c0_78], %102 {strides = array<i32>} : memref<1x1x2x128xf32, #tpu.memory_space<vmem>>, vector<1x1x2x128xf32>,
    return
  }
  func.func @transform_1(%arg0: i32, %arg1: i32) -> (i32, i32, i32, i32) {
    %c0_i32 = arith.constant 0 : i32
    %c0_i32_0 = arith.constant 0 : i32
    %c0_i32_1 = arith.constant 0 : i32
    %c0_i32_2 = arith.constant 0 : i32
    %c0_i32_3 = arith.constant 0 : i32
    return %c0_i32, %c0_i32_0, %c0_i32_1, %c0_i32_2 : i32, i32, i32, i32
  }
  func.func @transform_2(%arg0: i32, %arg1: i32) -> (i32, i32) {
    %c0_i32 = arith.constant 0 : i32
    %c0_i32_0 = arith.constant 0 : i32
    %c0_i32_1 = arith.constant 0 : i32
    return %c0_i32, %c0_i32_0 : i32, i32
  }
  func.func @transform_3(%arg0: i32, %arg1: i32) -> (i32, i32, i32, i32) {
    %c0_i32 = arith.constant 0 : i32
    %c0_i32_0 = arith.constant 0 : i32
    %c0_i32_1 = arith.constant 0 : i32
    return %arg0, %arg1, %c0_i32, %c0_i32_0 : i32, i32, i32, i32
  }
  func.func @transform_4(%arg0: i32, %arg1: i32) -> (i32, i32, i32, i32) {
    %c0_i32 = arith.constant 0 : i32
    %c0_i32_0 = arith.constant 0 : i32
    %c0_i32_1 = arith.constant 0 : i32
    return %arg0, %arg1, %c0_i32, %c0_i32_0 : i32, i32, i32, i32
  }
}

module attributes {stable_mosaic.version = 11 : i64} {
  func.func @_bn_relu_kernel(%arg0: i32, %arg1: memref<512x128xf32, #tpu.memory_space<vmem>>, %arg2: memref<1x128xf32, #tpu.memory_space<vmem>>, %arg3: memref<1x128xf32, #tpu.memory_space<vmem>>, %arg4: memref<512x128xbf16, #tpu.memory_space<vmem>>) attributes {dimension_semantics = [#tpu.dimension_semantics<parallel>], iteration_bounds = array<i64: 1>, scalar_prefetch = 0 : i64, scratch_operands = 0 : i64, tpu.core_type = #tpu.core_type<tc>, window_params = [{transform_indices = @transform_0, window_bounds = array<i64: 512, 128>}, {pipeline_mode = #tpu.pipeline_mode<synchronous>, transform_indices = @transform_1, window_bounds = array<i64: 1, 128>}, {pipeline_mode = #tpu.pipeline_mode<synchronous>, transform_indices = @transform_2, window_bounds = array<i64: 1, 128>}, {transform_indices = @transform_3, window_bounds = array<i64: 512, 128>}]} {
    %c0 = arith.constant 0 : index
    %c0_0 = arith.constant 0 : index
    %0 = vector.load %arg1[%c0, %c0_0] : memref<512x128xf32, #tpu.memory_space<vmem>>, vector<512x128xf32>
    %c0_1 = arith.constant 0 : index
    %c0_2 = arith.constant 0 : index
    %1 = vector.load %arg2[%c0_1, %c0_2] : memref<1x128xf32, #tpu.memory_space<vmem>>, vector<1x128xf32>
    %2 = vector.broadcast %1 : vector<1x128xf32> to vector<512x128xf32>
    %3 = arith.mulf %0, %2 : vector<512x128xf32>
    %c0_3 = arith.constant 0 : index
    %c0_4 = arith.constant 0 : index
    %4 = vector.load %arg3[%c0_3, %c0_4] : memref<1x128xf32, #tpu.memory_space<vmem>>, vector<1x128xf32>
    %5 = vector.broadcast %4 : vector<1x128xf32> to vector<512x128xf32>
    %6 = arith.addf %3, %5 : vector<512x128xf32>
    %cst = arith.constant 0.000000e+00 : f32
    %7 = vector.broadcast %cst : f32 to vector<512x128xf32>
    %8 = arith.maximumf %6, %7 : vector<512x128xf32>
    %9 = arith.truncf %8 : vector<512x128xf32> to vector<512x128xbf16>
    %c0_5 = arith.constant 0 : index
    %c0_6 = arith.constant 0 : index
    %10 = vector.load %arg4[%c0_5, %c0_6] : memref<512x128xbf16, #tpu.memory_space<vmem>>, vector<512x128xbf16>
    tpu.vector_store %arg4[%c0_5, %c0_6], %9 {strides = array<i32>} : memref<512x128xbf16, #tpu.memory_space<vmem>>, vector<512x128xbf16>,
    return
  }
  func.func @transform_0(%arg0: i32) -> (i32, i32) {
    %c0_i32 = arith.constant 0 : i32
    %c0_i32_0 = arith.constant 0 : i32
    return %arg0, %c0_i32 : i32, i32
  }
  func.func @transform_1(%arg0: i32) -> (i32, i32) {
    %c0_i32 = arith.constant 0 : i32
    %c0_i32_0 = arith.constant 0 : i32
    %c0_i32_1 = arith.constant 0 : i32
    return %c0_i32, %c0_i32_0 : i32, i32
  }
  func.func @transform_2(%arg0: i32) -> (i32, i32) {
    %c0_i32 = arith.constant 0 : i32
    %c0_i32_0 = arith.constant 0 : i32
    %c0_i32_1 = arith.constant 0 : i32
    return %c0_i32, %c0_i32_0 : i32, i32
  }
  func.func @transform_3(%arg0: i32) -> (i32, i32) {
    %c0_i32 = arith.constant 0 : i32
    %c0_i32_0 = arith.constant 0 : i32
    return %arg0, %c0_i32 : i32, i32
  }
}

module attributes {stable_mosaic.version = 11 : i64} {
  func.func @_bn_relu_kernel(%arg0: i32, %arg1: memref<512x128xf32, #tpu.memory_space<vmem>>, %arg2: memref<1x128xf32, #tpu.memory_space<vmem>>, %arg3: memref<1x128xf32, #tpu.memory_space<vmem>>, %arg4: memref<512x128xf32, #tpu.memory_space<vmem>>) attributes {dimension_semantics = [#tpu.dimension_semantics<parallel>], iteration_bounds = array<i64: 1>, scalar_prefetch = 0 : i64, scratch_operands = 0 : i64, tpu.core_type = #tpu.core_type<tc>, window_params = [{transform_indices = @transform_0, window_bounds = array<i64: 512, 128>}, {pipeline_mode = #tpu.pipeline_mode<synchronous>, transform_indices = @transform_1, window_bounds = array<i64: 1, 128>}, {pipeline_mode = #tpu.pipeline_mode<synchronous>, transform_indices = @transform_2, window_bounds = array<i64: 1, 128>}, {transform_indices = @transform_3, window_bounds = array<i64: 512, 128>}]} {
    %c0 = arith.constant 0 : index
    %c0_0 = arith.constant 0 : index
    %0 = vector.load %arg1[%c0, %c0_0] : memref<512x128xf32, #tpu.memory_space<vmem>>, vector<512x128xf32>
    %c0_1 = arith.constant 0 : index
    %c0_2 = arith.constant 0 : index
    %1 = vector.load %arg2[%c0_1, %c0_2] : memref<1x128xf32, #tpu.memory_space<vmem>>, vector<1x128xf32>
    %2 = vector.broadcast %1 : vector<1x128xf32> to vector<512x128xf32>
    %3 = arith.mulf %0, %2 : vector<512x128xf32>
    %c0_3 = arith.constant 0 : index
    %c0_4 = arith.constant 0 : index
    %4 = vector.load %arg3[%c0_3, %c0_4] : memref<1x128xf32, #tpu.memory_space<vmem>>, vector<1x128xf32>
    %5 = vector.broadcast %4 : vector<1x128xf32> to vector<512x128xf32>
    %6 = arith.addf %3, %5 : vector<512x128xf32>
    %cst = arith.constant 0.000000e+00 : f32
    %7 = vector.broadcast %cst : f32 to vector<512x128xf32>
    %8 = arith.maximumf %6, %7 : vector<512x128xf32>
    %c0_5 = arith.constant 0 : index
    %c0_6 = arith.constant 0 : index
    %9 = vector.load %arg4[%c0_5, %c0_6] : memref<512x128xf32, #tpu.memory_space<vmem>>, vector<512x128xf32>
    tpu.vector_store %arg4[%c0_5, %c0_6], %8 {strides = array<i32>} : memref<512x128xf32, #tpu.memory_space<vmem>>, vector<512x128xf32>,
    return
  }
  func.func @transform_0(%arg0: i32) -> (i32, i32) {
    %c0_i32 = arith.constant 0 : i32
    %c0_i32_0 = arith.constant 0 : i32
    return %arg0, %c0_i32 : i32, i32
  }
  func.func @transform_1(%arg0: i32) -> (i32, i32) {
    %c0_i32 = arith.constant 0 : i32
    %c0_i32_0 = arith.constant 0 : i32
    %c0_i32_1 = arith.constant 0 : i32
    return %c0_i32, %c0_i32_0 : i32, i32
  }
  func.func @transform_2(%arg0: i32) -> (i32, i32) {
    %c0_i32 = arith.constant 0 : i32
    %c0_i32_0 = arith.constant 0 : i32
    %c0_i32_1 = arith.constant 0 : i32
    return %c0_i32, %c0_i32_0 : i32, i32
  }
  func.func @transform_3(%arg0: i32) -> (i32, i32) {
    %c0_i32 = arith.constant 0 : i32
    %c0_i32_0 = arith.constant 0 : i32
    return %arg0, %c0_i32 : i32, i32
  }
}

</mosaic_0001>

<llo_original>
// kernel: conv_block_nested_forward.5
$region0: #{conv_block_nested_forward.5}
  #allocation0 [shape = 'u32[]', space=smem, size = 0x4, offset = 0x4, fixed_abs, tag = 'smem constant byte address 0x4 - core index']
  #allocation1 [shape = 'u32[72,128]{1,0:T(1,128)}', space=vmem, size = 0x9000, scoped, tag = 'internal scratch']
  %s0 = inlined_call_operand.vmem [shape: f32[512,128], index: 0, kind: input, shape index: {}]
  %s1 = inlined_call_operand.vmem [shape: f32[1,128], index: 1, kind: input, shape index: {}]
  %s2 = inlined_call_operand.vmem [shape: f32[1,128], index: 2, kind: input, shape index: {}]
  %s3 = inlined_call_operand.vmem [shape: bf16[512,128], index: 3, kind: output, shape index: {}]
  %s4 = sld [smem:[#allocation0]]
  $region22: #{conv_block_nested_forward.5} parent=0
    _
  %s6 = ssub.s32 1, %s4
  %s7 = scalar_select 0, %s6, %s4
  // Predicated region
  $region2: #{conv_block_nested_forward.5} parent=0 // pred_check
    _
  $region3: #{conv_block_nested_forward.5} parent=0 // pred_check_branch
    %9 = sbr.rel (0) target = $region5
  $region4: #{conv_block_nested_forward.5} parent=0 // pred_region
    _
  $region5: #{conv_block_nested_forward.5} parent=0 // pred_fallthru
    _
  // Predicated region
  $region6: #{conv_block_nested_forward.5} parent=0 // pred_check
    _
  $region7: #{conv_block_nested_forward.5} parent=0 // pred_check_branch
    %11 = sbr.rel (0) target = $region9
  $region8: #{conv_block_nested_forward.5} parent=0 // pred_region
    _
  $region9: #{conv_block_nested_forward.5} parent=0 // pred_fallthru
    _
  // Predicated region
  $region10: #{conv_block_nested_forward.5} parent=0 // pred_check
    _
  $region11: #{conv_block_nested_forward.5} parent=0 // pred_check_branch
    %13 = sbr.rel (0) target = $region13
  $region12: #{conv_block_nested_forward.5} parent=0 // pred_region
    _
  $region13: #{conv_block_nested_forward.5} parent=0 // pred_fallthru
    _
  %v14 = vld [vmem:[%s0] sm:$0xff]
  %v15 = vld [vmem:[%s0 + $0x8] sm:$0xff]
  %v16 = vld [vmem:[%s0 + $0x10] sm:$0xff]
  %v17 = vld [vmem:[%s0 + $0x18] sm:$0xff]
  %v18 = vld [vmem:[%s0 + $0x20] sm:$0xff]
  %v19 = vld [vmem:[%s0 + $0x28] sm:$0xff]
  %v20 = vld [vmem:[%s0 + $0x30] sm:$0xff]
  %v21 = vld [vmem:[%s0 + $0x38] sm:$0xff]
  %v22 = vld [vmem:[%s0 + $0x40] sm:$0xff]
  %v23 = vld [vmem:[%s0 + $0x48] sm:$0xff]
  %v24 = vld [vmem:[%s0 + $0x50] sm:$0xff]
  %v25 = vld [vmem:[%s0 + $0x58] sm:$0xff]
  %v26 = vld [vmem:[%s0 + $0x60] sm:$0xff]
  %v27 = vld [vmem:[%s0 + $0x68] sm:$0xff]
  %v28 = vld [vmem:[%s0 + $0x70] sm:$0xff]
  %v29 = vld [vmem:[%s0 + $0x78] sm:$0xff]
  %v30 = vld [vmem:[%s0 + $0x80] sm:$0xff]
  %v31 = vld [vmem:[%s0 + $0x88] sm:$0xff]
  %v32 = vld [vmem:[%s0 + $0x90] sm:$0xff]
  %v33 = vld [vmem:[%s0 + $0x98] sm:$0xff]
  %v34 = vld [vmem:[%s0 + $0xa0] sm:$0xff]
  %v35 = vld [vmem:[%s0 + $0xa8] sm:$0xff]
  %v36 = vld [vmem:[%s0 + $0xb0] sm:$0xff]
  %v37 = vld [vmem:[%s0 + $0xb8] sm:$0xff]
  %v38 = vld [vmem:[%s0 + $0xc0] sm:$0xff]
  %v39 = vld [vmem:[%s0 + $0xc8] sm:$0xff]
  %v40 = vld [vmem:[%s0 + $0xd0] sm:$0xff]
  %v41 = vld [vmem:[%s0 + $0xd8] sm:$0xff]
  %v42 = vld [vmem:[%s0 + $0xe0] sm:$0xff]
  %v43 = vld [vmem:[%s0 + $0xe8] sm:$0xff]
  %v44 = vld [vmem:[%s0 + $0xf0] sm:$0xff]
  %v45 = vld [vmem:[%s0 + $0xf8] sm:$0xff]
  %v46 = vld [vmem:[%s0 + $0x100] sm:$0xff]
  %v47 = vld [vmem:[%s0 + $0x108] sm:$0xff]
  %v48 = vld [vmem:[%s0 + $0x110] sm:$0xff]
  %v49 = vld [vmem:[%s0 + $0x118] sm:$0xff]
  %v50 = vld [vmem:[%s0 + $0x120] sm:$0xff]
  %v51 = vld [vmem:[%s0 + $0x128] sm:$0xff]
  %v52 = vld [vmem:[%s0 + $0x130] sm:$0xff]
  %v53 = vld [vmem:[%s0 + $0x138] sm:$0xff]
  %v54 = vld [vmem:[%s0 + $0x140] sm:$0xff]
  %v55 = vld [vmem:[%s0 + $0x148] sm:$0xff]
  %v56 = vld [vmem:[%s0 + $0x150] sm:$0xff]
  %v57 = vld [vmem:[%s0 + $0x158] sm:$0xff]
  %v58 = vld [vmem:[%s0 + $0x160] sm:$0xff]
  %v59 = vld [vmem:[%s0 + $0x168] sm:$0xff]
  %v60 = vld [vmem:[%s0 + $0x170] sm:$0xff]
  %v61 = vld [vmem:[%s0 + $0x178] sm:$0xff]
  %v62 = vld [vmem:[%s0 + $0x180] sm:$0xff]
  %v63 = vld [vmem:[%s0 + $0x188] sm:$0xff]
  %v64 = vld [vmem:[%s0 + $0x190] sm:$0xff]
  %v65 = vld [vmem:[%s0 + $0x198] sm:$0xff]
  %v66 = vld [vmem:[%s0 + $0x1a0] sm:$0xff]
  %v67 = vld [vmem:[%s0 + $0x1a8] sm:$0xff]
  %v68 = vld [vmem:[%s0 + $0x1b0] sm:$0xff]
  %v69 = vld [vmem:[%s0 + $0x1b8] sm:$0xff]
  %v70 = vld [vmem:[%s0 + $0x1c0] sm:$0xff]
  %v71 = vld [vmem:[%s0 + $0x1c8] sm:$0xff]
  %v72 = vld [vmem:[%s0 + $0x1d0] sm:$0xff]
  %v73 = vld [vmem:[%s0 + $0x1d8] sm:$0xff]
  %v74 = vld [vmem:[%s0 + $0x1e0] sm:$0xff]
  %v75 = vld [vmem:[%s0 + $0x1e8] sm:$0xff]
  %v76 = vld [vmem:[%s0 + $0x1f0] sm:$0xff]
  %v77 = vld [vmem:[%s0 + $0x1f8] sm:$0xff]
  %v78 = vld [vmem:[%s1] sm:$0x1]
  %v80 = vperm.slane %v78, 0
  %v82 = vmul.f32 %v14, %v80
  %v83 = vmul.f32 %v15, %v80
  %v84 = vmul.f32 %v16, %v80
  %v85 = vmul.f32 %v17, %v80
  %v86 = vmul.f32 %v18, %v80
  %v87 = vmul.f32 %v19, %v80
  %v88 = vmul.f32 %v20, %v80
  %v89 = vmul.f32 %v21, %v80
  %v90 = vmul.f32 %v22, %v80
  %v91 = vmul.f32 %v23, %v80
  %v92 = vmul.f32 %v24, %v80
  %v93 = vmul.f32 %v25, %v80
  %v94 = vmul.f32 %v26, %v80
  %v95 = vmul.f32 %v27, %v80
  %v96 = vmul.f32 %v28, %v80
  %v97 = vmul.f32 %v29, %v80
  %v98 = vmul.f32 %v30, %v80
  %v99 = vmul.f32 %v31, %v80
  %v100 = vmul.f32 %v32, %v80
  %v101 = vmul.f32 %v33, %v80
  %v102 = vmul.f32 %v34, %v80
  %v103 = vmul.f32 %v35, %v80
  %v104 = vmul.f32 %v36, %v80
  %v105 = vmul.f32 %v37, %v80
  %v106 = vmul.f32 %v38, %v80
  %v107 = vmul.f32 %v39, %v80
  %v108 = vmul.f32 %v40, %v80
  %v109 = vmul.f32 %v41, %v80
  %v110 = vmul.f32 %v42, %v80
  %v111 = vmul.f32 %v43, %v80
  %v112 = vmul.f32 %v44, %v80
  %v113 = vmul.f32 %v45, %v80
  %v114 = vmul.f32 %v46, %v80
  %v115 = vmul.f32 %v47, %v80
  %v116 = vmul.f32 %v48, %v80
  %v117 = vmul.f32 %v49, %v80
  %v118 = vmul.f32 %v50, %v80
  %v119 = vmul.f32 %v51, %v80
  %v120 = vmul.f32 %v52, %v80
  %v121 = vmul.f32 %v53, %v80
  %v122 = vmul.f32 %v54, %v80
  %v123 = vmul.f32 %v55, %v80
  %v124 = vmul.f32 %v56, %v80
  %v125 = vmul.f32 %v57, %v80
  %v126 = vmul.f32 %v58, %v80
  %v127 = vmul.f32 %v59, %v80
  %v128 = vmul.f32 %v60, %v80
  %v129 = vmul.f32 %v61, %v80
  %v130 = vmul.f32 %v62, %v80
  %v131 = vmul.f32 %v63, %v80
  %v132 = vmul.f32 %v64, %v80
  %v133 = vmul.f32 %v65, %v80
  %v134 = vmul.f32 %v66, %v80
  %v135 = vmul.f32 %v67, %v80
  %v136 = vmul.f32 %v68, %v80
  %v137 = vmul.f32 %v69, %v80
  %v138 = vmul.f32 %v70, %v80
  %v139 = vmul.f32 %v71, %v80
  %v140 = vmul.f32 %v72, %v80
  %v141 = vmul.f32 %v73, %v80
  %v142 = vmul.f32 %v74, %v80
  %v143 = vmul.f32 %v75, %v80
  %v144 = vmul.f32 %v76, %v80
  %v145 = vmul.f32 %v77, %v80
  %v146 = vld [vmem:[%s2] sm:$0x1]
  %v148 = vperm.slane %v146, 0
  %v150 = vadd.f32 %v82, %v148
  %v151 = vadd.f32 %v83, %v148
  %v152 = vadd.f32 %v84, %v148
  %v153 = vadd.f32 %v85, %v148
  %v154 = vadd.f32 %v86, %v148
  %v155 = vadd.f32 %v87, %v148
  %v156 = vadd.f32 %v88, %v148
  %v157 = vadd.f32 %v89, %v148
  %v158 = vadd.f32 %v90, %v148
  %v159 = vadd.f32 %v91, %v148
  %v160 = vadd.f32 %v92, %v148
  %v161 = vadd.f32 %v93, %v148
  %v162 = vadd.f32 %v94, %v148
  %v163 = vadd.f32 %v95, %v148
  %v164 = vadd.f32 %v96, %v148
  %v165 = vadd.f32 %v97, %v148
  %v166 = vadd.f32 %v98, %v148
  %v167 = vadd.f32 %v99, %v148
  %v168 = vadd.f32 %v100, %v148
  %v169 = vadd.f32 %v101, %v148
  %v170 = vadd.f32 %v102, %v148
  %v171 = vadd.f32 %v103, %v148
  %v172 = vadd.f32 %v104, %v148
  %v173 = vadd.f32 %v105, %v148
  %v174 = vadd.f32 %v106, %v148
  %v175 = vadd.f32 %v107, %v148
  %v176 = vadd.f32 %v108, %v148
  %v177 = vadd.f32 %v109, %v148
  %v178 = vadd.f32 %v110, %v148
  %v179 = vadd.f32 %v111, %v148
  %v180 = vadd.f32 %v112, %v148
  %v181 = vadd.f32 %v113, %v148
  %v182 = vadd.f32 %v114, %v148
  %v183 = vadd.f32 %v115, %v148
  %v184 = vadd.f32 %v116, %v148
  %v185 = vadd.f32 %v117, %v148
  %v186 = vadd.f32 %v118, %v148
  %v187 = vadd.f32 %v119, %v148
  %v188 = vadd.f32 %v120, %v148
  %v189 = vadd.f32 %v121, %v148
  %v190 = vadd.f32 %v122, %v148
  %v191 = vadd.f32 %v123, %v148
  %v192 = vadd.f32 %v124, %v148
  %v193 = vadd.f32 %v125, %v148
  %v194 = vadd.f32 %v126, %v148
  %v195 = vadd.f32 %v127, %v148
  %v196 = vadd.f32 %v128, %v148
  %v197 = vadd.f32 %v129, %v148
  %v198 = vadd.f32 %v130, %v148
  %v199 = vadd.f32 %v131, %v148
  %v200 = vadd.f32 %v132, %v148
  %v201 = vadd.f32 %v133, %v148
  %v202 = vadd.f32 %v134, %v148
  %v203 = vadd.f32 %v135, %v148
  %v204 = vadd.f32 %v136, %v148
  %v205 = vadd.f32 %v137, %v148
  %v206 = vadd.f32 %v138, %v148
  %v207 = vadd.f32 %v139, %v148
  %v208 = vadd.f32 %v140, %v148
  %v209 = vadd.f32 %v141, %v148
  %v210 = vadd.f32 %v142, %v148
  %v211 = vadd.f32 %v143, %v148
  %v212 = vadd.f32 %v144, %v148
  %v213 = vadd.f32 %v145, %v148
  %v214 = vmax.f32 %v150, 0.0
  %v215 = vmax.f32 %v151, 0.0
  %v216 = vmax.f32 %v152, 0.0
  %v217 = vmax.f32 %v153, 0.0
  %v218 = vmax.f32 %v154, 0.0
  %v219 = vmax.f32 %v155, 0.0
  %v220 = vmax.f32 %v156, 0.0
  %v221 = vmax.f32 %v157, 0.0
  %v222 = vmax.f32 %v158, 0.0
  %v223 = vmax.f32 %v159, 0.0
  %v224 = vmax.f32 %v160, 0.0
  %v225 = vmax.f32 %v161, 0.0
  %v226 = vmax.f32 %v162, 0.0
  %v227 = vmax.f32 %v163, 0.0
  %v228 = vmax.f32 %v164, 0.0
  %v229 = vmax.f32 %v165, 0.0
  %v230 = vmax.f32 %v166, 0.0
  %v231 = vmax.f32 %v167, 0.0
  %v232 = vmax.f32 %v168, 0.0
  %v233 = vmax.f32 %v169, 0.0
  %v234 = vmax.f32 %v170, 0.0
  %v235 = vmax.f32 %v171, 0.0
  %v236 = vmax.f32 %v172, 0.0
  %v237 = vmax.f32 %v173, 0.0
  %v238 = vmax.f32 %v174, 0.0
  %v239 = vmax.f32 %v175, 0.0
  %v240 = vmax.f32 %v176, 0.0
  %v241 = vmax.f32 %v177, 0.0
  %v242 = vmax.f32 %v178, 0.0
  %v243 = vmax.f32 %v179, 0.0
  %v244 = vmax.f32 %v180, 0.0
  %v245 = vmax.f32 %v181, 0.0
  %v246 = vmax.f32 %v182, 0.0
  %v247 = vmax.f32 %v183, 0.0
  %v248 = vmax.f32 %v184, 0.0
  %v249 = vmax.f32 %v185, 0.0
  %v250 = vmax.f32 %v186, 0.0
  %v251 = vmax.f32 %v187, 0.0
  %v252 = vmax.f32 %v188, 0.0
  %v253 = vmax.f32 %v189, 0.0
  %v254 = vmax.f32 %v190, 0.0
  %v255 = vmax.f32 %v191, 0.0
  %v256 = vmax.f32 %v192, 0.0
  %v257 = vmax.f32 %v193, 0.0
  %v258 = vmax.f32 %v194, 0.0
  %v259 = vmax.f32 %v195, 0.0
  %v260 = vmax.f32 %v196, 0.0
  %v261 = vmax.f32 %v197, 0.0
  %v262 = vmax.f32 %v198, 0.0
  %v263 = vmax.f32 %v199, 0.0
  %v264 = vmax.f32 %v200, 0.0
  %v265 = vmax.f32 %v201, 0.0
  %v266 = vmax.f32 %v202, 0.0
  %v267 = vmax.f32 %v203, 0.0
  %v268 = vmax.f32 %v204, 0.0
  %v269 = vmax.f32 %v205, 0.0
  %v270 = vmax.f32 %v206, 0.0
  %v271 = vmax.f32 %v207, 0.0
  %v272 = vmax.f32 %v208, 0.0
  %v273 = vmax.f32 %v209, 0.0
  %v274 = vmax.f32 %v210, 0.0
  %v275 = vmax.f32 %v211, 0.0
  %v276 = vmax.f32 %v212, 0.0
  %v277 = vmax.f32 %v213, 0.0
  %v278 = vpack.c.bf16 %v214, %v214
  %v279 = vpack.c.bf16 %v215, %v215
  %v280 = vpack.c.bf16 %v216, %v216
  %v281 = vpack.c.bf16 %v217, %v217
  %v282 = vpack.c.bf16 %v218, %v218
  %v283 = vpack.c.bf16 %v219, %v219
  %v284 = vpack.c.bf16 %v220, %v220
  %v285 = vpack.c.bf16 %v221, %v221
  %v286 = vpack.c.bf16 %v222, %v222
  %v287 = vpack.c.bf16 %v223, %v223
  %v288 = vpack.c.bf16 %v224, %v224
  %v289 = vpack.c.bf16 %v225, %v225
  %v290 = vpack.c.bf16 %v226, %v226
  %v291 = vpack.c.bf16 %v227, %v227
  %v292 = vpack.c.bf16 %v228, %v228
  %v293 = vpack.c.bf16 %v229, %v229
  %v294 = vpack.c.bf16 %v230, %v230
  %v295 = vpack.c.bf16 %v231, %v231
  %v296 = vpack.c.bf16 %v232, %v232
  %v297 = vpack.c.bf16 %v233, %v233
  %v298 = vpack.c.bf16 %v234, %v234
  %v299 = vpack.c.bf16 %v235, %v235
  %v300 = vpack.c.bf16 %v236, %v236
  %v301 = vpack.c.bf16 %v237, %v237
  %v302 = vpack.c.bf16 %v238, %v238
  %v303 = vpack.c.bf16 %v239, %v239
  %v304 = vpack.c.bf16 %v240, %v240
  %v305 = vpack.c.bf16 %v241, %v241
  %v306 = vpack.c.bf16 %v242, %v242
  %v307 = vpack.c.bf16 %v243, %v243
  %v308 = vpack.c.bf16 %v244, %v244
  %v309 = vpack.c.bf16 %v245, %v245
  %v310 = vpack.c.bf16 %v246, %v246
  %v311 = vpack.c.bf16 %v247, %v247
  %v312 = vpack.c.bf16 %v248, %v248
  %v313 = vpack.c.bf16 %v249, %v249
  %v314 = vpack.c.bf16 %v250, %v250
  %v315 = vpack.c.bf16 %v251, %v251
  %v316 = vpack.c.bf16 %v252, %v252
  %v317 = vpack.c.bf16 %v253, %v253
  %v318 = vpack.c.bf16 %v254, %v254
  %v319 = vpack.c.bf16 %v255, %v255
  %v320 = vpack.c.bf16 %v256, %v256
  %v321 = vpack.c.bf16 %v257, %v257
  %v322 = vpack.c.bf16 %v258, %v258
  %v323 = vpack.c.bf16 %v259, %v259
  %v324 = vpack.c.bf16 %v260, %v260
  %v325 = vpack.c.bf16 %v261, %v261
  %v326 = vpack.c.bf16 %v262, %v262
  %v327 = vpack.c.bf16 %v263, %v263
  %v328 = vpack.c.bf16 %v264, %v264
  %v329 = vpack.c.bf16 %v265, %v265
  %v330 = vpack.c.bf16 %v266, %v266
  %v331 = vpack.c.bf16 %v267, %v267
  %v332 = vpack.c.bf16 %v268, %v268
  %v333 = vpack.c.bf16 %v269, %v269
  %v334 = vpack.c.bf16 %v270, %v270
  %v335 = vpack.c.bf16 %v271, %v271
  %v336 = vpack.c.bf16 %v272, %v272
  %v337 = vpack.c.bf16 %v273, %v273
  %v338 = vpack.c.bf16 %v274, %v274
  %v339 = vpack.c.bf16 %v275, %v275
  %v340 = vpack.c.bf16 %v276, %v276
  %v341 = vpack.c.bf16 %v277, %v277
  %342 = vst [vmem:[%s3] sm:$0xf] %v278
  %343 = vst [vmem:[%s3 + $0x4] sm:$0xf] %v279
  %344 = vst [vmem:[%s3 + $0x8] sm:$0xf] %v280
  %345 = vst [vmem:[%s3 + $0xc] sm:$0xf] %v281
  %346 = vst [vmem:[%s3 + $0x10] sm:$0xf] %v282
  %347 = vst [vmem:[%s3 + $0x14] sm:$0xf] %v283
  %348 = vst [vmem:[%s3 + $0x18] sm:$0xf] %v284
  %349 = vst [vmem:[%s3 + $0x1c] sm:$0xf] %v285
  %350 = vst [vmem:[%s3 + $0x20] sm:$0xf] %v286
  %351 = vst [vmem:[%s3 + $0x24] sm:$0xf] %v287
  %352 = vst [vmem:[%s3 + $0x28] sm:$0xf] %v288
  %353 = vst [vmem:[%s3 + $0x2c] sm:$0xf] %v289
  %354 = vst [vmem:[%s3 + $0x30] sm:$0xf] %v290
  %355 = vst [vmem:[%s3 + $0x34] sm:$0xf] %v291
  %356 = vst [vmem:[%s3 + $0x38] sm:$0xf] %v292
  %357 = vst [vmem:[%s3 + $0x3c] sm:$0xf] %v293
  %358 = vst [vmem:[%s3 + $0x40] sm:$0xf] %v294
  %359 = vst [vmem:[%s3 + $0x44] sm:$0xf] %v295
  %360 = vst [vmem:[%s3 + $0x48] sm:$0xf] %v296
  %361 = vst [vmem:[%s3 + $0x4c] sm:$0xf] %v297
  %362 = vst [vmem:[%s3 + $0x50] sm:$0xf] %v298
  %363 = vst [vmem:[%s3 + $0x54] sm:$0xf] %v299
  %364 = vst [vmem:[%s3 + $0x58] sm:$0xf] %v300
  %365 = vst [vmem:[%s3 + $0x5c] sm:$0xf] %v301
  %366 = vst [vmem:[%s3 + $0x60] sm:$0xf] %v302
  %367 = vst [vmem:[%s3 + $0x64] sm:$0xf] %v303
  %368 = vst [vmem:[%s3 + $0x68] sm:$0xf] %v304
  %369 = vst [vmem:[%s3 + $0x6c] sm:$0xf] %v305
  %370 = vst [vmem:[%s3 + $0x70] sm:$0xf] %v306
  %371 = vst [vmem:[%s3 + $0x74] sm:$0xf] %v307
  %372 = vst [vmem:[%s3 + $0x78] sm:$0xf] %v308
  %373 = vst [vmem:[%s3 + $0x7c] sm:$0xf] %v309
  %374 = vst [vmem:[%s3 + $0x80] sm:$0xf] %v310
  %375 = vst [vmem:[%s3 + $0x84] sm:$0xf] %v311
  %376 = vst [vmem:[%s3 + $0x88] sm:$0xf] %v312
  %377 = vst [vmem:[%s3 + $0x8c] sm:$0xf] %v313
  %378 = vst [vmem:[%s3 + $0x90] sm:$0xf] %v314
  %379 = vst [vmem:[%s3 + $0x94] sm:$0xf] %v315
  %380 = vst [vmem:[%s3 + $0x98] sm:$0xf] %v316
  %381 = vst [vmem:[%s3 + $0x9c] sm:$0xf] %v317
  %382 = vst [vmem:[%s3 + $0xa0] sm:$0xf] %v318
  %383 = vst [vmem:[%s3 + $0xa4] sm:$0xf] %v319
  %384 = vst [vmem:[%s3 + $0xa8] sm:$0xf] %v320
  %385 = vst [vmem:[%s3 + $0xac] sm:$0xf] %v321
  %386 = vst [vmem:[%s3 + $0xb0] sm:$0xf] %v322
  %387 = vst [vmem:[%s3 + $0xb4] sm:$0xf] %v323
  %388 = vst [vmem:[%s3 + $0xb8] sm:$0xf] %v324
  %389 = vst [vmem:[%s3 + $0xbc] sm:$0xf] %v325
  %390 = vst [vmem:[%s3 + $0xc0] sm:$0xf] %v326
  %391 = vst [vmem:[%s3 + $0xc4] sm:$0xf] %v327
  %392 = vst [vmem:[%s3 + $0xc8] sm:$0xf] %v328
  %393 = vst [vmem:[%s3 + $0xcc] sm:$0xf] %v329
  %394 = vst [vmem:[%s3 + $0xd0] sm:$0xf] %v330
  %395 = vst [vmem:[%s3 + $0xd4] sm:$0xf] %v331
  %396 = vst [vmem:[%s3 + $0xd8] sm:$0xf] %v332
  %397 = vst [vmem:[%s3 + $0xdc] sm:$0xf] %v333
  %398 = vst [vmem:[%s3 + $0xe0] sm:$0xf] %v334
  %399 = vst [vmem:[%s3 + $0xe4] sm:$0xf] %v335
  %400 = vst [vmem:[%s3 + $0xe8] sm:$0xf] %v336
  %401 = vst [vmem:[%s3 + $0xec] sm:$0xf] %v337
  %402 = vst [vmem:[%s3 + $0xf0] sm:$0xf] %v338
  %403 = vst [vmem:[%s3 + $0xf4] sm:$0xf] %v339
  %404 = vst [vmem:[%s3 + $0xf8] sm:$0xf] %v340
  %405 = vst [vmem:[%s3 + $0xfc] sm:$0xf] %v341
  // Predicated region
  $region14: #{conv_block_nested_forward.5} parent=0 // pred_check
    _
  $region15: #{conv_block_nested_forward.5} parent=0 // pred_check_branch
    %407 = sbr.rel (0) target = $region17
  $region16: #{conv_block_nested_forward.5} parent=0 // pred_region
    _
  $region17: #{conv_block_nested_forward.5} parent=0 // pred_fallthru
    _
  // Predicated region
  $region18: #{conv_block_nested_forward.5} parent=0 // pred_check
    _
  $region19: #{conv_block_nested_forward.5} parent=0 // pred_check_branch
    %409 = sbr.rel (0) target = $region21
  $region20: #{conv_block_nested_forward.5} parent=0 // pred_region
    _
  $region21: #{conv_block_nested_forward.5} parent=0 // pred_fallthru
    _

// kernel: conv_block_nested_forward.7
$region0: #{conv_block_nested_forward.7}
  #allocation0 [shape = 'u32[]', space=smem, size = 0x4, offset = 0x4, fixed_abs, tag = 'smem constant byte address 0x4 - core index']
  #allocation1 [shape = 'u32[72,128]{1,0:T(1,128)}', space=vmem, size = 0x9000, scoped, tag = 'internal scratch']
  %s0 = inlined_call_operand.vmem [shape: f32[512,128], index: 0, kind: input, shape index: {}]
  %s1 = inlined_call_operand.vmem [shape: f32[1,128], index: 1, kind: input, shape index: {}]
  %s2 = inlined_call_operand.vmem [shape: f32[1,128], index: 2, kind: input, shape index: {}]
  %s3 = inlined_call_operand.vmem [shape: f32[512,128], index: 3, kind: output, shape index: {}]
  %s4 = sld [smem:[#allocation0]]
  $region22: #{conv_block_nested_forward.7} parent=0
    _
  %s6 = ssub.s32 1, %s4
  %s7 = scalar_select 0, %s6, %s4
  // Predicated region
  $region2: #{conv_block_nested_forward.7} parent=0 // pred_check
    _
  $region3: #{conv_block_nested_forward.7} parent=0 // pred_check_branch
    %9 = sbr.rel (0) target = $region5
  $region4: #{conv_block_nested_forward.7} parent=0 // pred_region
    _
  $region5: #{conv_block_nested_forward.7} parent=0 // pred_fallthru
    _
  // Predicated region
  $region6: #{conv_block_nested_forward.7} parent=0 // pred_check
    _
  $region7: #{conv_block_nested_forward.7} parent=0 // pred_check_branch
    %11 = sbr.rel (0) target = $region9
  $region8: #{conv_block_nested_forward.7} parent=0 // pred_region
    _
  $region9: #{conv_block_nested_forward.7} parent=0 // pred_fallthru
    _
  // Predicated region
  $region10: #{conv_block_nested_forward.7} parent=0 // pred_check
    _
  $region11: #{conv_block_nested_forward.7} parent=0 // pred_check_branch
    %13 = sbr.rel (0) target = $region13
  $region12: #{conv_block_nested_forward.7} parent=0 // pred_region
    _
  $region13: #{conv_block_nested_forward.7} parent=0 // pred_fallthru
    _
  %v14 = vld [vmem:[%s0] sm:$0xff]
  %v15 = vld [vmem:[%s0 + $0x8] sm:$0xff]
  %v16 = vld [vmem:[%s0 + $0x10] sm:$0xff]
  %v17 = vld [vmem:[%s0 + $0x18] sm:$0xff]
  %v18 = vld [vmem:[%s0 + $0x20] sm:$0xff]
  %v19 = vld [vmem:[%s0 + $0x28] sm:$0xff]
  %v20 = vld [vmem:[%s0 + $0x30] sm:$0xff]
  %v21 = vld [vmem:[%s0 + $0x38] sm:$0xff]
  %v22 = vld [vmem:[%s0 + $0x40] sm:$0xff]
  %v23 = vld [vmem:[%s0 + $0x48] sm:$0xff]
  %v24 = vld [vmem:[%s0 + $0x50] sm:$0xff]
  %v25 = vld [vmem:[%s0 + $0x58] sm:$0xff]
  %v26 = vld [vmem:[%s0 + $0x60] sm:$0xff]
  %v27 = vld [vmem:[%s0 + $0x68] sm:$0xff]
  %v28 = vld [vmem:[%s0 + $0x70] sm:$0xff]
  %v29 = vld [vmem:[%s0 + $0x78] sm:$0xff]
  %v30 = vld [vmem:[%s0 + $0x80] sm:$0xff]
  %v31 = vld [vmem:[%s0 + $0x88] sm:$0xff]
  %v32 = vld [vmem:[%s0 + $0x90] sm:$0xff]
  %v33 = vld [vmem:[%s0 + $0x98] sm:$0xff]
  %v34 = vld [vmem:[%s0 + $0xa0] sm:$0xff]
  %v35 = vld [vmem:[%s0 + $0xa8] sm:$0xff]
  %v36 = vld [vmem:[%s0 + $0xb0] sm:$0xff]
  %v37 = vld [vmem:[%s0 + $0xb8] sm:$0xff]
  %v38 = vld [vmem:[%s0 + $0xc0] sm:$0xff]
  %v39 = vld [vmem:[%s0 + $0xc8] sm:$0xff]
  %v40 = vld [vmem:[%s0 + $0xd0] sm:$0xff]
  %v41 = vld [vmem:[%s0 + $0xd8] sm:$0xff]
  %v42 = vld [vmem:[%s0 + $0xe0] sm:$0xff]
  %v43 = vld [vmem:[%s0 + $0xe8] sm:$0xff]
  %v44 = vld [vmem:[%s0 + $0xf0] sm:$0xff]
  %v45 = vld [vmem:[%s0 + $0xf8] sm:$0xff]
  %v46 = vld [vmem:[%s0 + $0x100] sm:$0xff]
  %v47 = vld [vmem:[%s0 + $0x108] sm:$0xff]
  %v48 = vld [vmem:[%s0 + $0x110] sm:$0xff]
  %v49 = vld [vmem:[%s0 + $0x118] sm:$0xff]
  %v50 = vld [vmem:[%s0 + $0x120] sm:$0xff]
  %v51 = vld [vmem:[%s0 + $0x128] sm:$0xff]
  %v52 = vld [vmem:[%s0 + $0x130] sm:$0xff]
  %v53 = vld [vmem:[%s0 + $0x138] sm:$0xff]
  %v54 = vld [vmem:[%s0 + $0x140] sm:$0xff]
  %v55 = vld [vmem:[%s0 + $0x148] sm:$0xff]
  %v56 = vld [vmem:[%s0 + $0x150] sm:$0xff]
  %v57 = vld [vmem:[%s0 + $0x158] sm:$0xff]
  %v58 = vld [vmem:[%s0 + $0x160] sm:$0xff]
  %v59 = vld [vmem:[%s0 + $0x168] sm:$0xff]
  %v60 = vld [vmem:[%s0 + $0x170] sm:$0xff]
  %v61 = vld [vmem:[%s0 + $0x178] sm:$0xff]
  %v62 = vld [vmem:[%s0 + $0x180] sm:$0xff]
  %v63 = vld [vmem:[%s0 + $0x188] sm:$0xff]
  %v64 = vld [vmem:[%s0 + $0x190] sm:$0xff]
  %v65 = vld [vmem:[%s0 + $0x198] sm:$0xff]
  %v66 = vld [vmem:[%s0 + $0x1a0] sm:$0xff]
  %v67 = vld [vmem:[%s0 + $0x1a8] sm:$0xff]
  %v68 = vld [vmem:[%s0 + $0x1b0] sm:$0xff]
  %v69 = vld [vmem:[%s0 + $0x1b8] sm:$0xff]
  %v70 = vld [vmem:[%s0 + $0x1c0] sm:$0xff]
  %v71 = vld [vmem:[%s0 + $0x1c8] sm:$0xff]
  %v72 = vld [vmem:[%s0 + $0x1d0] sm:$0xff]
  %v73 = vld [vmem:[%s0 + $0x1d8] sm:$0xff]
  %v74 = vld [vmem:[%s0 + $0x1e0] sm:$0xff]
  %v75 = vld [vmem:[%s0 + $0x1e8] sm:$0xff]
  %v76 = vld [vmem:[%s0 + $0x1f0] sm:$0xff]
  %v77 = vld [vmem:[%s0 + $0x1f8] sm:$0xff]
  %v78 = vld [vmem:[%s1] sm:$0x1]
  %v80 = vperm.slane %v78, 0
  %v82 = vmul.f32 %v14, %v80
  %v83 = vmul.f32 %v15, %v80
  %v84 = vmul.f32 %v16, %v80
  %v85 = vmul.f32 %v17, %v80
  %v86 = vmul.f32 %v18, %v80
  %v87 = vmul.f32 %v19, %v80
  %v88 = vmul.f32 %v20, %v80
  %v89 = vmul.f32 %v21, %v80
  %v90 = vmul.f32 %v22, %v80
  %v91 = vmul.f32 %v23, %v80
  %v92 = vmul.f32 %v24, %v80
  %v93 = vmul.f32 %v25, %v80
  %v94 = vmul.f32 %v26, %v80
  %v95 = vmul.f32 %v27, %v80
  %v96 = vmul.f32 %v28, %v80
  %v97 = vmul.f32 %v29, %v80
  %v98 = vmul.f32 %v30, %v80
  %v99 = vmul.f32 %v31, %v80
  %v100 = vmul.f32 %v32, %v80
  %v101 = vmul.f32 %v33, %v80
  %v102 = vmul.f32 %v34, %v80
  %v103 = vmul.f32 %v35, %v80
  %v104 = vmul.f32 %v36, %v80
  %v105 = vmul.f32 %v37, %v80
  %v106 = vmul.f32 %v38, %v80
  %v107 = vmul.f32 %v39, %v80
  %v108 = vmul.f32 %v40, %v80
  %v109 = vmul.f32 %v41, %v80
  %v110 = vmul.f32 %v42, %v80
  %v111 = vmul.f32 %v43, %v80
  %v112 = vmul.f32 %v44, %v80
  %v113 = vmul.f32 %v45, %v80
  %v114 = vmul.f32 %v46, %v80
  %v115 = vmul.f32 %v47, %v80
  %v116 = vmul.f32 %v48, %v80
  %v117 = vmul.f32 %v49, %v80
  %v118 = vmul.f32 %v50, %v80
  %v119 = vmul.f32 %v51, %v80
  %v120 = vmul.f32 %v52, %v80
  %v121 = vmul.f32 %v53, %v80
  %v122 = vmul.f32 %v54, %v80
  %v123 = vmul.f32 %v55, %v80
  %v124 = vmul.f32 %v56, %v80
  %v125 = vmul.f32 %v57, %v80
  %v126 = vmul.f32 %v58, %v80
  %v127 = vmul.f32 %v59, %v80
  %v128 = vmul.f32 %v60, %v80
  %v129 = vmul.f32 %v61, %v80
  %v130 = vmul.f32 %v62, %v80
  %v131 = vmul.f32 %v63, %v80
  %v132 = vmul.f32 %v64, %v80
  %v133 = vmul.f32 %v65, %v80
  %v134 = vmul.f32 %v66, %v80
  %v135 = vmul.f32 %v67, %v80
  %v136 = vmul.f32 %v68, %v80
  %v137 = vmul.f32 %v69, %v80
  %v138 = vmul.f32 %v70, %v80
  %v139 = vmul.f32 %v71, %v80
  %v140 = vmul.f32 %v72, %v80
  %v141 = vmul.f32 %v73, %v80
  %v142 = vmul.f32 %v74, %v80
  %v143 = vmul.f32 %v75, %v80
  %v144 = vmul.f32 %v76, %v80
  %v145 = vmul.f32 %v77, %v80
  %v146 = vld [vmem:[%s2] sm:$0x1]
  %v148 = vperm.slane %v146, 0
  %v150 = vadd.f32 %v82, %v148
  %v151 = vadd.f32 %v83, %v148
  %v152 = vadd.f32 %v84, %v148
  %v153 = vadd.f32 %v85, %v148
  %v154 = vadd.f32 %v86, %v148
  %v155 = vadd.f32 %v87, %v148
  %v156 = vadd.f32 %v88, %v148
  %v157 = vadd.f32 %v89, %v148
  %v158 = vadd.f32 %v90, %v148
  %v159 = vadd.f32 %v91, %v148
  %v160 = vadd.f32 %v92, %v148
  %v161 = vadd.f32 %v93, %v148
  %v162 = vadd.f32 %v94, %v148
  %v163 = vadd.f32 %v95, %v148
  %v164 = vadd.f32 %v96, %v148
  %v165 = vadd.f32 %v97, %v148
  %v166 = vadd.f32 %v98, %v148
  %v167 = vadd.f32 %v99, %v148
  %v168 = vadd.f32 %v100, %v148
  %v169 = vadd.f32 %v101, %v148
  %v170 = vadd.f32 %v102, %v148
  %v171 = vadd.f32 %v103, %v148
  %v172 = vadd.f32 %v104, %v148
  %v173 = vadd.f32 %v105, %v148
  %v174 = vadd.f32 %v106, %v148
  %v175 = vadd.f32 %v107, %v148
  %v176 = vadd.f32 %v108, %v148
  %v177 = vadd.f32 %v109, %v148
  %v178 = vadd.f32 %v110, %v148
  %v179 = vadd.f32 %v111, %v148
  %v180 = vadd.f32 %v112, %v148
  %v181 = vadd.f32 %v113, %v148
  %v182 = vadd.f32 %v114, %v148
  %v183 = vadd.f32 %v115, %v148
  %v184 = vadd.f32 %v116, %v148
  %v185 = vadd.f32 %v117, %v148
  %v186 = vadd.f32 %v118, %v148
  %v187 = vadd.f32 %v119, %v148
  %v188 = vadd.f32 %v120, %v148
  %v189 = vadd.f32 %v121, %v148
  %v190 = vadd.f32 %v122, %v148
  %v191 = vadd.f32 %v123, %v148
  %v192 = vadd.f32 %v124, %v148
  %v193 = vadd.f32 %v125, %v148
  %v194 = vadd.f32 %v126, %v148
  %v195 = vadd.f32 %v127, %v148
  %v196 = vadd.f32 %v128, %v148
  %v197 = vadd.f32 %v129, %v148
  %v198 = vadd.f32 %v130, %v148
  %v199 = vadd.f32 %v131, %v148
  %v200 = vadd.f32 %v132, %v148
  %v201 = vadd.f32 %v133, %v148
  %v202 = vadd.f32 %v134, %v148
  %v203 = vadd.f32 %v135, %v148
  %v204 = vadd.f32 %v136, %v148
  %v205 = vadd.f32 %v137, %v148
  %v206 = vadd.f32 %v138, %v148
  %v207 = vadd.f32 %v139, %v148
  %v208 = vadd.f32 %v140, %v148
  %v209 = vadd.f32 %v141, %v148
  %v210 = vadd.f32 %v142, %v148
  %v211 = vadd.f32 %v143, %v148
  %v212 = vadd.f32 %v144, %v148
  %v213 = vadd.f32 %v145, %v148
  %v214 = vmax.f32 %v150, 0.0
  %v215 = vmax.f32 %v151, 0.0
  %v216 = vmax.f32 %v152, 0.0
  %v217 = vmax.f32 %v153, 0.0
  %v218 = vmax.f32 %v154, 0.0
  %v219 = vmax.f32 %v155, 0.0
  %v220 = vmax.f32 %v156, 0.0
  %v221 = vmax.f32 %v157, 0.0
  %v222 = vmax.f32 %v158, 0.0
  %v223 = vmax.f32 %v159, 0.0
  %v224 = vmax.f32 %v160, 0.0
  %v225 = vmax.f32 %v161, 0.0
  %v226 = vmax.f32 %v162, 0.0
  %v227 = vmax.f32 %v163, 0.0
  %v228 = vmax.f32 %v164, 0.0
  %v229 = vmax.f32 %v165, 0.0
  %v230 = vmax.f32 %v166, 0.0
  %v231 = vmax.f32 %v167, 0.0
  %v232 = vmax.f32 %v168, 0.0
  %v233 = vmax.f32 %v169, 0.0
  %v234 = vmax.f32 %v170, 0.0
  %v235 = vmax.f32 %v171, 0.0
  %v236 = vmax.f32 %v172, 0.0
  %v237 = vmax.f32 %v173, 0.0
  %v238 = vmax.f32 %v174, 0.0
  %v239 = vmax.f32 %v175, 0.0
  %v240 = vmax.f32 %v176, 0.0
  %v241 = vmax.f32 %v177, 0.0
  %v242 = vmax.f32 %v178, 0.0
  %v243 = vmax.f32 %v179, 0.0
  %v244 = vmax.f32 %v180, 0.0
  %v245 = vmax.f32 %v181, 0.0
  %v246 = vmax.f32 %v182, 0.0
  %v247 = vmax.f32 %v183, 0.0
  %v248 = vmax.f32 %v184, 0.0
  %v249 = vmax.f32 %v185, 0.0
  %v250 = vmax.f32 %v186, 0.0
  %v251 = vmax.f32 %v187, 0.0
  %v252 = vmax.f32 %v188, 0.0
  %v253 = vmax.f32 %v189, 0.0
  %v254 = vmax.f32 %v190, 0.0
  %v255 = vmax.f32 %v191, 0.0
  %v256 = vmax.f32 %v192, 0.0
  %v257 = vmax.f32 %v193, 0.0
  %v258 = vmax.f32 %v194, 0.0
  %v259 = vmax.f32 %v195, 0.0
  %v260 = vmax.f32 %v196, 0.0
  %v261 = vmax.f32 %v197, 0.0
  %v262 = vmax.f32 %v198, 0.0
  %v263 = vmax.f32 %v199, 0.0
  %v264 = vmax.f32 %v200, 0.0
  %v265 = vmax.f32 %v201, 0.0
  %v266 = vmax.f32 %v202, 0.0
  %v267 = vmax.f32 %v203, 0.0
  %v268 = vmax.f32 %v204, 0.0
  %v269 = vmax.f32 %v205, 0.0
  %v270 = vmax.f32 %v206, 0.0
  %v271 = vmax.f32 %v207, 0.0
  %v272 = vmax.f32 %v208, 0.0
  %v273 = vmax.f32 %v209, 0.0
  %v274 = vmax.f32 %v210, 0.0
  %v275 = vmax.f32 %v211, 0.0
  %v276 = vmax.f32 %v212, 0.0
  %v277 = vmax.f32 %v213, 0.0
  %278 = vst [vmem:[%s3] sm:$0xff] %v214
  %279 = vst [vmem:[%s3 + $0x8] sm:$0xff] %v215
  %280 = vst [vmem:[%s3 + $0x10] sm:$0xff] %v216
  %281 = vst [vmem:[%s3 + $0x18] sm:$0xff] %v217
  %282 = vst [vmem:[%s3 + $0x20] sm:$0xff] %v218
  %283 = vst [vmem:[%s3 + $0x28] sm:$0xff] %v219
  %284 = vst [vmem:[%s3 + $0x30] sm:$0xff] %v220
  %285 = vst [vmem:[%s3 + $0x38] sm:$0xff] %v221
  %286 = vst [vmem:[%s3 + $0x40] sm:$0xff] %v222
  %287 = vst [vmem:[%s3 + $0x48] sm:$0xff] %v223
  %288 = vst [vmem:[%s3 + $0x50] sm:$0xff] %v224
  %289 = vst [vmem:[%s3 + $0x58] sm:$0xff] %v225
  %290 = vst [vmem:[%s3 + $0x60] sm:$0xff] %v226
  %291 = vst [vmem:[%s3 + $0x68] sm:$0xff] %v227
  %292 = vst [vmem:[%s3 + $0x70] sm:$0xff] %v228
  %293 = vst [vmem:[%s3 + $0x78] sm:$0xff] %v229
  %294 = vst [vmem:[%s3 + $0x80] sm:$0xff] %v230
  %295 = vst [vmem:[%s3 + $0x88] sm:$0xff] %v231
  %296 = vst [vmem:[%s3 + $0x90] sm:$0xff] %v232
  %297 = vst [vmem:[%s3 + $0x98] sm:$0xff] %v233
  %298 = vst [vmem:[%s3 + $0xa0] sm:$0xff] %v234
  %299 = vst [vmem:[%s3 + $0xa8] sm:$0xff] %v235
  %300 = vst [vmem:[%s3 + $0xb0] sm:$0xff] %v236
  %301 = vst [vmem:[%s3 + $0xb8] sm:$0xff] %v237
  %302 = vst [vmem:[%s3 + $0xc0] sm:$0xff] %v238
  %303 = vst [vmem:[%s3 + $0xc8] sm:$0xff] %v239
  %304 = vst [vmem:[%s3 + $0xd0] sm:$0xff] %v240
  %305 = vst [vmem:[%s3 + $0xd8] sm:$0xff] %v241
  %306 = vst [vmem:[%s3 + $0xe0] sm:$0xff] %v242
  %307 = vst [vmem:[%s3 + $0xe8] sm:$0xff] %v243
  %308 = vst [vmem:[%s3 + $0xf0] sm:$0xff] %v244
  %309 = vst [vmem:[%s3 + $0xf8] sm:$0xff] %v245
  %310 = vst [vmem:[%s3 + $0x100] sm:$0xff] %v246
  %311 = vst [vmem:[%s3 + $0x108] sm:$0xff] %v247
  %312 = vst [vmem:[%s3 + $0x110] sm:$0xff] %v248
  %313 = vst [vmem:[%s3 + $0x118] sm:$0xff] %v249
  %314 = vst [vmem:[%s3 + $0x120] sm:$0xff] %v250
  %315 = vst [vmem:[%s3 + $0x128] sm:$0xff] %v251
  %316 = vst [vmem:[%s3 + $0x130] sm:$0xff] %v252
  %317 = vst [vmem:[%s3 + $0x138] sm:$0xff] %v253
  %318 = vst [vmem:[%s3 + $0x140] sm:$0xff] %v254
  %319 = vst [vmem:[%s3 + $0x148] sm:$0xff] %v255
  %320 = vst [vmem:[%s3 + $0x150] sm:$0xff] %v256
  %321 = vst [vmem:[%s3 + $0x158] sm:$0xff] %v257
  %322 = vst [vmem:[%s3 + $0x160] sm:$0xff] %v258
  %323 = vst [vmem:[%s3 + $0x168] sm:$0xff] %v259
  %324 = vst [vmem:[%s3 + $0x170] sm:$0xff] %v260
  %325 = vst [vmem:[%s3 + $0x178] sm:$0xff] %v261
  %326 = vst [vmem:[%s3 + $0x180] sm:$0xff] %v262
  %327 = vst [vmem:[%s3 + $0x188] sm:$0xff] %v263
  %328 = vst [vmem:[%s3 + $0x190] sm:$0xff] %v264
  %329 = vst [vmem:[%s3 + $0x198] sm:$0xff] %v265
  %330 = vst [vmem:[%s3 + $0x1a0] sm:$0xff] %v266
  %331 = vst [vmem:[%s3 + $0x1a8] sm:$0xff] %v267
  %332 = vst [vmem:[%s3 + $0x1b0] sm:$0xff] %v268
  %333 = vst [vmem:[%s3 + $0x1b8] sm:$0xff] %v269
  %334 = vst [vmem:[%s3 + $0x1c0] sm:$0xff] %v270
  %335 = vst [vmem:[%s3 + $0x1c8] sm:$0xff] %v271
  %336 = vst [vmem:[%s3 + $0x1d0] sm:$0xff] %v272
  %337 = vst [vmem:[%s3 + $0x1d8] sm:$0xff] %v273
  %338 = vst [vmem:[%s3 + $0x1e0] sm:$0xff] %v274
  %339 = vst [vmem:[%s3 + $0x1e8] sm:$0xff] %v275
  %340 = vst [vmem:[%s3 + $0x1f0] sm:$0xff] %v276
  %341 = vst [vmem:[%s3 + $0x1f8] sm:$0xff] %v277
  // Predicated region
  $region14: #{conv_block_nested_forward.7} parent=0 // pred_check
    _
  $region15: #{conv_block_nested_forward.7} parent=0 // pred_check_branch
    %343 = sbr.rel (0) target = $region17
  $region16: #{conv_block_nested_forward.7} parent=0 // pred_region
    _
  $region17: #{conv_block_nested_forward.7} parent=0 // pred_fallthru
    _
  // Predicated region
  $region18: #{conv_block_nested_forward.7} parent=0 // pred_check
    _
  $region19: #{conv_block_nested_forward.7} parent=0 // pred_check_branch
    %345 = sbr.rel (0) target = $region21
  $region20: #{conv_block_nested_forward.7} parent=0 // pred_region
    _
  $region21: #{conv_block_nested_forward.7} parent=0 // pred_fallthru
    _

// kernel: conv_block_nested_forward.4
$region0: #{conv_block_nested_forward.4}
  #allocation0 [shape = 'u32[]', space=smem, size = 0x4, offset = 0x4, fixed_abs, tag = 'smem constant byte address 0x4 - core index']
  #allocation1 [shape = 'u32[72,128]{1,0:T(1,128)}', space=vmem, size = 0x9000, scoped, tag = 'internal scratch']
  #allocation2 [shape = 'bf16[18,16,128]{2,1,0:T(8,128)(2,1)}', space=vmem, size = 0x12000, scoped, tag = 'scratch operand']
  #allocation3 [shape = 's32[3]{0}', space=sflag, size = 0xc, scoped, tag = 'scratch operand']
  #allocation4 [shape = 's32[]', space=sflag, size = 0x4, offset = 0, fixed_abs, tag = 'sflag constant byte address 0x0 - dummy sync flag']
  #allocation5 [shape = 's32[]', space=sflag, size = 0x4, offset = 0, fixed_abs, tag = 'sflag constant byte address 0x0 - dummy sync flag']
  #allocation6 [shape = 's32[]', space=sflag, size = 0x4, offset = 0, fixed_abs, tag = 'sflag constant byte address 0x0 - dummy sync flag']
  %s0 = inlined_call_operand.vmem [shape: bf16[2,16,16,128], index: 0, kind: input, shape index: {}]
  %s1 = inlined_call_operand.vmem [shape: bf16[3,3,128,128], index: 1, kind: input, shape index: {}]
  %s2 = inlined_call_operand.vmem [shape: f32[1,128], index: 2, kind: input, shape index: {}]
  %s3 = inlined_call_operand.vmem [shape: f32[2,16,16,128], index: 3, kind: output, shape index: {0}]
  %s4 = inlined_call_operand.vmem [shape: f32[2,1,2,128], index: 4, kind: output, shape index: {1}]
  %5 = xla_tuple %s3, %s4
  %s6 = sld [smem:[#allocation0]]
  $region152: #{conv_block_nested_forward.4} parent=0
    _
  %s8 = ssub.s32 1, %s6
  %s9 = scalar_select 0, %s8, %s6
  loop: start=0, step=1, limit=4
  $region2: #{conv_block_nested_forward.4} parent=0 // loop_pre_header
    _
  $region3: #{conv_block_nested_forward.4} parent=0 // loop_header
    %s11 = sphi 0, %s15
    %p12 = scmp.ge.s32.totalorder %s11, 4
    %s18 = sphi 0, %s30
    %s19 = sphi 0, %s26
    %s20 = sphi 0, %s18
    %s21 = sphi 0, %s19
    %s22 = sphi 0, %s20
    %s23 = sphi 0, %s21
    %s31 = sphi 0, %s31
    %s33 = sphi 0, %s31
    %s34 = sphi 0, %s33
    %s48 = sphi 0, %s34
    %s52 = sphi 0, %s52
    %s54 = sphi 0, %s52
    %s55 = sphi 0, %s54
    %s69 = sphi 0, %s55
    %s77 = sphi 0, %s79
    %s80 = sphi 0, %s77
    %s81 = sphi 0, %s80
    %s97 = sphi 0, %s81
    %s105 = sphi 0, %s107
    %s108 = sphi 0, %s105
    %s109 = sphi 0, %s108
    %s125 = sphi 0, %s109
  $region4: #{conv_block_nested_forward.4} parent=0 // loop_header_branch
    %14 = sbr.rel (%p12) target = $region8
  $region5: #{conv_block_nested_forward.4} parent=0 // loop_body
    %s16 = ssub.s32 %s11, 1
    %s17 = ssub.s32 %s11, 2
    %s24 = sadd.s32 1, %s19
    %p25 = scmp.ge.s32.totalorder %s24, 1
    %s26 = scalar_select %p25, 0, %s24
    %s27 = sadd.s32 1, %s18
    %s28 = scalar_select %p25, %s27, %s18
    %p29 = scmp.ge.s32.totalorder %s28, 2
    %s30 = scalar_select %p29, 0, %s28
    %s32 = sadd.s32 %s31, 1
    %p35 = scmp.eq.s32.totalorder %s11, 1
    %p36 = scmp.ne.s32.totalorder %s31, %s33
    %p37 = scmp.eq.s32.totalorder %s11, 0
    %p38 = por %p36, %p37
    %p39 = scmp.ne.s32.totalorder %s31, %s33
    %p40 = scmp.eq.s32.totalorder %s16, 1
    %p41 = por %p39, %p40
    %p42 = scmp.ne.s32.totalorder %s33, %s34
    %p43 = scmp.eq.s32.totalorder %s16, 0
    %p44 = por %p42, %p43
    %p45 = scmp.ne.s32.totalorder %s33, %s34
    %p46 = scmp.eq.s32.totalorder %s17, 1
    %p47 = por %p45, %p46
    %p49 = scmp.ne.s32.totalorder %s34, %s48
    %p50 = scmp.eq.s32.totalorder %s17, 0
    %p51 = por %p49, %p50
    %s53 = sadd.s32 %s52, 1
    %p56 = scmp.eq.s32.totalorder %s11, 1
    %p57 = scmp.ne.s32.totalorder %s52, %s54
    %p58 = scmp.eq.s32.totalorder %s11, 0
    %p59 = por %p57, %p58
    %p60 = scmp.ne.s32.totalorder %s52, %s54
    %p61 = scmp.eq.s32.totalorder %s16, 1
    %p62 = por %p60, %p61
    %p63 = scmp.ne.s32.totalorder %s54, %s55
    %p64 = scmp.eq.s32.totalorder %s16, 0
    %p65 = por %p63, %p64
    %p66 = scmp.ne.s32.totalorder %s54, %s55
    %p67 = scmp.eq.s32.totalorder %s17, 1
    %p68 = por %p66, %p67
    %p70 = scmp.ne.s32.totalorder %s55, %s69
    %p71 = scmp.eq.s32.totalorder %s17, 0
    %p72 = por %p70, %p71
    %s73 = ssub.s32 %s18, %s30
    %s74 = ssub.s32 %s19, %s26
    %s75 = sor.u32 %s73, %s74
    %p76 = scmp.eq.s32.totalorder %s75, 0
    %s78 = sadd.s32 %s77, 1
    %s79 = scalar_select %p76, %s77, %s78
    %p82 = pneg %p76
    %p83 = scmp.eq.s32.totalorder %s11, 1
    %p84 = por %p82, %p83
    %p85 = scmp.ne.s32.totalorder %s77, %s80
    %p86 = scmp.eq.s32.totalorder %s11, 0
    %p87 = por %p85, %p86
    %p88 = scmp.ne.s32.totalorder %s77, %s80
    %p89 = scmp.eq.s32.totalorder %s16, 1
    %p90 = por %p88, %p89
    %p91 = scmp.ne.s32.totalorder %s80, %s81
    %p92 = scmp.eq.s32.totalorder %s16, 0
    %p93 = por %p91, %p92
    %p94 = scmp.ne.s32.totalorder %s80, %s81
    %p95 = scmp.eq.s32.totalorder %s17, 1
    %p96 = por %p94, %p95
    %p98 = scmp.ne.s32.totalorder %s81, %s97
    %p99 = scmp.eq.s32.totalorder %s17, 0
    %p100 = por %p98, %p99
    %s101 = ssub.s32 %s18, %s30
    %s102 = ssub.s32 %s19, %s26
    %s103 = sor.u32 %s101, %s102
    %p104 = scmp.eq.s32.totalorder %s103, 0
    %s106 = sadd.s32 %s105, 1
    %s107 = scalar_select %p104, %s105, %s106
    %p110 = pneg %p104
    %p111 = scmp.eq.s32.totalorder %s11, 1
    %p112 = por %p110, %p111
    %p113 = scmp.ne.s32.totalorder %s105, %s108
    %p114 = scmp.eq.s32.totalorder %s11, 0
    %p115 = por %p113, %p114
    %p116 = scmp.ne.s32.totalorder %s105, %s108
    %p117 = scmp.eq.s32.totalorder %s16, 1
    %p118 = por %p116, %p117
    %p119 = scmp.ne.s32.totalorder %s108, %s109
    %p120 = scmp.eq.s32.totalorder %s16, 0
    %p121 = por %p119, %p120
    %p122 = scmp.ne.s32.totalorder %s108, %s109
    %p123 = scmp.eq.s32.totalorder %s17, 1
    %p124 = por %p122, %p123
    %p126 = scmp.ne.s32.totalorder %s109, %s125
    %p127 = scmp.eq.s32.totalorder %s17, 0
    %p128 = por %p126, %p127
    %p129 = scmp.le.s32.totalorder 1, %s11
    %p130 = scmp.lt.s32.totalorder %s11, 3
    %p131 = pnand %p129, %p130
    %p132 = pneg %p131
    // Predicated region
    $region9: #{conv_block_nested_forward.4} parent=5 // pred_check
      _
    $region10: #{conv_block_nested_forward.4} parent=5 // pred_check_branch
      %134 = sbr.rel (%p131) target = $region12
    $region11: #{conv_block_nested_forward.4} parent=5 // pred_region
      %s135 = ssub.s32 %s11, 1
      // Predicated region
      $region13: #{conv_block_nested_forward.4} parent=11 // pred_check
        %p136 = pneg %p44
      $region14: #{conv_block_nested_forward.4} parent=11 // pred_check_branch
        %138 = sbr.rel (%p136) target = $region16
      $region15: #{conv_block_nested_forward.4} parent=11 // pred_region
        _
      $region16: #{conv_block_nested_forward.4} parent=11 // pred_fallthru
        _
      // Predicated region
      $region17: #{conv_block_nested_forward.4} parent=11 // pred_check
        %p139 = pneg %p65
      $region18: #{conv_block_nested_forward.4} parent=11 // pred_check_branch
        %141 = sbr.rel (%p139) target = $region20
      $region19: #{conv_block_nested_forward.4} parent=11 // pred_region
        _
      $region20: #{conv_block_nested_forward.4} parent=11 // pred_fallthru
        _
    $region12: #{conv_block_nested_forward.4} parent=5 // pred_fallthru
      _
    %p142 = scmp.lt.s32.totalorder %s11, 2
    // Predicated region
    $region21: #{conv_block_nested_forward.4} parent=5 // pred_check
      %p143 = pneg %p142
    $region22: #{conv_block_nested_forward.4} parent=5 // pred_check_branch
      %145 = sbr.rel (%p143) target = $region24
    $region23: #{conv_block_nested_forward.4} parent=5 // pred_region
      _
    $region24: #{conv_block_nested_forward.4} parent=5 // pred_fallthru
      _
    %p146 = scmp.le.s32.totalorder 1, %s11
    %p147 = scmp.lt.s32.totalorder %s11, 3
    %p148 = pnand %p146, %p147
    %p149 = pneg %p148
    // Predicated region
    $region25: #{conv_block_nested_forward.4} parent=5 // pred_check
      _
    $region26: #{conv_block_nested_forward.4} parent=5 // pred_check_branch
      %151 = sbr.rel (%p148) target = $region28
    $region27: #{conv_block_nested_forward.4} parent=5 // pred_region
      %s152 = ssub.s32 %s11, 1
      %p153 = pneg %p44
      %p154 = pneg %p41
      %p155 = pneg %p65
      %p156 = pneg %p62
      %p157 = pneg %p93
      %p158 = pneg %p90
      %s159 = smul.u32 16, %s21
      %p160 = scmp.lt.s32.totalorder %s20, 1
      %s161 = scalar_select %p160, %s20, 1
      %p162 = scmp.lt.s32.totalorder %s159, 15
      %s163 = scalar_select %p162, %s159, 15
      %s164 = smul.addr %s163, 2
      %s165 = smul.addr %s161, 32
      %s166 = sadd.s32 %s164, %s165
      %s167 = smul.addr %s166, 8
      %s168 = scalar_lea.vmem %s3, %s167
      %p169 = pneg %p121
      %p170 = pneg %p118
      %p171 = scmp.lt.s32.totalorder %s20, 1
      %s172 = scalar_select %p171, %s20, 1
      %p173 = scmp.lt.s32.totalorder %s21, 0
      %s174 = scalar_select %p173, %s21, 0
      %s175 = sadd.s32 %s174, %s172
      %s176 = smul.addr %s175, 2
      %s177 = scalar_lea.vmem %s4, %s176
      %s178 = smul.u32 16, %s21
      %p179 = scmp.lt.s32.totalorder %s20, 1
      %s180 = scalar_select %p179, %s20, 1
      %p181 = scmp.lt.s32.totalorder %s178, 15
      %s182 = scalar_select %p181, %s178, 15
      %s183 = smul.addr %s182, 2
      %s184 = smul.addr %s180, 32
      %s185 = sadd.s32 %s183, %s184
      %s186 = smul.addr %s185, 8
      %s187 = scalar_lea.vmem %s3, %s186
      %s188 = smul.u32 16, %s21
      %p189 = scmp.lt.s32.totalorder %s20, 1
      %s190 = scalar_select %p189, %s20, 1
      %p191 = scmp.lt.s32.totalorder %s21, 0
      %s192 = scalar_select %p191, %s21, 0
      %s193 = sadd.s32 %s192, %s190
      %s194 = smul.addr %s193, 2
      %s195 = scalar_lea.vmem %s4, %s194
      %s197 = smul.u32 %s21, 16
      %s198 = smul.u32 %s197, 2
      %s199 = smul.u32 %s20, 32
      %s200 = sadd.s32 %s198, %s199
      %s201 = smul.addr %s200, 4
      %s202 = scalar_lea.vmem %s0, %s201
      %s203 = scalar_lea.vmem [#allocation2], 8
      // Predicated region
      $region29: #{conv_block_nested_forward.4} parent=27 // pred_check
        _
      $region30: #{conv_block_nested_forward.4} parent=27 // pred_check_branch
        %205 = sbr.rel (0) target = $region32
      $region31: #{conv_block_nested_forward.4} parent=27 // pred_region
        loop: start=0, step=1, limit=1
        $region33: #{conv_block_nested_forward.4} parent=31 // loop_pre_header
          _
        $region34: #{conv_block_nested_forward.4} parent=31 // loop_header
          %s207 = sphi 0, %s211
          %p208 = scmp.ge.s32.totalorder %s207, 1
          %s212 = sphi %s202, %s202
          %s213 = sphi %s203, %s203
        $region35: #{conv_block_nested_forward.4} parent=31 // loop_header_branch
          %210 = sbr.rel (%p208) target = $region39
        $region36: #{conv_block_nested_forward.4} parent=31 // loop_body
          %v214 = vld [vmem:[%s212] sm:$0xff]
          %215 = vst [vmem:[%s213] sm:$0xff] %v214
          %v216 = vld [vmem:[%s212 + $0x8] sm:$0xff]
          %217 = vst [vmem:[%s213 + $0x8] sm:$0xff] %v216
          %v218 = vld [vmem:[%s212 + $0x10] sm:$0xff]
          %219 = vst [vmem:[%s213 + $0x10] sm:$0xff] %v218
          %v220 = vld [vmem:[%s212 + $0x18] sm:$0xff]
          %221 = vst [vmem:[%s213 + $0x18] sm:$0xff] %v220
          %v222 = vld [vmem:[%s212 + $0x20] sm:$0xff]
          %223 = vst [vmem:[%s213 + $0x20] sm:$0xff] %v222
          %v224 = vld [vmem:[%s212 + $0x28] sm:$0xff]
          %225 = vst [vmem:[%s213 + $0x28] sm:$0xff] %v224
          %v226 = vld [vmem:[%s212 + $0x30] sm:$0xff]
          %227 = vst [vmem:[%s213 + $0x30] sm:$0xff] %v226
          %v228 = vld [vmem:[%s212 + $0x38] sm:$0xff]
          %229 = vst [vmem:[%s213 + $0x38] sm:$0xff] %v228
          %v230 = vld [vmem:[%s212 + $0x40] sm:$0xff]
          %231 = vst [vmem:[%s213 + $0x40] sm:$0xff] %v230
          %v232 = vld [vmem:[%s212 + $0x48] sm:$0xff]
          %233 = vst [vmem:[%s213 + $0x48] sm:$0xff] %v232
          %v234 = vld [vmem:[%s212 + $0x50] sm:$0xff]
          %235 = vst [vmem:[%s213 + $0x50] sm:$0xff] %v234
          %v236 = vld [vmem:[%s212 + $0x58] sm:$0xff]
          %237 = vst [vmem:[%s213 + $0x58] sm:$0xff] %v236
          %v238 = vld [vmem:[%s212 + $0x60] sm:$0xff]
          %239 = vst [vmem:[%s213 + $0x60] sm:$0xff] %v238
          %v240 = vld [vmem:[%s212 + $0x68] sm:$0xff]
          %241 = vst [vmem:[%s213 + $0x68] sm:$0xff] %v240
          %v242 = vld [vmem:[%s212 + $0x70] sm:$0xff]
          %243 = vst [vmem:[%s213 + $0x70] sm:$0xff] %v242
          %v244 = vld [vmem:[%s212 + $0x78] sm:$0xff]
          %245 = vst [vmem:[%s213 + $0x78] sm:$0xff] %v244
        $region37: #{conv_block_nested_forward.4} parent=31 // loop_footer
          %s211 = sadd.s32 1, %s207
        $region38: #{conv_block_nested_forward.4} parent=31 // loop_footer_branch
          %206 = sbr.rel target = $region34
        $region39: #{conv_block_nested_forward.4} parent=31 // loop_exit
          _
      $region32: #{conv_block_nested_forward.4} parent=27 // pred_fallthru
        _
      // Predicated region
      $region40: #{conv_block_nested_forward.4} parent=27 // pred_check
        _
      $region41: #{conv_block_nested_forward.4} parent=27 // pred_check_branch
        %247 = sbr.rel target = $region43
      $region42: #{conv_block_nested_forward.4} parent=27 // pred_region
        _
      $region43: #{conv_block_nested_forward.4} parent=27 // pred_fallthru
        _
      // Predicated region
      $region44: #{conv_block_nested_forward.4} parent=27 // pred_check
        _
      $region45: #{conv_block_nested_forward.4} parent=27 // pred_check_branch
        %250 = sbr.rel (0) target = $region47
      $region46: #{conv_block_nested_forward.4} parent=27 // pred_region
        %251 = vsyncadd [#allocation3], 2048
      $region47: #{conv_block_nested_forward.4} parent=27 // pred_fallthru
        _
      %p252 = scmp.gt.s32.totalorder %s21, 0
      // Predicated region
      $region48: #{conv_block_nested_forward.4} parent=27 // pred_check
        %p253 = pneg %p252
      $region49: #{conv_block_nested_forward.4} parent=27 // pred_check_branch
        %255 = sbr.rel (%p253) target = $region51
      $region50: #{conv_block_nested_forward.4} parent=27 // pred_region
        %s256 = ssub.s32 %s197, 1
        %s257 = smul.u32 %s256, 2
        %s258 = sadd.s32 %s257, %s199
        %s259 = smul.addr %s258, 4
        %s260 = scalar_lea.vmem %s0, %s259
        %s261 = scalar_lea.sflag [#allocation3], 1
        // Predicated region
        $region52: #{conv_block_nested_forward.4} parent=50 // pred_check
          _
        $region53: #{conv_block_nested_forward.4} parent=50 // pred_check_branch
          %263 = sbr.rel (0) target = $region55
        $region54: #{conv_block_nested_forward.4} parent=50 // pred_region
          // Predicated region
          $region67: #{conv_block_nested_forward.4} parent=54 // pred_check
            _
          $region68: #{conv_block_nested_forward.4} parent=54 // pred_check_branch
            %279 = sbr.rel (0) target = $region70
          $region69: #{conv_block_nested_forward.4} parent=54 // pred_region
            loop: start=0, step=1, limit=1
            $region71: #{conv_block_nested_forward.4} parent=69 // loop_pre_header
              _
            $region72: #{conv_block_nested_forward.4} parent=69 // loop_header
              %s281 = sphi 0, %s285
              %p282 = scmp.ge.s32.totalorder %s281, 1
              %s286 = sphi %s260, %s260
              %s287 = sphi [#allocation2], [#allocation2]
            $region73: #{conv_block_nested_forward.4} parent=69 // loop_header_branch
              %284 = sbr.rel (%p282) target = $region77
            $region74: #{conv_block_nested_forward.4} parent=69 // loop_body
              %v288 = vld [vmem:[%s286] sm:$0xff]
              %289 = vst [vmem:[%s287] sm:$0xff] %v288
            $region75: #{conv_block_nested_forward.4} parent=69 // loop_footer
              %s285 = sadd.s32 1, %s281
            $region76: #{conv_block_nested_forward.4} parent=69 // loop_footer_branch
              %280 = sbr.rel target = $region72
            $region77: #{conv_block_nested_forward.4} parent=69 // loop_exit
              _
          $region70: #{conv_block_nested_forward.4} parent=54 // pred_fallthru
            _
          // Predicated region
          $region78: #{conv_block_nested_forward.4} parent=54 // pred_check
            _
          $region79: #{conv_block_nested_forward.4} parent=54 // pred_check_branch
            %291 = sbr.rel target = $region81
          $region80: #{conv_block_nested_forward.4} parent=54 // pred_region
            _
          $region81: #{conv_block_nested_forward.4} parent=54 // pred_fallthru
            _
        $region55: #{conv_block_nested_forward.4} parent=50 // pred_fallthru
          _
        // Predicated region
        $region56: #{conv_block_nested_forward.4} parent=50 // pred_check
          _
        $region57: #{conv_block_nested_forward.4} parent=50 // pred_check_branch
          %265 = sbr.rel target = $region59
        $region58: #{conv_block_nested_forward.4} parent=50 // pred_region
          %s267 = ssub.s32 256, 1
          loop: start=0, step=1, limit=1
          $region60: #{conv_block_nested_forward.4} parent=58 // loop_pre_header
            _
          $region61: #{conv_block_nested_forward.4} parent=58 // loop_header
            %s269 = sphi 0, %s273
            %p270 = scmp.ge.s32.totalorder %s269, 1
            %s274 = sphi %s260, %s260
            %s275 = sphi [#allocation2], [#allocation2]
          $region62: #{conv_block_nested_forward.4} parent=58 // loop_header_branch
            %272 = sbr.rel (%p270) target = $region66
          $region63: #{conv_block_nested_forward.4} parent=58 // loop_body
            %v276 = vld [vmem:[%s274] sm:%s267]
            %277 = vst [vmem:[%s275] sm:%s267] %v276
          $region64: #{conv_block_nested_forward.4} parent=58 // loop_footer
            %s273 = sadd.s32 1, %s269
          $region65: #{conv_block_nested_forward.4} parent=58 // loop_footer_branch
            %268 = sbr.rel target = $region61
          $region66: #{conv_block_nested_forward.4} parent=58 // loop_exit
            _
        $region59: #{conv_block_nested_forward.4} parent=50 // pred_fallthru
          _
        // Predicated region
        $region82: #{conv_block_nested_forward.4} parent=50 // pred_check
          _
        $region83: #{conv_block_nested_forward.4} parent=50 // pred_check_branch
          %294 = sbr.rel (0) target = $region85
        $region84: #{conv_block_nested_forward.4} parent=50 // pred_region
          %295 = vsyncadd %s261, 128
        $region85: #{conv_block_nested_forward.4} parent=50 // pred_fallthru
          _
      $region51: #{conv_block_nested_forward.4} parent=27 // pred_fallthru
        _
      %p296 = scmp.lt.s32.totalorder %s21, 0
      // Predicated region
      $region86: #{conv_block_nested_forward.4} parent=27 // pred_check
        %p297 = pneg %p296
      $region87: #{conv_block_nested_forward.4} parent=27 // pred_check_branch
        %299 = sbr.rel (%p297) target = $region89
      $region88: #{conv_block_nested_forward.4} parent=27 // pred_region
        %s300 = sadd.s32 %s197, 16
        %s301 = smul.u32 %s300, 2
        %s302 = sadd.s32 %s301, %s199
        %s303 = smul.addr %s302, 4
        %s304 = scalar_lea.vmem %s0, %s303
        %s305 = scalar_lea.vmem [#allocation2], 136
        %s306 = scalar_lea.sflag [#allocation3], 2
        // Predicated region
        $region90: #{conv_block_nested_forward.4} parent=88 // pred_check
          _
        $region91: #{conv_block_nested_forward.4} parent=88 // pred_check_branch
          %308 = sbr.rel (0) target = $region93
        $region92: #{conv_block_nested_forward.4} parent=88 // pred_region
          // Predicated region
          $region105: #{conv_block_nested_forward.4} parent=92 // pred_check
            _
          $region106: #{conv_block_nested_forward.4} parent=92 // pred_check_branch
            %324 = sbr.rel (0) target = $region108
          $region107: #{conv_block_nested_forward.4} parent=92 // pred_region
            loop: start=0, step=1, limit=1
            $region109: #{conv_block_nested_forward.4} parent=107 // loop_pre_header
              _
            $region110: #{conv_block_nested_forward.4} parent=107 // loop_header
              %s326 = sphi 0, %s330
              %p327 = scmp.ge.s32.totalorder %s326, 1
              %s331 = sphi %s304, %s304
              %s332 = sphi %s305, %s305
            $region111: #{conv_block_nested_forward.4} parent=107 // loop_header_branch
              %329 = sbr.rel (%p327) target = $region115
            $region112: #{conv_block_nested_forward.4} parent=107 // loop_body
              %v333 = vld [vmem:[%s331] sm:$0xff]
              %334 = vst [vmem:[%s332] sm:$0xff] %v333
            $region113: #{conv_block_nested_forward.4} parent=107 // loop_footer
              %s330 = sadd.s32 1, %s326
            $region114: #{conv_block_nested_forward.4} parent=107 // loop_footer_branch
              %325 = sbr.rel target = $region110
            $region115: #{conv_block_nested_forward.4} parent=107 // loop_exit
              _
          $region108: #{conv_block_nested_forward.4} parent=92 // pred_fallthru
            _
          // Predicated region
          $region116: #{conv_block_nested_forward.4} parent=92 // pred_check
            _
          $region117: #{conv_block_nested_forward.4} parent=92 // pred_check_branch
            %336 = sbr.rel target = $region119
          $region118: #{conv_block_nested_forward.4} parent=92 // pred_region
            _
          $region119: #{conv_block_nested_forward.4} parent=92 // pred_fallthru
            _
        $region93: #{conv_block_nested_forward.4} parent=88 // pred_fallthru
          _
        // Predicated region
        $region94: #{conv_block_nested_forward.4} parent=88 // pred_check
          _
        $region95: #{conv_block_nested_forward.4} parent=88 // pred_check_branch
          %310 = sbr.rel target = $region97
        $region96: #{conv_block_nested_forward.4} parent=88 // pred_region
          %s312 = ssub.s32 256, 1
          loop: start=0, step=1, limit=1
          $region98: #{conv_block_nested_forward.4} parent=96 // loop_pre_header
            _
          $region99: #{conv_block_nested_forward.4} parent=96 // loop_header
            %s314 = sphi 0, %s318
            %p315 = scmp.ge.s32.totalorder %s314, 1
            %s319 = sphi %s304, %s304
            %s320 = sphi %s305, %s305
          $region100: #{conv_block_nested_forward.4} parent=96 // loop_header_branch
            %317 = sbr.rel (%p315) target = $region104
          $region101: #{conv_block_nested_forward.4} parent=96 // loop_body
            %v321 = vld [vmem:[%s319] sm:%s312]
            %322 = vst [vmem:[%s320] sm:%s312] %v321
          $region102: #{conv_block_nested_forward.4} parent=96 // loop_footer
            %s318 = sadd.s32 1, %s314
          $region103: #{conv_block_nested_forward.4} parent=96 // loop_footer_branch
            %313 = sbr.rel target = $region99
          $region104: #{conv_block_nested_forward.4} parent=96 // loop_exit
            _
        $region97: #{conv_block_nested_forward.4} parent=88 // pred_fallthru
          _
        // Predicated region
        $region120: #{conv_block_nested_forward.4} parent=88 // pred_check
          _
        $region121: #{conv_block_nested_forward.4} parent=88 // pred_check_branch
          %339 = sbr.rel (0) target = $region123
        $region122: #{conv_block_nested_forward.4} parent=88 // pred_region
          %340 = vsyncadd %s306, 128
        $region123: #{conv_block_nested_forward.4} parent=88 // pred_fallthru
          _
      $region89: #{conv_block_nested_forward.4} parent=27 // pred_fallthru
        _
      %s341 = smul.u32 4, 16
      %s342 = smul.u32 %s341, 2
      %s343 = smul.u32 %s342, 1
      %s344 = sshll.u32 %s343, 4
      %345 = dma.done [#allocation3], %s344
      // Predicated region
      $region124: #{conv_block_nested_forward.4} parent=27 // pred_check
        %p346 = pneg %p252
      $region125: #{conv_block_nested_forward.4} parent=27 // pred_check_branch
        %348 = sbr.rel (%p346) target = $region127
      $region126: #{conv_block_nested_forward.4} parent=27 // pred_region
        %s349 = scalar_lea.sflag [#allocation3], 1
        %s350 = smul.u32 4, 1
        %s351 = smul.u32 %s350, 2
        %s352 = smul.u32 %s351, 1
        %s353 = sshll.u32 %s352, 4
        %354 = dma.done %s349, %s353
      $region127: #{conv_block_nested_forward.4} parent=27 // pred_fallthru
        _
      // Predicated region
      $region128: #{conv_block_nested_forward.4} parent=27 // pred_check
        %p355 = pneg %p296
      $region129: #{conv_block_nested_forward.4} parent=27 // pred_check_branch
        %357 = sbr.rel (%p355) target = $region131
      $region130: #{conv_block_nested_forward.4} parent=27 // pred_region
        %s358 = scalar_lea.sflag [#allocation3], 2
        %s359 = smul.u32 4, 1
        %s360 = smul.u32 %s359, 2
        %s361 = smul.u32 %s360, 1
        %s362 = sshll.u32 %s361, 4
        %363 = dma.done %s358, %s362
      $region131: #{conv_block_nested_forward.4} parent=27 // pred_fallthru
        _
      %v364 = vld [vmem:[#allocation2] sm:$0xf]
      %v365 = vld [vmem:[#allocation2 + $0x4] sm:$0xf]
      %v366 = vld [vmem:[#allocation2 + $0x8] sm:$0xf]
      %v367 = vld [vmem:[#allocation2 + $0xc] sm:$0xf]
      %v368 = vld [vmem:[#allocation2 + $0x10] sm:$0xf]
      %v369 = vld [vmem:[#allocation2 + $0x14] sm:$0xf]
      %v370 = vld [vmem:[#allocation2 + $0x18] sm:$0xf]
      %v371 = vld [vmem:[#allocation2 + $0x1c] sm:$0xf]
      %v372 = vld [vmem:[#allocation2 + $0x20] sm:$0xf]
      %v373 = vld [vmem:[#allocation2 + $0x24] sm:$0xf]
      %v374 = vld [vmem:[#allocation2 + $0x28] sm:$0xf]
      %v375 = vld [vmem:[#allocation2 + $0x2c] sm:$0xf]
      %v376 = vld [vmem:[#allocation2 + $0x30] sm:$0xf]
      %v377 = vld [vmem:[#allocation2 + $0x34] sm:$0xf]
      %v378 = vld [vmem:[#allocation2 + $0x38] sm:$0xf]
      %v379 = vld [vmem:[#allocation2 + $0x3c] sm:$0xf]
      %v380 = vld [vmem:[#allocation2 + $0x40] sm:$0xf]
      %v381 = vld [vmem:[#allocation2 + $0x44] sm:$0xf]
      %v382 = vld [vmem:[#allocation2 + $0x48] sm:$0xf]
      %v383 = vld [vmem:[#allocation2 + $0x4c] sm:$0xf]
      %v384 = vld [vmem:[#allocation2 + $0x50] sm:$0xf]
      %v385 = vld [vmem:[#allocation2 + $0x54] sm:$0xf]
      %v386 = vld [vmem:[#allocation2 + $0x58] sm:$0xf]
      %v387 = vld [vmem:[#allocation2 + $0x5c] sm:$0xf]
      %v388 = vld [vmem:[#allocation2 + $0x60] sm:$0xf]
      %v389 = vld [vmem:[#allocation2 + $0x64] sm:$0xf]
      %v390 = vld [vmem:[#allocation2 + $0x68] sm:$0xf]
      %v391 = vld [vmem:[#allocation2 + $0x6c] sm:$0xf]
      %v392 = vld [vmem:[#allocation2 + $0x70] sm:$0xf]
      %v393 = vld [vmem:[#allocation2 + $0x74] sm:$0xf]
      %v394 = vld [vmem:[#allocation2 + $0x78] sm:$0xf]
      %v395 = vld [vmem:[#allocation2 + $0x7c] sm:$0xf]
      %v396 = vld [vmem:[#allocation2 + $0x80] sm:$0xf]
      %v397 = vld [vmem:[#allocation2 + $0x84] sm:$0xf]
      %v398 = vld [vmem:[#allocation2 + $0x88] sm:$0xf]
      %v399 = vld [vmem:[#allocation2 + $0x8c] sm:$0xf]
      %s400 = scalar_select %p252, 1, 0
      %v401 = vstv %s400
      %vm402 = vcmp.eq.s32.totalorder %v401, 1
      %v403 = vsel %vm402, %v364, 0
      %v404 = vsel %vm402, %v365, 0
      %s405 = scalar_select %p296, 1, 0
      %v406 = vstv %s405
      %vm407 = vcmp.eq.s32.totalorder %v406, 1
      %v408 = vsel %vm407, %v398, 0
      %v409 = vsel %vm407, %v399, 0
      %v446 = vunpack.c.l.b16 %v403
      %v447 = vunpack.c.l.b16 %v404
      %v448 = vunpack.c.l.b16 %v366
      %v449 = vunpack.c.l.b16 %v367
      %v450 = vunpack.c.l.b16 %v368
      %v451 = vunpack.c.l.b16 %v369
      %v452 = vunpack.c.l.b16 %v370
      %v453 = vunpack.c.l.b16 %v371
      %v454 = vunpack.c.l.b16 %v372
      %v455 = vunpack.c.l.b16 %v373
      %v456 = vunpack.c.l.b16 %v374
      %v457 = vunpack.c.l.b16 %v375
      %v458 = vunpack.c.l.b16 %v376
      %v459 = vunpack.c.l.b16 %v377
      %v460 = vunpack.c.l.b16 %v378
      %v461 = vunpack.c.l.b16 %v379
      %v462 = vunpack.c.l.b16 %v380
      %v463 = vunpack.c.l.b16 %v381
      %v464 = vunpack.c.l.b16 %v382
      %v465 = vunpack.c.l.b16 %v383
      %v466 = vunpack.c.l.b16 %v384
      %v467 = vunpack.c.l.b16 %v385
      %v468 = vunpack.c.l.b16 %v386
      %v469 = vunpack.c.l.b16 %v387
      %v470 = vunpack.c.l.b16 %v388
      %v471 = vunpack.c.l.b16 %v389
      %v472 = vunpack.c.l.b16 %v390
      %v473 = vunpack.c.l.b16 %v391
      %v474 = vunpack.c.l.b16 %v392
      %v475 = vunpack.c.l.b16 %v393
      %v476 = vunpack.c.l.b16 %v394
      %v477 = vunpack.c.l.b16 %v395
      %v478 = vunpack.c.l.b16 %v396
      %v479 = vunpack.c.l.b16 %v397
      %v480 = vunpack.c.l.b16 %v408
      %v481 = vunpack.c.l.b16 %v409
      %v482 = vpack.c.b16 %v447, %v446
      %v483 = vpack.c.b16 %v449, %v448
      %v484 = vpack.c.b16 %v451, %v450
      %v485 = vpack.c.b16 %v453, %v452
      %v486 = vpack.c.b16 %v455, %v454
      %v487 = vpack.c.b16 %v457, %v456
      %v488 = vpack.c.b16 %v459, %v458
      %v489 = vpack.c.b16 %v461, %v460
      %v490 = vpack.c.b16 %v463, %v462
      %v491 = vpack.c.b16 %v465, %v464
      %v492 = vpack.c.b16 %v467, %v466
      %v493 = vpack.c.b16 %v469, %v468
      %v494 = vpack.c.b16 %v471, %v470
      %v495 = vpack.c.b16 %v473, %v472
      %v496 = vpack.c.b16 %v475, %v474
      %v497 = vpack.c.b16 %v477, %v476
      %v498 = vpack.c.b16 %v479, %v478
      %v499 = vpack.c.b16 %v481, %v480
      %v501 = vshrl.u32 %v482, 16
      %v503 = vrot.slane %v501, 7
      %v504 = vshll.u32 %v482, 16
      %v506 = vor.u32 %v503, %v504
      %v508 = vshrl.u32 %v483, 16
      %v510 = vrot.slane %v508, 7
      %v511 = vshll.u32 %v483, 16
      %v513 = vor.u32 %v510, %v511
      %v515 = vshrl.u32 %v484, 16
      %v517 = vrot.slane %v515, 7
      %v518 = vshll.u32 %v484, 16
      %v520 = vor.u32 %v517, %v518
      %v522 = vshrl.u32 %v485, 16
      %v524 = vrot.slane %v522, 7
      %v525 = vshll.u32 %v485, 16
      %v527 = vor.u32 %v524, %v525
      %v529 = vshrl.u32 %v486, 16
      %v531 = vrot.slane %v529, 7
      %v532 = vshll.u32 %v486, 16
      %v534 = vor.u32 %v531, %v532
      %v536 = vshrl.u32 %v487, 16
      %v538 = vrot.slane %v536, 7
      %v539 = vshll.u32 %v487, 16
      %v541 = vor.u32 %v538, %v539
      %v543 = vshrl.u32 %v488, 16
      %v545 = vrot.slane %v543, 7
      %v546 = vshll.u32 %v488, 16
      %v548 = vor.u32 %v545, %v546
      %v550 = vshrl.u32 %v489, 16
      %v552 = vrot.slane %v550, 7
      %v553 = vshll.u32 %v489, 16
      %v555 = vor.u32 %v552, %v553
      %v557 = vshrl.u32 %v490, 16
      %v559 = vrot.slane %v557, 7
      %v560 = vshll.u32 %v490, 16
      %v562 = vor.u32 %v559, %v560
      %v564 = vshrl.u32 %v491, 16
      %v566 = vrot.slane %v564, 7
      %v567 = vshll.u32 %v491, 16
      %v569 = vor.u32 %v566, %v567
      %v571 = vshrl.u32 %v492, 16
      %v573 = vrot.slane %v571, 7
      %v574 = vshll.u32 %v492, 16
      %v576 = vor.u32 %v573, %v574
      %v578 = vshrl.u32 %v493, 16
      %v580 = vrot.slane %v578, 7
      %v581 = vshll.u32 %v493, 16
      %v583 = vor.u32 %v580, %v581
      %v585 = vshrl.u32 %v494, 16
      %v587 = vrot.slane %v585, 7
      %v588 = vshll.u32 %v494, 16
      %v590 = vor.u32 %v587, %v588
      %v592 = vshrl.u32 %v495, 16
      %v594 = vrot.slane %v592, 7
      %v595 = vshll.u32 %v495, 16
      %v597 = vor.u32 %v594, %v595
      %v599 = vshrl.u32 %v496, 16
      %v601 = vrot.slane %v599, 7
      %v602 = vshll.u32 %v496, 16
      %v604 = vor.u32 %v601, %v602
      %v606 = vshrl.u32 %v497, 16
      %v608 = vrot.slane %v606, 7
      %v609 = vshll.u32 %v497, 16
      %v611 = vor.u32 %v608, %v609
      %v613 = vshrl.u32 %v498, 16
      %v615 = vrot.slane %v613, 7
      %v616 = vshll.u32 %v498, 16
      %v618 = vor.u32 %v615, %v616
      %v620 = vshrl.u32 %v499, 16
      %v622 = vrot.slane %v620, 7
      %v623 = vshll.u32 %v499, 16
      %v625 = vor.u32 %v622, %v623
      %vm662 = vcmask 1040384
      %vm663 = vsmask.f32 256
      %vm664 = vmand %vm662, %vm663
      %v665 = vsel %vm664, 0, %v506
      %v666 = vsel %vm664, 0, %v513
      %v667 = vsel %vm664, 0, %v520
      %v668 = vsel %vm664, 0, %v527
      %v669 = vsel %vm664, 0, %v534
      %v670 = vsel %vm664, 0, %v541
      %v671 = vsel %vm664, 0, %v548
      %v672 = vsel %vm664, 0, %v555
      %v673 = vsel %vm664, 0, %v562
      %v674 = vsel %vm664, 0, %v569
      %v675 = vsel %vm664, 0, %v576
      %v676 = vsel %vm664, 0, %v583
      %v677 = vsel %vm664, 0, %v590
      %v678 = vsel %vm664, 0, %v597
      %v679 = vsel %vm664, 0, %v604
      %v680 = vsel %vm664, 0, %v611
      %v681 = vsel %vm664, 0, %v618
      %v682 = vsel %vm664, 0, %v625
      %v683 = vsel %vm664, %v503, 0
      %v684 = vsel %vm664, %v510, 0
      %v685 = vsel %vm664, %v517, 0
      %v686 = vsel %vm664, %v524, 0
      %v687 = vsel %vm664, %v531, 0
      %v688 = vsel %vm664, %v538, 0
      %v689 = vsel %vm664, %v545, 0
      %v690 = vsel %vm664, %v552, 0
      %v691 = vsel %vm664, %v559, 0
      %v692 = vsel %vm664, %v566, 0
      %v693 = vsel %vm664, %v573, 0
      %v694 = vsel %vm664, %v580, 0
      %v695 = vsel %vm664, %v587, 0
      %v696 = vsel %vm664, %v594, 0
      %v697 = vsel %vm664, %v601, 0
      %v698 = vsel %vm664, %v608, 0
      %v699 = vsel %vm664, %v615, 0
      %v700 = vsel %vm664, %v622, 0
      %v701 = vld [vmem:[%s1] sm:$0xf]
      %v702 = vld [vmem:[%s1 + $0x4] sm:$0xf]
      %v703 = vld [vmem:[%s1 + $0x8] sm:$0xf]
      %v704 = vld [vmem:[%s1 + $0xc] sm:$0xf]
      %v705 = vld [vmem:[%s1 + $0x10] sm:$0xf]
      %v706 = vld [vmem:[%s1 + $0x14] sm:$0xf]
      %v707 = vld [vmem:[%s1 + $0x18] sm:$0xf]
      %v708 = vld [vmem:[%s1 + $0x1c] sm:$0xf]
      %v709 = vld [vmem:[%s1 + $0x20] sm:$0xf]
      %v710 = vld [vmem:[%s1 + $0x24] sm:$0xf]
      %v711 = vld [vmem:[%s1 + $0x28] sm:$0xf]
      %v712 = vld [vmem:[%s1 + $0x2c] sm:$0xf]
      %v713 = vld [vmem:[%s1 + $0x30] sm:$0xf]
      %v714 = vld [vmem:[%s1 + $0x34] sm:$0xf]
      %v715 = vld [vmem:[%s1 + $0x38] sm:$0xf]
      %v716 = vld [vmem:[%s1 + $0x3c] sm:$0xf]
      %vm717 = vsmask.f32 7424
      %v719 = vshrl.u32 %v665, 16
      %v721 = vshll.u32 %v665, 16
      %v723 = vrot.slane %v721, 1
      %v724 = vor.u32 %v719, %v723
      %v726 = vshll.u32 %v683, 16
      %v728 = vrot.slane %v726, 1
      %v729 = vsel %vm717, %v724, %v728
      %v731 = vshrl.u32 %v666, 16
      %v733 = vshll.u32 %v666, 16
      %v735 = vrot.slane %v733, 1
      %v736 = vor.u32 %v731, %v735
      %v738 = vshll.u32 %v684, 16
      %v740 = vrot.slane %v738, 1
      %v741 = vsel %vm717, %v736, %v740
      %v743 = vshrl.u32 %v667, 16
      %v745 = vshll.u32 %v667, 16
      %v747 = vrot.slane %v745, 1
      %v748 = vor.u32 %v743, %v747
      %v750 = vshll.u32 %v685, 16
      %v752 = vrot.slane %v750, 1
      %v753 = vsel %vm717, %v748, %v752
      %v755 = vshrl.u32 %v668, 16
      %v757 = vshll.u32 %v668, 16
      %v759 = vrot.slane %v757, 1
      %v760 = vor.u32 %v755, %v759
      %v762 = vshll.u32 %v686, 16
      %v764 = vrot.slane %v762, 1
      %v765 = vsel %vm717, %v760, %v764
      %v767 = vshrl.u32 %v669, 16
      %v769 = vshll.u32 %v669, 16
      %v771 = vrot.slane %v769, 1
      %v772 = vor.u32 %v767, %v771
      %v774 = vshll.u32 %v687, 16
      %v776 = vrot.slane %v774, 1
      %v777 = vsel %vm717, %v772, %v776
      %v779 = vshrl.u32 %v670, 16
      %v781 = vshll.u32 %v670, 16
      %v783 = vrot.slane %v781, 1
      %v784 = vor.u32 %v779, %v783
      %v786 = vshll.u32 %v688, 16
      %v788 = vrot.slane %v786, 1
      %v789 = vsel %vm717, %v784, %v788
      %v791 = vshrl.u32 %v671, 16
      %v793 = vshll.u32 %v671, 16
      %v795 = vrot.slane %v793, 1
      %v796 = vor.u32 %v791, %v795
      %v798 = vshll.u32 %v689, 16
      %v800 = vrot.slane %v798, 1
      %v801 = vsel %vm717, %v796, %v800
      %v803 = vshrl.u32 %v672, 16
      %v805 = vshll.u32 %v672, 16
      %v807 = vrot.slane %v805, 1
      %v808 = vor.u32 %v803, %v807
      %v810 = vshll.u32 %v690, 16
      %v812 = vrot.slane %v810, 1
      %v813 = vsel %vm717, %v808, %v812
      %v815 = vshrl.u32 %v673, 16
      %v817 = vshll.u32 %v673, 16
      %v819 = vrot.slane %v817, 1
      %v820 = vor.u32 %v815, %v819
      %v822 = vshll.u32 %v691, 16
      %v824 = vrot.slane %v822, 1
      %v825 = vsel %vm717, %v820, %v824
      %v827 = vshrl.u32 %v674, 16
      %v829 = vshll.u32 %v674, 16
      %v831 = vrot.slane %v829, 1
      %v832 = vor.u32 %v827, %v831
      %v834 = vshll.u32 %v692, 16
      %v836 = vrot.slane %v834, 1
      %v837 = vsel %vm717, %v832, %v836
      %v839 = vshrl.u32 %v675, 16
      %v841 = vshll.u32 %v675, 16
      %v843 = vrot.slane %v841, 1
      %v844 = vor.u32 %v839, %v843
      %v846 = vshll.u32 %v693, 16
      %v848 = vrot.slane %v846, 1
      %v849 = vsel %vm717, %v844, %v848
      %v851 = vshrl.u32 %v676, 16
      %v853 = vshll.u32 %v676, 16
      %v855 = vrot.slane %v853, 1
      %v856 = vor.u32 %v851, %v855
      %v858 = vshll.u32 %v694, 16
      %v860 = vrot.slane %v858, 1
      %v861 = vsel %vm717, %v856, %v860
      %v863 = vshrl.u32 %v677, 16
      %v865 = vshll.u32 %v677, 16
      %v867 = vrot.slane %v865, 1
      %v868 = vor.u32 %v863, %v867
      %v870 = vshll.u32 %v695, 16
      %v872 = vrot.slane %v870, 1
      %v873 = vsel %vm717, %v868, %v872
      %v875 = vshrl.u32 %v678, 16
      %v877 = vshll.u32 %v678, 16
      %v879 = vrot.slane %v877, 1
      %v880 = vor.u32 %v875, %v879
      %v882 = vshll.u32 %v696, 16
      %v884 = vrot.slane %v882, 1
      %v885 = vsel %vm717, %v880, %v884
      %v887 = vshrl.u32 %v679, 16
      %v889 = vshll.u32 %v679, 16
      %v891 = vrot.slane %v889, 1
      %v892 = vor.u32 %v887, %v891
      %v894 = vshll.u32 %v697, 16
      %v896 = vrot.slane %v894, 1
      %v897 = vsel %vm717, %v892, %v896
      %v899 = vshrl.u32 %v680, 16
      %v901 = vshll.u32 %v680, 16
      %v903 = vrot.slane %v901, 1
      %v904 = vor.u32 %v899, %v903
      %v906 = vshll.u32 %v698, 16
      %v908 = vrot.slane %v906, 1
      %v909 = vsel %vm717, %v904, %v908
      %s926 = scalar_lea.vmem %s1, 64
      %v927 = vld [vmem:[%s926] sm:$0xf]
      %v928 = vld [vmem:[%s926 + $0x4] sm:$0xf]
      %v929 = vld [vmem:[%s926 + $0x8] sm:$0xf]
      %v930 = vld [vmem:[%s926 + $0xc] sm:$0xf]
      %v931 = vld [vmem:[%s926 + $0x10] sm:$0xf]
      %v932 = vld [vmem:[%s926 + $0x14] sm:$0xf]
      %v933 = vld [vmem:[%s926 + $0x18] sm:$0xf]
      %v934 = vld [vmem:[%s926 + $0x1c] sm:$0xf]
      %v935 = vld [vmem:[%s926 + $0x20] sm:$0xf]
      %v936 = vld [vmem:[%s926 + $0x24] sm:$0xf]
      %v937 = vld [vmem:[%s926 + $0x28] sm:$0xf]
      %v938 = vld [vmem:[%s926 + $0x2c] sm:$0xf]
      %v939 = vld [vmem:[%s926 + $0x30] sm:$0xf]
      %v940 = vld [vmem:[%s926 + $0x34] sm:$0xf]
      %v941 = vld [vmem:[%s926 + $0x38] sm:$0xf]
      %v942 = vld [vmem:[%s926 + $0x3c] sm:$0xf]
      %v959 = vunpack.c.l.b16 %v927
      %v960 = vunpack.c.l.b16 %v928
      %v961 = vunpack.c.l.b16 %v929
      %v962 = vunpack.c.l.b16 %v930
      %v963 = vunpack.c.l.b16 %v931
      %v964 = vunpack.c.l.b16 %v932
      %v965 = vunpack.c.l.b16 %v933
      %v966 = vunpack.c.l.b16 %v934
      %v967 = vunpack.c.l.b16 %v935
      %v968 = vunpack.c.l.b16 %v936
      %v969 = vunpack.c.l.b16 %v937
      %v970 = vunpack.c.l.b16 %v938
      %v971 = vunpack.c.l.b16 %v939
      %v972 = vunpack.c.l.b16 %v940
      %v973 = vunpack.c.l.b16 %v941
      %v974 = vunpack.c.l.b16 %v942
      %v975 = vpack.c.b16 %v960, %v959
      %v976 = vpack.c.b16 %v962, %v961
      %v977 = vpack.c.b16 %v964, %v963
      %v978 = vpack.c.b16 %v966, %v965
      %v979 = vpack.c.b16 %v968, %v967
      %v980 = vpack.c.b16 %v970, %v969
      %v981 = vpack.c.b16 %v972, %v971
      %v982 = vpack.c.b16 %v974, %v973
      %991 = vmatpush.bf16.msra.mxu0 %v982
      %992 = vmatpush.bf16.msra.mxu0 %v981
      %993 = vmatpush.bf16.msra.mxu0 %v980
      %994 = vmatpush.bf16.msra.mxu0 %v979
      %995 = vmatpush.bf16.msra.mxu0 %v978
      %996 = vmatpush.bf16.msra.mxu0 %v977
      %997 = vmatpush.bf16.msra.mxu0 %v976
      %998 = vmatpush.bf16.msra.mxu0 %v975
      %999 = vmatmul.bf16.gmra.mxu0 %v729
      %v1000 = vpop.f32.mrf.mxu0
      %v1001 = vadd.f32 0.0, %v1000
      %v1002 = vpop.f32.mrf.mxu0
      %v1003 = vadd.f32 0.0, %v1002
      %1004 = vmatmul.bf16.gmra.mxu0 %v741
      %v1005 = vpop.f32.mrf.mxu0
      %v1006 = vadd.f32 0.0, %v1005
      %v1007 = vpop.f32.mrf.mxu0
      %v1008 = vadd.f32 0.0, %v1007
      %1009 = vmatmul.bf16.gmra.mxu0 %v753
      %v1010 = vpop.f32.mrf.mxu0
      %v1011 = vadd.f32 0.0, %v1010
      %v1012 = vpop.f32.mrf.mxu0
      %v1013 = vadd.f32 0.0, %v1012
      %1014 = vmatmul.bf16.gmra.mxu0 %v765
      %v1015 = vpop.f32.mrf.mxu0
      %v1016 = vadd.f32 0.0, %v1015
      %v1017 = vpop.f32.mrf.mxu0
      %v1018 = vadd.f32 0.0, %v1017
      %1019 = vmatmul.bf16.gmra.mxu0 %v777
      %v1020 = vpop.f32.mrf.mxu0
      %v1021 = vadd.f32 0.0, %v1020
      %v1022 = vpop.f32.mrf.mxu0
      %v1023 = vadd.f32 0.0, %v1022
      %1024 = vmatmul.bf16.gmra.mxu0 %v789
      %v1025 = vpop.f32.mrf.mxu0
      %v1026 = vadd.f32 0.0, %v1025
      %v1027 = vpop.f32.mrf.mxu0
      %v1028 = vadd.f32 0.0, %v1027
      %1029 = vmatmul.bf16.gmra.mxu0 %v801
      %v1030 = vpop.f32.mrf.mxu0
      %v1031 = vadd.f32 0.0, %v1030
      %v1032 = vpop.f32.mrf.mxu0
      %v1033 = vadd.f32 0.0, %v1032
      %1034 = vmatmul.bf16.gmra.mxu0 %v813
      %v1035 = vpop.f32.mrf.mxu0
      %v1036 = vadd.f32 0.0, %v1035
      %v1037 = vpop.f32.mrf.mxu0
      %v1038 = vadd.f32 0.0, %v1037
      %1039 = vmatmul.bf16.gmra.mxu0 %v825
      %v1040 = vpop.f32.mrf.mxu0
      %v1041 = vadd.f32 0.0, %v1040
      %v1042 = vpop.f32.mrf.mxu0
      %v1043 = vadd.f32 0.0, %v1042
      %1044 = vmatmul.bf16.gmra.mxu0 %v837
      %v1045 = vpop.f32.mrf.mxu0
      %v1046 = vadd.f32 0.0, %v1045
      %v1047 = vpop.f32.mrf.mxu0
      %v1048 = vadd.f32 0.0, %v1047
      %1049 = vmatmul.bf16.gmra.mxu0 %v849
      %v1050 = vpop.f32.mrf.mxu0
      %v1051 = vadd.f32 0.0, %v1050
      %v1052 = vpop.f32.mrf.mxu0
      %v1053 = vadd.f32 0.0, %v1052
      %1054 = vmatmul.bf16.gmra.mxu0 %v861
      %v1055 = vpop.f32.mrf.mxu0
      %v1056 = vadd.f32 0.0, %v1055
      %v1057 = vpop.f32.mrf.mxu0
      %v1058 = vadd.f32 0.0, %v1057
      %1059 = vmatmul.bf16.gmra.mxu0 %v873
      %v1060 = vpop.f32.mrf.mxu0
      %v1061 = vadd.f32 0.0, %v1060
      %v1062 = vpop.f32.mrf.mxu0
      %v1063 = vadd.f32 0.0, %v1062
      %1064 = vmatmul.bf16.gmra.mxu0 %v885
      %v1065 = vpop.f32.mrf.mxu0
      %v1066 = vadd.f32 0.0, %v1065
      %v1067 = vpop.f32.mrf.mxu0
      %v1068 = vadd.f32 0.0, %v1067
      %1069 = vmatmul.bf16.gmra.mxu0 %v897
      %v1070 = vpop.f32.mrf.mxu0
      %v1071 = vadd.f32 0.0, %v1070
      %v1072 = vpop.f32.mrf.mxu0
      %v1073 = vadd.f32 0.0, %v1072
      %1074 = vmatmul.bf16.gmra.mxu0 %v909
      %v1075 = vpop.f32.mrf.mxu0
      %v1076 = vadd.f32 0.0, %v1075
      %v1077 = vpop.f32.mrf.mxu0
      %v1078 = vadd.f32 0.0, %v1077
      %1079 = vdwg.mxu0
      %v1096 = vunpack.c.l.b16 %v701
      %v1097 = vunpack.c.l.b16 %v702
      %v1098 = vunpack.c.l.b16 %v703
      %v1099 = vunpack.c.l.b16 %v704
      %v1100 = vunpack.c.l.b16 %v705
      %v1101 = vunpack.c.l.b16 %v706
      %v1102 = vunpack.c.l.b16 %v707
      %v1103 = vunpack.c.l.b16 %v708
      %v1104 = vunpack.c.l.b16 %v709
      %v1105 = vunpack.c.l.b16 %v710
      %v1106 = vunpack.c.l.b16 %v711
      %v1107 = vunpack.c.l.b16 %v712
      %v1108 = vunpack.c.l.b16 %v713
      %v1109 = vunpack.c.l.b16 %v714
      %v1110 = vunpack.c.l.b16 %v715
      %v1111 = vunpack.c.l.b16 %v716
      %v1112 = vpack.c.b16 %v1097, %v1096
      %v1113 = vpack.c.b16 %v1099, %v1098
      %v1114 = vpack.c.b16 %v1101, %v1100
      %v1115 = vpack.c.b16 %v1103, %v1102
      %v1116 = vpack.c.b16 %v1105, %v1104
      %v1117 = vpack.c.b16 %v1107, %v1106
      %v1118 = vpack.c.b16 %v1109, %v1108
      %v1119 = vpack.c.b16 %v1111, %v1110
      %1128 = vmatpush.bf16.msra.mxu0 %v1119
      %1129 = vmatpush.bf16.msra.mxu0 %v1118
      %1130 = vmatpush.bf16.msra.mxu0 %v1117
      %1131 = vmatpush.bf16.msra.mxu0 %v1116
      %1132 = vmatpush.bf16.msra.mxu0 %v1115
      %1133 = vmatpush.bf16.msra.mxu0 %v1114
      %1134 = vmatpush.bf16.msra.mxu0 %v1113
      %1135 = vmatpush.bf16.msra.mxu0 %v1112
      %1136 = vmatmul.bf16.gmra.mxu0 %v665
      %v1137 = vpop.f32.mrf.mxu0
      %v1138 = vadd.f32 %v1001, %v1137
      %v1139 = vpop.f32.mrf.mxu0
      %v1140 = vadd.f32 %v1003, %v1139
      %1141 = vmatmul.bf16.gmra.mxu0 %v666
      %v1142 = vpop.f32.mrf.mxu0
      %v1143 = vadd.f32 %v1006, %v1142
      %v1144 = vpop.f32.mrf.mxu0
      %v1145 = vadd.f32 %v1008, %v1144
      %1146 = vmatmul.bf16.gmra.mxu0 %v667
      %v1147 = vpop.f32.mrf.mxu0
      %v1148 = vadd.f32 %v1011, %v1147
      %v1149 = vpop.f32.mrf.mxu0
      %v1150 = vadd.f32 %v1013, %v1149
      %1151 = vmatmul.bf16.gmra.mxu0 %v668
      %v1152 = vpop.f32.mrf.mxu0
      %v1153 = vadd.f32 %v1016, %v1152
      %v1154 = vpop.f32.mrf.mxu0
      %v1155 = vadd.f32 %v1018, %v1154
      %1156 = vmatmul.bf16.gmra.mxu0 %v669
      %v1157 = vpop.f32.mrf.mxu0
      %v1158 = vadd.f32 %v1021, %v1157
      %v1159 = vpop.f32.mrf.mxu0
      %v1160 = vadd.f32 %v1023, %v1159
      %1161 = vmatmul.bf16.gmra.mxu0 %v670
      %v1162 = vpop.f32.mrf.mxu0
      %v1163 = vadd.f32 %v1026, %v1162
      %v1164 = vpop.f32.mrf.mxu0
      %v1165 = vadd.f32 %v1028, %v1164
      %1166 = vmatmul.bf16.gmra.mxu0 %v671
      %v1167 = vpop.f32.mrf.mxu0
      %v1168 = vadd.f32 %v1031, %v1167
      %v1169 = vpop.f32.mrf.mxu0
      %v1170 = vadd.f32 %v1033, %v1169
      %1171 = vmatmul.bf16.gmra.mxu0 %v672
      %v1172 = vpop.f32.mrf.mxu0
      %v1173 = vadd.f32 %v1036, %v1172
      %v1174 = vpop.f32.mrf.mxu0
      %v1175 = vadd.f32 %v1038, %v1174
      %1176 = vmatmul.bf16.gmra.mxu0 %v673
      %v1177 = vpop.f32.mrf.mxu0
      %v1178 = vadd.f32 %v1041, %v1177
      %v1179 = vpop.f32.mrf.mxu0
      %v1180 = vadd.f32 %v1043, %v1179
      %1181 = vmatmul.bf16.gmra.mxu0 %v674
      %v1182 = vpop.f32.mrf.mxu0
      %v1183 = vadd.f32 %v1046, %v1182
      %v1184 = vpop.f32.mrf.mxu0
      %v1185 = vadd.f32 %v1048, %v1184
      %1186 = vmatmul.bf16.gmra.mxu0 %v675
      %v1187 = vpop.f32.mrf.mxu0
      %v1188 = vadd.f32 %v1051, %v1187
      %v1189 = vpop.f32.mrf.mxu0
      %v1190 = vadd.f32 %v1053, %v1189
      %1191 = vmatmul.bf16.gmra.mxu0 %v676
      %v1192 = vpop.f32.mrf.mxu0
      %v1193 = vadd.f32 %v1056, %v1192
      %v1194 = vpop.f32.mrf.mxu0
      %v1195 = vadd.f32 %v1058, %v1194
      %1196 = vmatmul.bf16.gmra.mxu0 %v677
      %v1197 = vpop.f32.mrf.mxu0
      %v1198 = vadd.f32 %v1061, %v1197
      %v1199 = vpop.f32.mrf.mxu0
      %v1200 = vadd.f32 %v1063, %v1199
      %1201 = vmatmul.bf16.gmra.mxu0 %v678
      %v1202 = vpop.f32.mrf.mxu0
      %v1203 = vadd.f32 %v1066, %v1202
      %v1204 = vpop.f32.mrf.mxu0
      %v1205 = vadd.f32 %v1068, %v1204
      %1206 = vmatmul.bf16.gmra.mxu0 %v679
      %v1207 = vpop.f32.mrf.mxu0
      %v1208 = vadd.f32 %v1071, %v1207
      %v1209 = vpop.f32.mrf.mxu0
      %v1210 = vadd.f32 %v1073, %v1209
      %1211 = vmatmul.bf16.gmra.mxu0 %v680
      %v1212 = vpop.f32.mrf.mxu0
      %v1213 = vadd.f32 %v1076, %v1212
      %v1214 = vpop.f32.mrf.mxu0
      %v1215 = vadd.f32 %v1078, %v1214
      %1216 = vdwg.mxu0
      %vm1249 = vcmask 1046528
      %v1250 = vrot.slane %v665, 1
      %v1251 = vrot.slane %v683, 1
      %v1252 = vsel %vm1249, %v1250, %v1251
      %v1253 = vrot.slane %v666, 1
      %v1254 = vrot.slane %v684, 1
      %v1255 = vsel %vm1249, %v1253, %v1254
      %v1256 = vrot.slane %v667, 1
      %v1257 = vrot.slane %v685, 1
      %v1258 = vsel %vm1249, %v1256, %v1257
      %v1259 = vrot.slane %v668, 1
      %v1260 = vrot.slane %v686, 1
      %v1261 = vsel %vm1249, %v1259, %v1260
      %v1262 = vrot.slane %v669, 1
      %v1263 = vrot.slane %v687, 1
      %v1264 = vsel %vm1249, %v1262, %v1263
      %v1265 = vrot.slane %v670, 1
      %v1266 = vrot.slane %v688, 1
      %v1267 = vsel %vm1249, %v1265, %v1266
      %v1268 = vrot.slane %v671, 1
      %v1269 = vrot.slane %v689, 1
      %v1270 = vsel %vm1249, %v1268, %v1269
      %v1271 = vrot.slane %v672, 1
      %v1272 = vrot.slane %v690, 1
      %v1273 = vsel %vm1249, %v1271, %v1272
      %v1274 = vrot.slane %v673, 1
      %v1275 = vrot.slane %v691, 1
      %v1276 = vsel %vm1249, %v1274, %v1275
      %v1277 = vrot.slane %v674, 1
      %v1278 = vrot.slane %v692, 1
      %v1279 = vsel %vm1249, %v1277, %v1278
      %v1280 = vrot.slane %v675, 1
      %v1281 = vrot.slane %v693, 1
      %v1282 = vsel %vm1249, %v1280, %v1281
      %v1283 = vrot.slane %v676, 1
      %v1284 = vrot.slane %v694, 1
      %v1285 = vsel %vm1249, %v1283, %v1284
      %v1286 = vrot.slane %v677, 1
      %v1287 = vrot.slane %v695, 1
      %v1288 = vsel %vm1249, %v1286, %v1287
      %v1289 = vrot.slane %v678, 1
      %v1290 = vrot.slane %v696, 1
      %v1291 = vsel %vm1249, %v1289, %v1290
      %v1292 = vrot.slane %v679, 1
      %v1293 = vrot.slane %v697, 1
      %v1294 = vsel %vm1249, %v1292, %v1293
      %v1295 = vrot.slane %v680, 1
      %v1296 = vrot.slane %v698, 1
      %v1297 = vsel %vm1249, %v1295, %v1296
      %s1314 = scalar_lea.vmem %s1, 128
      %v1315 = vld [vmem:[%s1314] sm:$0xf]
      %v1316 = vld [vmem:[%s1314 + $0x4] sm:$0xf]
      %v1317 = vld [vmem:[%s1314 + $0x8] sm:$0xf]
      %v1318 = vld [vmem:[%s1314 + $0xc] sm:$0xf]
      %v1319 = vld [vmem:[%s1314 + $0x10] sm:$0xf]
      %v1320 = vld [vmem:[%s1314 + $0x14] sm:$0xf]
      %v1321 = vld [vmem:[%s1314 + $0x18] sm:$0xf]
      %v1322 = vld [vmem:[%s1314 + $0x1c] sm:$0xf]
      %v1323 = vld [vmem:[%s1314 + $0x20] sm:$0xf]
      %v1324 = vld [vmem:[%s1314 + $0x24] sm:$0xf]
      %v1325 = vld [vmem:[%s1314 + $0x28] sm:$0xf]
      %v1326 = vld [vmem:[%s1314 + $0x2c] sm:$0xf]
      %v1327 = vld [vmem:[%s1314 + $0x30] sm:$0xf]
      %v1328 = vld [vmem:[%s1314 + $0x34] sm:$0xf]
      %v1329 = vld [vmem:[%s1314 + $0x38] sm:$0xf]
      %v1330 = vld [vmem:[%s1314 + $0x3c] sm:$0xf]
      %v1347 = vunpack.c.l.b16 %v1315
      %v1348 = vunpack.c.l.b16 %v1316
      %v1349 = vunpack.c.l.b16 %v1317
      %v1350 = vunpack.c.l.b16 %v1318
      %v1351 = vunpack.c.l.b16 %v1319
      %v1352 = vunpack.c.l.b16 %v1320
      %v1353 = vunpack.c.l.b16 %v1321
      %v1354 = vunpack.c.l.b16 %v1322
      %v1355 = vunpack.c.l.b16 %v1323
      %v1356 = vunpack.c.l.b16 %v1324
      %v1357 = vunpack.c.l.b16 %v1325
      %v1358 = vunpack.c.l.b16 %v1326
      %v1359 = vunpack.c.l.b16 %v1327
      %v1360 = vunpack.c.l.b16 %v1328
      %v1361 = vunpack.c.l.b16 %v1329
      %v1362 = vunpack.c.l.b16 %v1330
      %v1363 = vpack.c.b16 %v1348, %v1347
      %v1364 = vpack.c.b16 %v1350, %v1349
      %v1365 = vpack.c.b16 %v1352, %v1351
      %v1366 = vpack.c.b16 %v1354, %v1353
      %v1367 = vpack.c.b16 %v1356, %v1355
      %v1368 = vpack.c.b16 %v1358, %v1357
      %v1369 = vpack.c.b16 %v1360, %v1359
      %v1370 = vpack.c.b16 %v1362, %v1361
      %1379 = vmatpush.bf16.msra.mxu0 %v1370
      %1380 = vmatpush.bf16.msra.mxu0 %v1369
      %1381 = vmatpush.bf16.msra.mxu0 %v1368
      %1382 = vmatpush.bf16.msra.mxu0 %v1367
      %1383 = vmatpush.bf16.msra.mxu0 %v1366
      %1384 = vmatpush.bf16.msra.mxu0 %v1365
      %1385 = vmatpush.bf16.msra.mxu0 %v1364
      %1386 = vmatpush.bf16.msra.mxu0 %v1363
      %1387 = vmatmul.bf16.gmra.mxu0 %v1252
      %v1388 = vpop.f32.mrf.mxu0
      %v1389 = vadd.f32 0.0, %v1388
      %v1390 = vpop.f32.mrf.mxu0
      %v1391 = vadd.f32 0.0, %v1390
      %1392 = vmatmul.bf16.gmra.mxu0 %v1255
      %v1393 = vpop.f32.mrf.mxu0
      %v1394 = vadd.f32 0.0, %v1393
      %v1395 = vpop.f32.mrf.mxu0
      %v1396 = vadd.f32 0.0, %v1395
      %1397 = vmatmul.bf16.gmra.mxu0 %v1258
      %v1398 = vpop.f32.mrf.mxu0
      %v1399 = vadd.f32 0.0, %v1398
      %v1400 = vpop.f32.mrf.mxu0
      %v1401 = vadd.f32 0.0, %v1400
      %1402 = vmatmul.bf16.gmra.mxu0 %v1261
      %v1403 = vpop.f32.mrf.mxu0
      %v1404 = vadd.f32 0.0, %v1403
      %v1405 = vpop.f32.mrf.mxu0
      %v1406 = vadd.f32 0.0, %v1405
      %1407 = vmatmul.bf16.gmra.mxu0 %v1264
      %v1408 = vpop.f32.mrf.mxu0
      %v1409 = vadd.f32 0.0, %v1408
      %v1410 = vpop.f32.mrf.mxu0
      %v1411 = vadd.f32 0.0, %v1410
      %1412 = vmatmul.bf16.gmra.mxu0 %v1267
      %v1413 = vpop.f32.mrf.mxu0
      %v1414 = vadd.f32 0.0, %v1413
      %v1415 = vpop.f32.mrf.mxu0
      %v1416 = vadd.f32 0.0, %v1415
      %1417 = vmatmul.bf16.gmra.mxu0 %v1270
      %v1418 = vpop.f32.mrf.mxu0
      %v1419 = vadd.f32 0.0, %v1418
      %v1420 = vpop.f32.mrf.mxu0
      %v1421 = vadd.f32 0.0, %v1420
      %1422 = vmatmul.bf16.gmra.mxu0 %v1273
      %v1423 = vpop.f32.mrf.mxu0
      %v1424 = vadd.f32 0.0, %v1423
      %v1425 = vpop.f32.mrf.mxu0
      %v1426 = vadd.f32 0.0, %v1425
      %1427 = vmatmul.bf16.gmra.mxu0 %v1276
      %v1428 = vpop.f32.mrf.mxu0
      %v1429 = vadd.f32 0.0, %v1428
      %v1430 = vpop.f32.mrf.mxu0
      %v1431 = vadd.f32 0.0, %v1430
      %1432 = vmatmul.bf16.gmra.mxu0 %v1279
      %v1433 = vpop.f32.mrf.mxu0
      %v1434 = vadd.f32 0.0, %v1433
      %v1435 = vpop.f32.mrf.mxu0
      %v1436 = vadd.f32 0.0, %v1435
      %1437 = vmatmul.bf16.gmra.mxu0 %v1282
      %v1438 = vpop.f32.mrf.mxu0
      %v1439 = vadd.f32 0.0, %v1438
      %v1440 = vpop.f32.mrf.mxu0
      %v1441 = vadd.f32 0.0, %v1440
      %1442 = vmatmul.bf16.gmra.mxu0 %v1285
      %v1443 = vpop.f32.mrf.mxu0
      %v1444 = vadd.f32 0.0, %v1443
      %v1445 = vpop.f32.mrf.mxu0
      %v1446 = vadd.f32 0.0, %v1445
      %1447 = vmatmul.bf16.gmra.mxu0 %v1288
      %v1448 = vpop.f32.mrf.mxu0
      %v1449 = vadd.f32 0.0, %v1448
      %v1450 = vpop.f32.mrf.mxu0
      %v1451 = vadd.f32 0.0, %v1450
      %1452 = vmatmul.bf16.gmra.mxu0 %v1291
      %v1453 = vpop.f32.mrf.mxu0
      %v1454 = vadd.f32 0.0, %v1453
      %v1455 = vpop.f32.mrf.mxu0
      %v1456 = vadd.f32 0.0, %v1455
      %1457 = vmatmul.bf16.gmra.mxu0 %v1294
      %v1458 = vpop.f32.mrf.mxu0
      %v1459 = vadd.f32 0.0, %v1458
      %v1460 = vpop.f32.mrf.mxu0
      %v1461 = vadd.f32 0.0, %v1460
      %1462 = vmatmul.bf16.gmra.mxu0 %v1297
      %v1463 = vpop.f32.mrf.mxu0
      %v1464 = vadd.f32 0.0, %v1463
      %v1465 = vpop.f32.mrf.mxu0
      %v1466 = vadd.f32 0.0, %v1465
      %1467 = vdwg.mxu0
      %v1468 = vadd.f32 %v1138, %v1389
      %v1469 = vadd.f32 %v1140, %v1391
      %v1470 = vadd.f32 %v1143, %v1394
      %v1471 = vadd.f32 %v1145, %v1396
      %v1472 = vadd.f32 %v1148, %v1399
      %v1473 = vadd.f32 %v1150, %v1401
      %v1474 = vadd.f32 %v1153, %v1404
      %v1475 = vadd.f32 %v1155, %v1406
      %v1476 = vadd.f32 %v1158, %v1409
      %v1477 = vadd.f32 %v1160, %v1411
      %v1478 = vadd.f32 %v1163, %v1414
      %v1479 = vadd.f32 %v1165, %v1416
      %v1480 = vadd.f32 %v1168, %v1419
      %v1481 = vadd.f32 %v1170, %v1421
      %v1482 = vadd.f32 %v1173, %v1424
      %v1483 = vadd.f32 %v1175, %v1426
      %v1484 = vadd.f32 %v1178, %v1429
      %v1485 = vadd.f32 %v1180, %v1431
      %v1486 = vadd.f32 %v1183, %v1434
      %v1487 = vadd.f32 %v1185, %v1436
      %v1488 = vadd.f32 %v1188, %v1439
      %v1489 = vadd.f32 %v1190, %v1441
      %v1490 = vadd.f32 %v1193, %v1444
      %v1491 = vadd.f32 %v1195, %v1446
      %v1492 = vadd.f32 %v1198, %v1449
      %v1493 = vadd.f32 %v1200, %v1451
      %v1494 = vadd.f32 %v1203, %v1454
      %v1495 = vadd.f32 %v1205, %v1456
      %v1496 = vadd.f32 %v1208, %v1459
      %v1497 = vadd.f32 %v1210, %v1461
      %v1498 = vadd.f32 %v1213, %v1464
      %v1499 = vadd.f32 %v1215, %v1466
      %s1500 = scalar_lea.vmem %s1, 192
      %v1501 = vld [vmem:[%s1500] sm:$0xf]
      %v1502 = vld [vmem:[%s1500 + $0x4] sm:$0xf]
      %v1503 = vld [vmem:[%s1500 + $0x8] sm:$0xf]
      %v1504 = vld [vmem:[%s1500 + $0xc] sm:$0xf]
      %v1505 = vld [vmem:[%s1500 + $0x10] sm:$0xf]
      %v1506 = vld [vmem:[%s1500 + $0x14] sm:$0xf]
      %v1507 = vld [vmem:[%s1500 + $0x18] sm:$0xf]
      %v1508 = vld [vmem:[%s1500 + $0x1c] sm:$0xf]
      %v1509 = vld [vmem:[%s1500 + $0x20] sm:$0xf]
      %v1510 = vld [vmem:[%s1500 + $0x24] sm:$0xf]
      %v1511 = vld [vmem:[%s1500 + $0x28] sm:$0xf]
      %v1512 = vld [vmem:[%s1500 + $0x2c] sm:$0xf]
      %v1513 = vld [vmem:[%s1500 + $0x30] sm:$0xf]
      %v1514 = vld [vmem:[%s1500 + $0x34] sm:$0xf]
      %v1515 = vld [vmem:[%s1500 + $0x38] sm:$0xf]
      %v1516 = vld [vmem:[%s1500 + $0x3c] sm:$0xf]
      %v1533 = vunpack.c.l.b16 %v1501
      %v1534 = vunpack.c.l.b16 %v1502
      %v1535 = vunpack.c.l.b16 %v1503
      %v1536 = vunpack.c.l.b16 %v1504
      %v1537 = vunpack.c.l.b16 %v1505
      %v1538 = vunpack.c.l.b16 %v1506
      %v1539 = vunpack.c.l.b16 %v1507
      %v1540 = vunpack.c.l.b16 %v1508
      %v1541 = vunpack.c.l.b16 %v1509
      %v1542 = vunpack.c.l.b16 %v1510
      %v1543 = vunpack.c.l.b16 %v1511
      %v1544 = vunpack.c.l.b16 %v1512
      %v1545 = vunpack.c.l.b16 %v1513
      %v1546 = vunpack.c.l.b16 %v1514
      %v1547 = vunpack.c.l.b16 %v1515
      %v1548 = vunpack.c.l.b16 %v1516
      %v1549 = vpack.c.b16 %v1534, %v1533
      %v1550 = vpack.c.b16 %v1536, %v1535
      %v1551 = vpack.c.b16 %v1538, %v1537
      %v1552 = vpack.c.b16 %v1540, %v1539
      %v1553 = vpack.c.b16 %v1542, %v1541
      %v1554 = vpack.c.b16 %v1544, %v1543
      %v1555 = vpack.c.b16 %v1546, %v1545
      %v1556 = vpack.c.b16 %v1548, %v1547
      %1565 = vmatpush.bf16.msra.mxu0 %v1556
      %1566 = vmatpush.bf16.msra.mxu0 %v1555
      %1567 = vmatpush.bf16.msra.mxu0 %v1554
      %1568 = vmatpush.bf16.msra.mxu0 %v1553
      %1569 = vmatpush.bf16.msra.mxu0 %v1552
      %1570 = vmatpush.bf16.msra.mxu0 %v1551
      %1571 = vmatpush.bf16.msra.mxu0 %v1550
      %1572 = vmatpush.bf16.msra.mxu0 %v1549
      %1573 = vmatmul.bf16.gmra.mxu0 %v666
      %v1574 = vpop.f32.mrf.mxu0
      %v1575 = vadd.f32 0.0, %v1574
      %v1576 = vpop.f32.mrf.mxu0
      %v1577 = vadd.f32 0.0, %v1576
      %1578 = vmatmul.bf16.gmra.mxu0 %v667
      %v1579 = vpop.f32.mrf.mxu0
      %v1580 = vadd.f32 0.0, %v1579
      %v1581 = vpop.f32.mrf.mxu0
      %v1582 = vadd.f32 0.0, %v1581
      %1583 = vmatmul.bf16.gmra.mxu0 %v668
      %v1584 = vpop.f32.mrf.mxu0
      %v1585 = vadd.f32 0.0, %v1584
      %v1586 = vpop.f32.mrf.mxu0
      %v1587 = vadd.f32 0.0, %v1586
      %1588 = vmatmul.bf16.gmra.mxu0 %v669
      %v1589 = vpop.f32.mrf.mxu0
      %v1590 = vadd.f32 0.0, %v1589
      %v1591 = vpop.f32.mrf.mxu0
      %v1592 = vadd.f32 0.0, %v1591
      %1593 = vmatmul.bf16.gmra.mxu0 %v670
      %v1594 = vpop.f32.mrf.mxu0
      %v1595 = vadd.f32 0.0, %v1594
      %v1596 = vpop.f32.mrf.mxu0
      %v1597 = vadd.f32 0.0, %v1596
      %1598 = vmatmul.bf16.gmra.mxu0 %v671
      %v1599 = vpop.f32.mrf.mxu0
      %v1600 = vadd.f32 0.0, %v1599
      %v1601 = vpop.f32.mrf.mxu0
      %v1602 = vadd.f32 0.0, %v1601
      %1603 = vmatmul.bf16.gmra.mxu0 %v672
      %v1604 = vpop.f32.mrf.mxu0
      %v1605 = vadd.f32 0.0, %v1604
      %v1606 = vpop.f32.mrf.mxu0
      %v1607 = vadd.f32 0.0, %v1606
      %1608 = vmatmul.bf16.gmra.mxu0 %v673
      %v1609 = vpop.f32.mrf.mxu0
      %v1610 = vadd.f32 0.0, %v1609
      %v1611 = vpop.f32.mrf.mxu0
      %v1612 = vadd.f32 0.0, %v1611
      %1613 = vmatmul.bf16.gmra.mxu0 %v674
      %v1614 = vpop.f32.mrf.mxu0
      %v1615 = vadd.f32 0.0, %v1614
      %v1616 = vpop.f32.mrf.mxu0
      %v1617 = vadd.f32 0.0, %v1616
      %1618 = vmatmul.bf16.gmra.mxu0 %v675
      %v1619 = vpop.f32.mrf.mxu0
      %v1620 = vadd.f32 0.0, %v1619
      %v1621 = vpop.f32.mrf.mxu0
      %v1622 = vadd.f32 0.0, %v1621
      %1623 = vmatmul.bf16.gmra.mxu0 %v676
      %v1624 = vpop.f32.mrf.mxu0
      %v1625 = vadd.f32 0.0, %v1624
      %v1626 = vpop.f32.mrf.mxu0
      %v1627 = vadd.f32 0.0, %v1626
      %1628 = vmatmul.bf16.gmra.mxu0 %v677
      %v1629 = vpop.f32.mrf.mxu0
      %v1630 = vadd.f32 0.0, %v1629
      %v1631 = vpop.f32.mrf.mxu0
      %v1632 = vadd.f32 0.0, %v1631
      %1633 = vmatmul.bf16.gmra.mxu0 %v678
      %v1634 = vpop.f32.mrf.mxu0
      %v1635 = vadd.f32 0.0, %v1634
      %v1636 = vpop.f32.mrf.mxu0
      %v1637 = vadd.f32 0.0, %v1636
      %1638 = vmatmul.bf16.gmra.mxu0 %v679
      %v1639 = vpop.f32.mrf.mxu0
      %v1640 = vadd.f32 0.0, %v1639
      %v1641 = vpop.f32.mrf.mxu0
      %v1642 = vadd.f32 0.0, %v1641
      %1643 = vmatmul.bf16.gmra.mxu0 %v680
      %v1644 = vpop.f32.mrf.mxu0
      %v1645 = vadd.f32 0.0, %v1644
      %v1646 = vpop.f32.mrf.mxu0
      %v1647 = vadd.f32 0.0, %v1646
      %1648 = vmatmul.bf16.gmra.mxu0 %v681
      %v1649 = vpop.f32.mrf.mxu0
      %v1650 = vadd.f32 0.0, %v1649
      %v1651 = vpop.f32.mrf.mxu0
      %v1652 = vadd.f32 0.0, %v1651
      %1653 = vdwg.mxu0
      %v1654 = vadd.f32 %v1468, %v1575
      %v1655 = vadd.f32 %v1469, %v1577
      %v1656 = vadd.f32 %v1470, %v1580
      %v1657 = vadd.f32 %v1471, %v1582
      %v1658 = vadd.f32 %v1472, %v1585
      %v1659 = vadd.f32 %v1473, %v1587
      %v1660 = vadd.f32 %v1474, %v1590
      %v1661 = vadd.f32 %v1475, %v1592
      %v1662 = vadd.f32 %v1476, %v1595
      %v1663 = vadd.f32 %v1477, %v1597
      %v1664 = vadd.f32 %v1478, %v1600
      %v1665 = vadd.f32 %v1479, %v1602
      %v1666 = vadd.f32 %v1480, %v1605
      %v1667 = vadd.f32 %v1481, %v1607
      %v1668 = vadd.f32 %v1482, %v1610
      %v1669 = vadd.f32 %v1483, %v1612
      %v1670 = vadd.f32 %v1484, %v1615
      %v1671 = vadd.f32 %v1485, %v1617
      %v1672 = vadd.f32 %v1486, %v1620
      %v1673 = vadd.f32 %v1487, %v1622
      %v1674 = vadd.f32 %v1488, %v1625
      %v1675 = vadd.f32 %v1489, %v1627
      %v1676 = vadd.f32 %v1490, %v1630
      %v1677 = vadd.f32 %v1491, %v1632
      %v1678 = vadd.f32 %v1492, %v1635
      %v1679 = vadd.f32 %v1493, %v1637
      %v1680 = vadd.f32 %v1494, %v1640
      %v1681 = vadd.f32 %v1495, %v1642
      %v1682 = vadd.f32 %v1496, %v1645
      %v1683 = vadd.f32 %v1497, %v1647
      %v1684 = vadd.f32 %v1498, %v1650
      %v1685 = vadd.f32 %v1499, %v1652
      %v1687 = vshrl.u32 %v681, 16
      %v1689 = vshll.u32 %v681, 16
      %v1691 = vrot.slane %v1689, 1
      %v1692 = vor.u32 %v1687, %v1691
      %v1694 = vshll.u32 %v699, 16
      %v1696 = vrot.slane %v1694, 1
      %v1697 = vsel %vm717, %v1692, %v1696
      %s1699 = scalar_lea.vmem %s1, 256
      %v1700 = vld [vmem:[%s1699] sm:$0xf]
      %v1701 = vld [vmem:[%s1699 + $0x4] sm:$0xf]
      %v1702 = vld [vmem:[%s1699 + $0x8] sm:$0xf]
      %v1703 = vld [vmem:[%s1699 + $0xc] sm:$0xf]
      %v1704 = vld [vmem:[%s1699 + $0x10] sm:$0xf]
      %v1705 = vld [vmem:[%s1699 + $0x14] sm:$0xf]
      %v1706 = vld [vmem:[%s1699 + $0x18] sm:$0xf]
      %v1707 = vld [vmem:[%s1699 + $0x1c] sm:$0xf]
      %v1708 = vld [vmem:[%s1699 + $0x20] sm:$0xf]
      %v1709 = vld [vmem:[%s1699 + $0x24] sm:$0xf]
      %v1710 = vld [vmem:[%s1699 + $0x28] sm:$0xf]
      %v1711 = vld [vmem:[%s1699 + $0x2c] sm:$0xf]
      %v1712 = vld [vmem:[%s1699 + $0x30] sm:$0xf]
      %v1713 = vld [vmem:[%s1699 + $0x34] sm:$0xf]
      %v1714 = vld [vmem:[%s1699 + $0x38] sm:$0xf]
      %v1715 = vld [vmem:[%s1699 + $0x3c] sm:$0xf]
      %v1732 = vunpack.c.l.b16 %v1700
      %v1733 = vunpack.c.l.b16 %v1701
      %v1734 = vunpack.c.l.b16 %v1702
      %v1735 = vunpack.c.l.b16 %v1703
      %v1736 = vunpack.c.l.b16 %v1704
      %v1737 = vunpack.c.l.b16 %v1705
      %v1738 = vunpack.c.l.b16 %v1706
      %v1739 = vunpack.c.l.b16 %v1707
      %v1740 = vunpack.c.l.b16 %v1708
      %v1741 = vunpack.c.l.b16 %v1709
      %v1742 = vunpack.c.l.b16 %v1710
      %v1743 = vunpack.c.l.b16 %v1711
      %v1744 = vunpack.c.l.b16 %v1712
      %v1745 = vunpack.c.l.b16 %v1713
      %v1746 = vunpack.c.l.b16 %v1714
      %v1747 = vunpack.c.l.b16 %v1715
      %v1748 = vpack.c.b16 %v1733, %v1732
      %v1749 = vpack.c.b16 %v1735, %v1734
      %v1750 = vpack.c.b16 %v1737, %v1736
      %v1751 = vpack.c.b16 %v1739, %v1738
      %v1752 = vpack.c.b16 %v1741, %v1740
      %v1753 = vpack.c.b16 %v1743, %v1742
      %v1754 = vpack.c.b16 %v1745, %v1744
      %v1755 = vpack.c.b16 %v1747, %v1746
      %1764 = vmatpush.bf16.msra.mxu0 %v1755
      %1765 = vmatpush.bf16.msra.mxu0 %v1754
      %1766 = vmatpush.bf16.msra.mxu0 %v1753
      %1767 = vmatpush.bf16.msra.mxu0 %v1752
      %1768 = vmatpush.bf16.msra.mxu0 %v1751
      %1769 = vmatpush.bf16.msra.mxu0 %v1750
      %1770 = vmatpush.bf16.msra.mxu0 %v1749
      %1771 = vmatpush.bf16.msra.mxu0 %v1748
      %1772 = vmatmul.bf16.gmra.mxu0 %v741
      %v1773 = vpop.f32.mrf.mxu0
      %v1774 = vadd.f32 0.0, %v1773
      %v1775 = vpop.f32.mrf.mxu0
      %v1776 = vadd.f32 0.0, %v1775
      %1777 = vmatmul.bf16.gmra.mxu0 %v753
      %v1778 = vpop.f32.mrf.mxu0
      %v1779 = vadd.f32 0.0, %v1778
      %v1780 = vpop.f32.mrf.mxu0
      %v1781 = vadd.f32 0.0, %v1780
      %1782 = vmatmul.bf16.gmra.mxu0 %v765
      %v1783 = vpop.f32.mrf.mxu0
      %v1784 = vadd.f32 0.0, %v1783
      %v1785 = vpop.f32.mrf.mxu0
      %v1786 = vadd.f32 0.0, %v1785
      %1787 = vmatmul.bf16.gmra.mxu0 %v777
      %v1788 = vpop.f32.mrf.mxu0
      %v1789 = vadd.f32 0.0, %v1788
      %v1790 = vpop.f32.mrf.mxu0
      %v1791 = vadd.f32 0.0, %v1790
      %1792 = vmatmul.bf16.gmra.mxu0 %v789
      %v1793 = vpop.f32.mrf.mxu0
      %v1794 = vadd.f32 0.0, %v1793
      %v1795 = vpop.f32.mrf.mxu0
      %v1796 = vadd.f32 0.0, %v1795
      %1797 = vmatmul.bf16.gmra.mxu0 %v801
      %v1798 = vpop.f32.mrf.mxu0
      %v1799 = vadd.f32 0.0, %v1798
      %v1800 = vpop.f32.mrf.mxu0
      %v1801 = vadd.f32 0.0, %v1800
      %1802 = vmatmul.bf16.gmra.mxu0 %v813
      %v1803 = vpop.f32.mrf.mxu0
      %v1804 = vadd.f32 0.0, %v1803
      %v1805 = vpop.f32.mrf.mxu0
      %v1806 = vadd.f32 0.0, %v1805
      %1807 = vmatmul.bf16.gmra.mxu0 %v825
      %v1808 = vpop.f32.mrf.mxu0
      %v1809 = vadd.f32 0.0, %v1808
      %v1810 = vpop.f32.mrf.mxu0
      %v1811 = vadd.f32 0.0, %v1810
      %1812 = vmatmul.bf16.gmra.mxu0 %v837
      %v1813 = vpop.f32.mrf.mxu0
      %v1814 = vadd.f32 0.0, %v1813
      %v1815 = vpop.f32.mrf.mxu0
      %v1816 = vadd.f32 0.0, %v1815
      %1817 = vmatmul.bf16.gmra.mxu0 %v849
      %v1818 = vpop.f32.mrf.mxu0
      %v1819 = vadd.f32 0.0, %v1818
      %v1820 = vpop.f32.mrf.mxu0
      %v1821 = vadd.f32 0.0, %v1820
      %1822 = vmatmul.bf16.gmra.mxu0 %v861
      %v1823 = vpop.f32.mrf.mxu0
      %v1824 = vadd.f32 0.0, %v1823
      %v1825 = vpop.f32.mrf.mxu0
      %v1826 = vadd.f32 0.0, %v1825
      %1827 = vmatmul.bf16.gmra.mxu0 %v873
      %v1828 = vpop.f32.mrf.mxu0
      %v1829 = vadd.f32 0.0, %v1828
      %v1830 = vpop.f32.mrf.mxu0
      %v1831 = vadd.f32 0.0, %v1830
      %1832 = vmatmul.bf16.gmra.mxu0 %v885
      %v1833 = vpop.f32.mrf.mxu0
      %v1834 = vadd.f32 0.0, %v1833
      %v1835 = vpop.f32.mrf.mxu0
      %v1836 = vadd.f32 0.0, %v1835
      %1837 = vmatmul.bf16.gmra.mxu0 %v897
      %v1838 = vpop.f32.mrf.mxu0
      %v1839 = vadd.f32 0.0, %v1838
      %v1840 = vpop.f32.mrf.mxu0
      %v1841 = vadd.f32 0.0, %v1840
      %1842 = vmatmul.bf16.gmra.mxu0 %v909
      %v1843 = vpop.f32.mrf.mxu0
      %v1844 = vadd.f32 0.0, %v1843
      %v1845 = vpop.f32.mrf.mxu0
      %v1846 = vadd.f32 0.0, %v1845
      %1847 = vmatmul.bf16.gmra.mxu0 %v1697
      %v1848 = vpop.f32.mrf.mxu0
      %v1849 = vadd.f32 0.0, %v1848
      %v1850 = vpop.f32.mrf.mxu0
      %v1851 = vadd.f32 0.0, %v1850
      %1852 = vdwg.mxu0
      %v1853 = vadd.f32 %v1654, %v1774
      %v1854 = vadd.f32 %v1655, %v1776
      %v1855 = vadd.f32 %v1656, %v1779
      %v1856 = vadd.f32 %v1657, %v1781
      %v1857 = vadd.f32 %v1658, %v1784
      %v1858 = vadd.f32 %v1659, %v1786
      %v1859 = vadd.f32 %v1660, %v1789
      %v1860 = vadd.f32 %v1661, %v1791
      %v1861 = vadd.f32 %v1662, %v1794
      %v1862 = vadd.f32 %v1663, %v1796
      %v1863 = vadd.f32 %v1664, %v1799
      %v1864 = vadd.f32 %v1665, %v1801
      %v1865 = vadd.f32 %v1666, %v1804
      %v1866 = vadd.f32 %v1667, %v1806
      %v1867 = vadd.f32 %v1668, %v1809
      %v1868 = vadd.f32 %v1669, %v1811
      %v1869 = vadd.f32 %v1670, %v1814
      %v1870 = vadd.f32 %v1671, %v1816
      %v1871 = vadd.f32 %v1672, %v1819
      %v1872 = vadd.f32 %v1673, %v1821
      %v1873 = vadd.f32 %v1674, %v1824
      %v1874 = vadd.f32 %v1675, %v1826
      %v1875 = vadd.f32 %v1676, %v1829
      %v1876 = vadd.f32 %v1677, %v1831
      %v1877 = vadd.f32 %v1678, %v1834
      %v1878 = vadd.f32 %v1679, %v1836
      %v1879 = vadd.f32 %v1680, %v1839
      %v1880 = vadd.f32 %v1681, %v1841
      %v1881 = vadd.f32 %v1682, %v1844
      %v1882 = vadd.f32 %v1683, %v1846
      %v1883 = vadd.f32 %v1684, %v1849
      %v1884 = vadd.f32 %v1685, %v1851
      %v1887 = vrot.slane %v681, 1
      %v1888 = vrot.slane %v699, 1
      %v1889 = vsel %vm1249, %v1887, %v1888
      %s1891 = scalar_lea.vmem %s1, 320
      %v1892 = vld [vmem:[%s1891] sm:$0xf]
      %v1893 = vld [vmem:[%s1891 + $0x4] sm:$0xf]
      %v1894 = vld [vmem:[%s1891 + $0x8] sm:$0xf]
      %v1895 = vld [vmem:[%s1891 + $0xc] sm:$0xf]
      %v1896 = vld [vmem:[%s1891 + $0x10] sm:$0xf]
      %v1897 = vld [vmem:[%s1891 + $0x14] sm:$0xf]
      %v1898 = vld [vmem:[%s1891 + $0x18] sm:$0xf]
      %v1899 = vld [vmem:[%s1891 + $0x1c] sm:$0xf]
      %v1900 = vld [vmem:[%s1891 + $0x20] sm:$0xf]
      %v1901 = vld [vmem:[%s1891 + $0x24] sm:$0xf]
      %v1902 = vld [vmem:[%s1891 + $0x28] sm:$0xf]
      %v1903 = vld [vmem:[%s1891 + $0x2c] sm:$0xf]
      %v1904 = vld [vmem:[%s1891 + $0x30] sm:$0xf]
      %v1905 = vld [vmem:[%s1891 + $0x34] sm:$0xf]
      %v1906 = vld [vmem:[%s1891 + $0x38] sm:$0xf]
      %v1907 = vld [vmem:[%s1891 + $0x3c] sm:$0xf]
      %v1924 = vunpack.c.l.b16 %v1892
      %v1925 = vunpack.c.l.b16 %v1893
      %v1926 = vunpack.c.l.b16 %v1894
      %v1927 = vunpack.c.l.b16 %v1895
      %v1928 = vunpack.c.l.b16 %v1896
      %v1929 = vunpack.c.l.b16 %v1897
      %v1930 = vunpack.c.l.b16 %v1898
      %v1931 = vunpack.c.l.b16 %v1899
      %v1932 = vunpack.c.l.b16 %v1900
      %v1933 = vunpack.c.l.b16 %v1901
      %v1934 = vunpack.c.l.b16 %v1902
      %v1935 = vunpack.c.l.b16 %v1903
      %v1936 = vunpack.c.l.b16 %v1904
      %v1937 = vunpack.c.l.b16 %v1905
      %v1938 = vunpack.c.l.b16 %v1906
      %v1939 = vunpack.c.l.b16 %v1907
      %v1940 = vpack.c.b16 %v1925, %v1924
      %v1941 = vpack.c.b16 %v1927, %v1926
      %v1942 = vpack.c.b16 %v1929, %v1928
      %v1943 = vpack.c.b16 %v1931, %v1930
      %v1944 = vpack.c.b16 %v1933, %v1932
      %v1945 = vpack.c.b16 %v1935, %v1934
      %v1946 = vpack.c.b16 %v1937, %v1936
      %v1947 = vpack.c.b16 %v1939, %v1938
      %1956 = vmatpush.bf16.msra.mxu0 %v1947
      %1957 = vmatpush.bf16.msra.mxu0 %v1946
      %1958 = vmatpush.bf16.msra.mxu0 %v1945
      %1959 = vmatpush.bf16.msra.mxu0 %v1944
      %1960 = vmatpush.bf16.msra.mxu0 %v1943
      %1961 = vmatpush.bf16.msra.mxu0 %v1942
      %1962 = vmatpush.bf16.msra.mxu0 %v1941
      %1963 = vmatpush.bf16.msra.mxu0 %v1940
      %1964 = vmatmul.bf16.gmra.mxu0 %v1255
      %v1965 = vpop.f32.mrf.mxu0
      %v1966 = vadd.f32 0.0, %v1965
      %v1967 = vpop.f32.mrf.mxu0
      %v1968 = vadd.f32 0.0, %v1967
      %1969 = vmatmul.bf16.gmra.mxu0 %v1258
      %v1970 = vpop.f32.mrf.mxu0
      %v1971 = vadd.f32 0.0, %v1970
      %v1972 = vpop.f32.mrf.mxu0
      %v1973 = vadd.f32 0.0, %v1972
      %1974 = vmatmul.bf16.gmra.mxu0 %v1261
      %v1975 = vpop.f32.mrf.mxu0
      %v1976 = vadd.f32 0.0, %v1975
      %v1977 = vpop.f32.mrf.mxu0
      %v1978 = vadd.f32 0.0, %v1977
      %1979 = vmatmul.bf16.gmra.mxu0 %v1264
      %v1980 = vpop.f32.mrf.mxu0
      %v1981 = vadd.f32 0.0, %v1980
      %v1982 = vpop.f32.mrf.mxu0
      %v1983 = vadd.f32 0.0, %v1982
      %1984 = vmatmul.bf16.gmra.mxu0 %v1267
      %v1985 = vpop.f32.mrf.mxu0
      %v1986 = vadd.f32 0.0, %v1985
      %v1987 = vpop.f32.mrf.mxu0
      %v1988 = vadd.f32 0.0, %v1987
      %1989 = vmatmul.bf16.gmra.mxu0 %v1270
      %v1990 = vpop.f32.mrf.mxu0
      %v1991 = vadd.f32 0.0, %v1990
      %v1992 = vpop.f32.mrf.mxu0
      %v1993 = vadd.f32 0.0, %v1992
      %1994 = vmatmul.bf16.gmra.mxu0 %v1273
      %v1995 = vpop.f32.mrf.mxu0
      %v1996 = vadd.f32 0.0, %v1995
      %v1997 = vpop.f32.mrf.mxu0
      %v1998 = vadd.f32 0.0, %v1997
      %1999 = vmatmul.bf16.gmra.mxu0 %v1276
      %v2000 = vpop.f32.mrf.mxu0
      %v2001 = vadd.f32 0.0, %v2000
      %v2002 = vpop.f32.mrf.mxu0
      %v2003 = vadd.f32 0.0, %v2002
      %2004 = vmatmul.bf16.gmra.mxu0 %v1279
      %v2005 = vpop.f32.mrf.mxu0
      %v2006 = vadd.f32 0.0, %v2005
      %v2007 = vpop.f32.mrf.mxu0
      %v2008 = vadd.f32 0.0, %v2007
      %2009 = vmatmul.bf16.gmra.mxu0 %v1282
      %v2010 = vpop.f32.mrf.mxu0
      %v2011 = vadd.f32 0.0, %v2010
      %v2012 = vpop.f32.mrf.mxu0
      %v2013 = vadd.f32 0.0, %v2012
      %2014 = vmatmul.bf16.gmra.mxu0 %v1285
      %v2015 = vpop.f32.mrf.mxu0
      %v2016 = vadd.f32 0.0, %v2015
      %v2017 = vpop.f32.mrf.mxu0
      %v2018 = vadd.f32 0.0, %v2017
      %2019 = vmatmul.bf16.gmra.mxu0 %v1288
      %v2020 = vpop.f32.mrf.mxu0
      %v2021 = vadd.f32 0.0, %v2020
      %v2022 = vpop.f32.mrf.mxu0
      %v2023 = vadd.f32 0.0, %v2022
      %2024 = vmatmul.bf16.gmra.mxu0 %v1291
      %v2025 = vpop.f32.mrf.mxu0
      %v2026 = vadd.f32 0.0, %v2025
      %v2027 = vpop.f32.mrf.mxu0
      %v2028 = vadd.f32 0.0, %v2027
      %2029 = vmatmul.bf16.gmra.mxu0 %v1294
      %v2030 = vpop.f32.mrf.mxu0
      %v2031 = vadd.f32 0.0, %v2030
      %v2032 = vpop.f32.mrf.mxu0
      %v2033 = vadd.f32 0.0, %v2032
      %2034 = vmatmul.bf16.gmra.mxu0 %v1297
      %v2035 = vpop.f32.mrf.mxu0
      %v2036 = vadd.f32 0.0, %v2035
      %v2037 = vpop.f32.mrf.mxu0
      %v2038 = vadd.f32 0.0, %v2037
      %2039 = vmatmul.bf16.gmra.mxu0 %v1889
      %v2040 = vpop.f32.mrf.mxu0
      %v2041 = vadd.f32 0.0, %v2040
      %v2042 = vpop.f32.mrf.mxu0
      %v2043 = vadd.f32 0.0, %v2042
      %2044 = vdwg.mxu0
      %v2045 = vadd.f32 %v1853, %v1966
      %v2046 = vadd.f32 %v1854, %v1968
      %v2047 = vadd.f32 %v1855, %v1971
      %v2048 = vadd.f32 %v1856, %v1973
      %v2049 = vadd.f32 %v1857, %v1976
      %v2050 = vadd.f32 %v1858, %v1978
      %v2051 = vadd.f32 %v1859, %v1981
      %v2052 = vadd.f32 %v1860, %v1983
      %v2053 = vadd.f32 %v1861, %v1986
      %v2054 = vadd.f32 %v1862, %v1988
      %v2055 = vadd.f32 %v1863, %v1991
      %v2056 = vadd.f32 %v1864, %v1993
      %v2057 = vadd.f32 %v1865, %v1996
      %v2058 = vadd.f32 %v1866, %v1998
      %v2059 = vadd.f32 %v1867, %v2001
      %v2060 = vadd.f32 %v1868, %v2003
      %v2061 = vadd.f32 %v1869, %v2006
      %v2062 = vadd.f32 %v1870, %v2008
      %v2063 = vadd.f32 %v1871, %v2011
      %v2064 = vadd.f32 %v1872, %v2013
      %v2065 = vadd.f32 %v1873, %v2016
      %v2066 = vadd.f32 %v1874, %v2018
      %v2067 = vadd.f32 %v1875, %v2021
      %v2068 = vadd.f32 %v1876, %v2023
      %v2069 = vadd.f32 %v1877, %v2026
      %v2070 = vadd.f32 %v1878, %v2028
      %v2071 = vadd.f32 %v1879, %v2031
      %v2072 = vadd.f32 %v1880, %v2033
      %v2073 = vadd.f32 %v1881, %v2036
      %v2074 = vadd.f32 %v1882, %v2038
      %v2075 = vadd.f32 %v1883, %v2041
      %v2076 = vadd.f32 %v1884, %v2043
      %s2077 = scalar_lea.vmem %s1, 384
      %v2078 = vld [vmem:[%s2077] sm:$0xf]
      %v2079 = vld [vmem:[%s2077 + $0x4] sm:$0xf]
      %v2080 = vld [vmem:[%s2077 + $0x8] sm:$0xf]
      %v2081 = vld [vmem:[%s2077 + $0xc] sm:$0xf]
      %v2082 = vld [vmem:[%s2077 + $0x10] sm:$0xf]
      %v2083 = vld [vmem:[%s2077 + $0x14] sm:$0xf]
      %v2084 = vld [vmem:[%s2077 + $0x18] sm:$0xf]
      %v2085 = vld [vmem:[%s2077 + $0x1c] sm:$0xf]
      %v2086 = vld [vmem:[%s2077 + $0x20] sm:$0xf]
      %v2087 = vld [vmem:[%s2077 + $0x24] sm:$0xf]
      %v2088 = vld [vmem:[%s2077 + $0x28] sm:$0xf]
      %v2089 = vld [vmem:[%s2077 + $0x2c] sm:$0xf]
      %v2090 = vld [vmem:[%s2077 + $0x30] sm:$0xf]
      %v2091 = vld [vmem:[%s2077 + $0x34] sm:$0xf]
      %v2092 = vld [vmem:[%s2077 + $0x38] sm:$0xf]
      %v2093 = vld [vmem:[%s2077 + $0x3c] sm:$0xf]
      %v2110 = vunpack.c.l.b16 %v2078
      %v2111 = vunpack.c.l.b16 %v2079
      %v2112 = vunpack.c.l.b16 %v2080
      %v2113 = vunpack.c.l.b16 %v2081
      %v2114 = vunpack.c.l.b16 %v2082
      %v2115 = vunpack.c.l.b16 %v2083
      %v2116 = vunpack.c.l.b16 %v2084
      %v2117 = vunpack.c.l.b16 %v2085
      %v2118 = vunpack.c.l.b16 %v2086
      %v2119 = vunpack.c.l.b16 %v2087
      %v2120 = vunpack.c.l.b16 %v2088
      %v2121 = vunpack.c.l.b16 %v2089
      %v2122 = vunpack.c.l.b16 %v2090
      %v2123 = vunpack.c.l.b16 %v2091
      %v2124 = vunpack.c.l.b16 %v2092
      %v2125 = vunpack.c.l.b16 %v2093
      %v2126 = vpack.c.b16 %v2111, %v2110
      %v2127 = vpack.c.b16 %v2113, %v2112
      %v2128 = vpack.c.b16 %v2115, %v2114
      %v2129 = vpack.c.b16 %v2117, %v2116
      %v2130 = vpack.c.b16 %v2119, %v2118
      %v2131 = vpack.c.b16 %v2121, %v2120
      %v2132 = vpack.c.b16 %v2123, %v2122
      %v2133 = vpack.c.b16 %v2125, %v2124
      %2142 = vmatpush.bf16.msra.mxu0 %v2133
      %2143 = vmatpush.bf16.msra.mxu0 %v2132
      %2144 = vmatpush.bf16.msra.mxu0 %v2131
      %2145 = vmatpush.bf16.msra.mxu0 %v2130
      %2146 = vmatpush.bf16.msra.mxu0 %v2129
      %2147 = vmatpush.bf16.msra.mxu0 %v2128
      %2148 = vmatpush.bf16.msra.mxu0 %v2127
      %2149 = vmatpush.bf16.msra.mxu0 %v2126
      %2150 = vmatmul.bf16.gmra.mxu0 %v667
      %v2151 = vpop.f32.mrf.mxu0
      %v2152 = vadd.f32 0.0, %v2151
      %v2153 = vpop.f32.mrf.mxu0
      %v2154 = vadd.f32 0.0, %v2153
      %2155 = vmatmul.bf16.gmra.mxu0 %v668
      %v2156 = vpop.f32.mrf.mxu0
      %v2157 = vadd.f32 0.0, %v2156
      %v2158 = vpop.f32.mrf.mxu0
      %v2159 = vadd.f32 0.0, %v2158
      %2160 = vmatmul.bf16.gmra.mxu0 %v669
      %v2161 = vpop.f32.mrf.mxu0
      %v2162 = vadd.f32 0.0, %v2161
      %v2163 = vpop.f32.mrf.mxu0
      %v2164 = vadd.f32 0.0, %v2163
      %2165 = vmatmul.bf16.gmra.mxu0 %v670
      %v2166 = vpop.f32.mrf.mxu0
      %v2167 = vadd.f32 0.0, %v2166
      %v2168 = vpop.f32.mrf.mxu0
      %v2169 = vadd.f32 0.0, %v2168
      %2170 = vmatmul.bf16.gmra.mxu0 %v671
      %v2171 = vpop.f32.mrf.mxu0
      %v2172 = vadd.f32 0.0, %v2171
      %v2173 = vpop.f32.mrf.mxu0
      %v2174 = vadd.f32 0.0, %v2173
      %2175 = vmatmul.bf16.gmra.mxu0 %v672
      %v2176 = vpop.f32.mrf.mxu0
      %v2177 = vadd.f32 0.0, %v2176
      %v2178 = vpop.f32.mrf.mxu0
      %v2179 = vadd.f32 0.0, %v2178
      %2180 = vmatmul.bf16.gmra.mxu0 %v673
      %v2181 = vpop.f32.mrf.mxu0
      %v2182 = vadd.f32 0.0, %v2181
      %v2183 = vpop.f32.mrf.mxu0
      %v2184 = vadd.f32 0.0, %v2183
      %2185 = vmatmul.bf16.gmra.mxu0 %v674
      %v2186 = vpop.f32.mrf.mxu0
      %v2187 = vadd.f32 0.0, %v2186
      %v2188 = vpop.f32.mrf.mxu0
      %v2189 = vadd.f32 0.0, %v2188
      %2190 = vmatmul.bf16.gmra.mxu0 %v675
      %v2191 = vpop.f32.mrf.mxu0
      %v2192 = vadd.f32 0.0, %v2191
      %v2193 = vpop.f32.mrf.mxu0
      %v2194 = vadd.f32 0.0, %v2193
      %2195 = vmatmul.bf16.gmra.mxu0 %v676
      %v2196 = vpop.f32.mrf.mxu0
      %v2197 = vadd.f32 0.0, %v2196
      %v2198 = vpop.f32.mrf.mxu0
      %v2199 = vadd.f32 0.0, %v2198
      %2200 = vmatmul.bf16.gmra.mxu0 %v677
      %v2201 = vpop.f32.mrf.mxu0
      %v2202 = vadd.f32 0.0, %v2201
      %v2203 = vpop.f32.mrf.mxu0
      %v2204 = vadd.f32 0.0, %v2203
      %2205 = vmatmul.bf16.gmra.mxu0 %v678
      %v2206 = vpop.f32.mrf.mxu0
      %v2207 = vadd.f32 0.0, %v2206
      %v2208 = vpop.f32.mrf.mxu0
      %v2209 = vadd.f32 0.0, %v2208
      %2210 = vmatmul.bf16.gmra.mxu0 %v679
      %v2211 = vpop.f32.mrf.mxu0
      %v2212 = vadd.f32 0.0, %v2211
      %v2213 = vpop.f32.mrf.mxu0
      %v2214 = vadd.f32 0.0, %v2213
      %2215 = vmatmul.bf16.gmra.mxu0 %v680
      %v2216 = vpop.f32.mrf.mxu0
      %v2217 = vadd.f32 0.0, %v2216
      %v2218 = vpop.f32.mrf.mxu0
      %v2219 = vadd.f32 0.0, %v2218
      %2220 = vmatmul.bf16.gmra.mxu0 %v681
      %v2221 = vpop.f32.mrf.mxu0
      %v2222 = vadd.f32 0.0, %v2221
      %v2223 = vpop.f32.mrf.mxu0
      %v2224 = vadd.f32 0.0, %v2223
      %2225 = vmatmul.bf16.gmra.mxu0 %v682
      %v2226 = vpop.f32.mrf.mxu0
      %v2227 = vadd.f32 0.0, %v2226
      %v2228 = vpop.f32.mrf.mxu0
      %v2229 = vadd.f32 0.0, %v2228
      %2230 = vdwg.mxu0
      %v2231 = vadd.f32 %v2045, %v2152
      %v2232 = vadd.f32 %v2046, %v2154
      %v2233 = vadd.f32 %v2047, %v2157
      %v2234 = vadd.f32 %v2048, %v2159
      %v2235 = vadd.f32 %v2049, %v2162
      %v2236 = vadd.f32 %v2050, %v2164
      %v2237 = vadd.f32 %v2051, %v2167
      %v2238 = vadd.f32 %v2052, %v2169
      %v2239 = vadd.f32 %v2053, %v2172
      %v2240 = vadd.f32 %v2054, %v2174
      %v2241 = vadd.f32 %v2055, %v2177
      %v2242 = vadd.f32 %v2056, %v2179
      %v2243 = vadd.f32 %v2057, %v2182
      %v2244 = vadd.f32 %v2058, %v2184
      %v2245 = vadd.f32 %v2059, %v2187
      %v2246 = vadd.f32 %v2060, %v2189
      %v2247 = vadd.f32 %v2061, %v2192
      %v2248 = vadd.f32 %v2062, %v2194
      %v2249 = vadd.f32 %v2063, %v2197
      %v2250 = vadd.f32 %v2064, %v2199
      %v2251 = vadd.f32 %v2065, %v2202
      %v2252 = vadd.f32 %v2066, %v2204
      %v2253 = vadd.f32 %v2067, %v2207
      %v2254 = vadd.f32 %v2068, %v2209
      %v2255 = vadd.f32 %v2069, %v2212
      %v2256 = vadd.f32 %v2070, %v2214
      %v2257 = vadd.f32 %v2071, %v2217
      %v2258 = vadd.f32 %v2072, %v2219
      %v2259 = vadd.f32 %v2073, %v2222
      %v2260 = vadd.f32 %v2074, %v2224
      %v2261 = vadd.f32 %v2075, %v2227
      %v2262 = vadd.f32 %v2076, %v2229
      %v2264 = vshrl.u32 %v682, 16
      %v2266 = vshll.u32 %v682, 16
      %v2268 = vrot.slane %v2266, 1
      %v2269 = vor.u32 %v2264, %v2268
      %v2271 = vshll.u32 %v700, 16
      %v2273 = vrot.slane %v2271, 1
      %v2274 = vsel %vm717, %v2269, %v2273
      %s2276 = scalar_lea.vmem %s1, 448
      %v2277 = vld [vmem:[%s2276] sm:$0xf]
      %v2278 = vld [vmem:[%s2276 + $0x4] sm:$0xf]
      %v2279 = vld [vmem:[%s2276 + $0x8] sm:$0xf]
      %v2280 = vld [vmem:[%s2276 + $0xc] sm:$0xf]
      %v2281 = vld [vmem:[%s2276 + $0x10] sm:$0xf]
      %v2282 = vld [vmem:[%s2276 + $0x14] sm:$0xf]
      %v2283 = vld [vmem:[%s2276 + $0x18] sm:$0xf]
      %v2284 = vld [vmem:[%s2276 + $0x1c] sm:$0xf]
      %v2285 = vld [vmem:[%s2276 + $0x20] sm:$0xf]
      %v2286 = vld [vmem:[%s2276 + $0x24] sm:$0xf]
      %v2287 = vld [vmem:[%s2276 + $0x28] sm:$0xf]
      %v2288 = vld [vmem:[%s2276 + $0x2c] sm:$0xf]
      %v2289 = vld [vmem:[%s2276 + $0x30] sm:$0xf]
      %v2290 = vld [vmem:[%s2276 + $0x34] sm:$0xf]
      %v2291 = vld [vmem:[%s2276 + $0x38] sm:$0xf]
      %v2292 = vld [vmem:[%s2276 + $0x3c] sm:$0xf]
      %v2309 = vunpack.c.l.b16 %v2277
      %v2310 = vunpack.c.l.b16 %v2278
      %v2311 = vunpack.c.l.b16 %v2279
      %v2312 = vunpack.c.l.b16 %v2280
      %v2313 = vunpack.c.l.b16 %v2281
      %v2314 = vunpack.c.l.b16 %v2282
      %v2315 = vunpack.c.l.b16 %v2283
      %v2316 = vunpack.c.l.b16 %v2284
      %v2317 = vunpack.c.l.b16 %v2285
      %v2318 = vunpack.c.l.b16 %v2286
      %v2319 = vunpack.c.l.b16 %v2287
      %v2320 = vunpack.c.l.b16 %v2288
      %v2321 = vunpack.c.l.b16 %v2289
      %v2322 = vunpack.c.l.b16 %v2290
      %v2323 = vunpack.c.l.b16 %v2291
      %v2324 = vunpack.c.l.b16 %v2292
      %v2325 = vpack.c.b16 %v2310, %v2309
      %v2326 = vpack.c.b16 %v2312, %v2311
      %v2327 = vpack.c.b16 %v2314, %v2313
      %v2328 = vpack.c.b16 %v2316, %v2315
      %v2329 = vpack.c.b16 %v2318, %v2317
      %v2330 = vpack.c.b16 %v2320, %v2319
      %v2331 = vpack.c.b16 %v2322, %v2321
      %v2332 = vpack.c.b16 %v2324, %v2323
      %2341 = vmatpush.bf16.msra.mxu0 %v2332
      %2342 = vmatpush.bf16.msra.mxu0 %v2331
      %2343 = vmatpush.bf16.msra.mxu0 %v2330
      %2344 = vmatpush.bf16.msra.mxu0 %v2329
      %2345 = vmatpush.bf16.msra.mxu0 %v2328
      %2346 = vmatpush.bf16.msra.mxu0 %v2327
      %2347 = vmatpush.bf16.msra.mxu0 %v2326
      %2348 = vmatpush.bf16.msra.mxu0 %v2325
      %2349 = vmatmul.bf16.gmra.mxu0 %v753
      %v2350 = vpop.f32.mrf.mxu0
      %v2351 = vadd.f32 0.0, %v2350
      %v2352 = vpop.f32.mrf.mxu0
      %v2353 = vadd.f32 0.0, %v2352
      %2354 = vmatmul.bf16.gmra.mxu0 %v765
      %v2355 = vpop.f32.mrf.mxu0
      %v2356 = vadd.f32 0.0, %v2355
      %v2357 = vpop.f32.mrf.mxu0
      %v2358 = vadd.f32 0.0, %v2357
      %2359 = vmatmul.bf16.gmra.mxu0 %v777
      %v2360 = vpop.f32.mrf.mxu0
      %v2361 = vadd.f32 0.0, %v2360
      %v2362 = vpop.f32.mrf.mxu0
      %v2363 = vadd.f32 0.0, %v2362
      %2364 = vmatmul.bf16.gmra.mxu0 %v789
      %v2365 = vpop.f32.mrf.mxu0
      %v2366 = vadd.f32 0.0, %v2365
      %v2367 = vpop.f32.mrf.mxu0
      %v2368 = vadd.f32 0.0, %v2367
      %2369 = vmatmul.bf16.gmra.mxu0 %v801
      %v2370 = vpop.f32.mrf.mxu0
      %v2371 = vadd.f32 0.0, %v2370
      %v2372 = vpop.f32.mrf.mxu0
      %v2373 = vadd.f32 0.0, %v2372
      %2374 = vmatmul.bf16.gmra.mxu0 %v813
      %v2375 = vpop.f32.mrf.mxu0
      %v2376 = vadd.f32 0.0, %v2375
      %v2377 = vpop.f32.mrf.mxu0
      %v2378 = vadd.f32 0.0, %v2377
      %2379 = vmatmul.bf16.gmra.mxu0 %v825
      %v2380 = vpop.f32.mrf.mxu0
      %v2381 = vadd.f32 0.0, %v2380
      %v2382 = vpop.f32.mrf.mxu0
      %v2383 = vadd.f32 0.0, %v2382
      %2384 = vmatmul.bf16.gmra.mxu0 %v837
      %v2385 = vpop.f32.mrf.mxu0
      %v2386 = vadd.f32 0.0, %v2385
      %v2387 = vpop.f32.mrf.mxu0
      %v2388 = vadd.f32 0.0, %v2387
      %2389 = vmatmul.bf16.gmra.mxu0 %v849
      %v2390 = vpop.f32.mrf.mxu0
      %v2391 = vadd.f32 0.0, %v2390
      %v2392 = vpop.f32.mrf.mxu0
      %v2393 = vadd.f32 0.0, %v2392
      %2394 = vmatmul.bf16.gmra.mxu0 %v861
      %v2395 = vpop.f32.mrf.mxu0
      %v2396 = vadd.f32 0.0, %v2395
      %v2397 = vpop.f32.mrf.mxu0
      %v2398 = vadd.f32 0.0, %v2397
      %2399 = vmatmul.bf16.gmra.mxu0 %v873
      %v2400 = vpop.f32.mrf.mxu0
      %v2401 = vadd.f32 0.0, %v2400
      %v2402 = vpop.f32.mrf.mxu0
      %v2403 = vadd.f32 0.0, %v2402
      %2404 = vmatmul.bf16.gmra.mxu0 %v885
      %v2405 = vpop.f32.mrf.mxu0
      %v2406 = vadd.f32 0.0, %v2405
      %v2407 = vpop.f32.mrf.mxu0
      %v2408 = vadd.f32 0.0, %v2407
      %2409 = vmatmul.bf16.gmra.mxu0 %v897
      %v2410 = vpop.f32.mrf.mxu0
      %v2411 = vadd.f32 0.0, %v2410
      %v2412 = vpop.f32.mrf.mxu0
      %v2413 = vadd.f32 0.0, %v2412
      %2414 = vmatmul.bf16.gmra.mxu0 %v909
      %v2415 = vpop.f32.mrf.mxu0
      %v2416 = vadd.f32 0.0, %v2415
      %v2417 = vpop.f32.mrf.mxu0
      %v2418 = vadd.f32 0.0, %v2417
      %2419 = vmatmul.bf16.gmra.mxu0 %v1697
      %v2420 = vpop.f32.mrf.mxu0
      %v2421 = vadd.f32 0.0, %v2420
      %v2422 = vpop.f32.mrf.mxu0
      %v2423 = vadd.f32 0.0, %v2422
      %2424 = vmatmul.bf16.gmra.mxu0 %v2274
      %v2425 = vpop.f32.mrf.mxu0
      %v2426 = vadd.f32 0.0, %v2425
      %v2427 = vpop.f32.mrf.mxu0
      %v2428 = vadd.f32 0.0, %v2427
      %2429 = vdwg.mxu0
      %v2430 = vadd.f32 %v2231, %v2351
      %v2431 = vadd.f32 %v2232, %v2353
      %v2432 = vadd.f32 %v2233, %v2356
      %v2433 = vadd.f32 %v2234, %v2358
      %v2434 = vadd.f32 %v2235, %v2361
      %v2435 = vadd.f32 %v2236, %v2363
      %v2436 = vadd.f32 %v2237, %v2366
      %v2437 = vadd.f32 %v2238, %v2368
      %v2438 = vadd.f32 %v2239, %v2371
      %v2439 = vadd.f32 %v2240, %v2373
      %v2440 = vadd.f32 %v2241, %v2376
      %v2441 = vadd.f32 %v2242, %v2378
      %v2442 = vadd.f32 %v2243, %v2381
      %v2443 = vadd.f32 %v2244, %v2383
      %v2444 = vadd.f32 %v2245, %v2386
      %v2445 = vadd.f32 %v2246, %v2388
      %v2446 = vadd.f32 %v2247, %v2391
      %v2447 = vadd.f32 %v2248, %v2393
      %v2448 = vadd.f32 %v2249, %v2396
      %v2449 = vadd.f32 %v2250, %v2398
      %v2450 = vadd.f32 %v2251, %v2401
      %v2451 = vadd.f32 %v2252, %v2403
      %v2452 = vadd.f32 %v2253, %v2406
      %v2453 = vadd.f32 %v2254, %v2408
      %v2454 = vadd.f32 %v2255, %v2411
      %v2455 = vadd.f32 %v2256, %v2413
      %v2456 = vadd.f32 %v2257, %v2416
      %v2457 = vadd.f32 %v2258, %v2418
      %v2458 = vadd.f32 %v2259, %v2421
      %v2459 = vadd.f32 %v2260, %v2423
      %v2460 = vadd.f32 %v2261, %v2426
      %v2461 = vadd.f32 %v2262, %v2428
      %v2464 = vrot.slane %v682, 1
      %v2465 = vrot.slane %v700, 1
      %v2466 = vsel %vm1249, %v2464, %v2465
      %s2468 = scalar_lea.vmem %s1, 512
      %v2469 = vld [vmem:[%s2468] sm:$0xf]
      %v2470 = vld [vmem:[%s2468 + $0x4] sm:$0xf]
      %v2471 = vld [vmem:[%s2468 + $0x8] sm:$0xf]
      %v2472 = vld [vmem:[%s2468 + $0xc] sm:$0xf]
      %v2473 = vld [vmem:[%s2468 + $0x10] sm:$0xf]
      %v2474 = vld [vmem:[%s2468 + $0x14] sm:$0xf]
      %v2475 = vld [vmem:[%s2468 + $0x18] sm:$0xf]
      %v2476 = vld [vmem:[%s2468 + $0x1c] sm:$0xf]
      %v2477 = vld [vmem:[%s2468 + $0x20] sm:$0xf]
      %v2478 = vld [vmem:[%s2468 + $0x24] sm:$0xf]
      %v2479 = vld [vmem:[%s2468 + $0x28] sm:$0xf]
      %v2480 = vld [vmem:[%s2468 + $0x2c] sm:$0xf]
      %v2481 = vld [vmem:[%s2468 + $0x30] sm:$0xf]
      %v2482 = vld [vmem:[%s2468 + $0x34] sm:$0xf]
      %v2483 = vld [vmem:[%s2468 + $0x38] sm:$0xf]
      %v2484 = vld [vmem:[%s2468 + $0x3c] sm:$0xf]
      %v2501 = vunpack.c.l.b16 %v2469
      %v2502 = vunpack.c.l.b16 %v2470
      %v2503 = vunpack.c.l.b16 %v2471
      %v2504 = vunpack.c.l.b16 %v2472
      %v2505 = vunpack.c.l.b16 %v2473
      %v2506 = vunpack.c.l.b16 %v2474
      %v2507 = vunpack.c.l.b16 %v2475
      %v2508 = vunpack.c.l.b16 %v2476
      %v2509 = vunpack.c.l.b16 %v2477
      %v2510 = vunpack.c.l.b16 %v2478
      %v2511 = vunpack.c.l.b16 %v2479
      %v2512 = vunpack.c.l.b16 %v2480
      %v2513 = vunpack.c.l.b16 %v2481
      %v2514 = vunpack.c.l.b16 %v2482
      %v2515 = vunpack.c.l.b16 %v2483
      %v2516 = vunpack.c.l.b16 %v2484
      %v2517 = vpack.c.b16 %v2502, %v2501
      %v2518 = vpack.c.b16 %v2504, %v2503
      %v2519 = vpack.c.b16 %v2506, %v2505
      %v2520 = vpack.c.b16 %v2508, %v2507
      %v2521 = vpack.c.b16 %v2510, %v2509
      %v2522 = vpack.c.b16 %v2512, %v2511
      %v2523 = vpack.c.b16 %v2514, %v2513
      %v2524 = vpack.c.b16 %v2516, %v2515
      %2533 = vmatpush.bf16.msra.mxu0 %v2524
      %2534 = vmatpush.bf16.msra.mxu0 %v2523
      %2535 = vmatpush.bf16.msra.mxu0 %v2522
      %2536 = vmatpush.bf16.msra.mxu0 %v2521
      %2537 = vmatpush.bf16.msra.mxu0 %v2520
      %2538 = vmatpush.bf16.msra.mxu0 %v2519
      %2539 = vmatpush.bf16.msra.mxu0 %v2518
      %2540 = vmatpush.bf16.msra.mxu0 %v2517
      %2541 = vmatmul.bf16.gmra.mxu0 %v1258
      %v2542 = vpop.f32.mrf.mxu0
      %v2543 = vadd.f32 0.0, %v2542
      %v2544 = vpop.f32.mrf.mxu0
      %v2545 = vadd.f32 0.0, %v2544
      %2546 = vmatmul.bf16.gmra.mxu0 %v1261
      %v2547 = vpop.f32.mrf.mxu0
      %v2548 = vadd.f32 0.0, %v2547
      %v2549 = vpop.f32.mrf.mxu0
      %v2550 = vadd.f32 0.0, %v2549
      %2551 = vmatmul.bf16.gmra.mxu0 %v1264
      %v2552 = vpop.f32.mrf.mxu0
      %v2553 = vadd.f32 0.0, %v2552
      %v2554 = vpop.f32.mrf.mxu0
      %v2555 = vadd.f32 0.0, %v2554
      %2556 = vmatmul.bf16.gmra.mxu0 %v1267
      %v2557 = vpop.f32.mrf.mxu0
      %v2558 = vadd.f32 0.0, %v2557
      %v2559 = vpop.f32.mrf.mxu0
      %v2560 = vadd.f32 0.0, %v2559
      %2561 = vmatmul.bf16.gmra.mxu0 %v1270
      %v2562 = vpop.f32.mrf.mxu0
      %v2563 = vadd.f32 0.0, %v2562
      %v2564 = vpop.f32.mrf.mxu0
      %v2565 = vadd.f32 0.0, %v2564
      %2566 = vmatmul.bf16.gmra.mxu0 %v1273
      %v2567 = vpop.f32.mrf.mxu0
      %v2568 = vadd.f32 0.0, %v2567
      %v2569 = vpop.f32.mrf.mxu0
      %v2570 = vadd.f32 0.0, %v2569
      %2571 = vmatmul.bf16.gmra.mxu0 %v1276
      %v2572 = vpop.f32.mrf.mxu0
      %v2573 = vadd.f32 0.0, %v2572
      %v2574 = vpop.f32.mrf.mxu0
      %v2575 = vadd.f32 0.0, %v2574
      %2576 = vmatmul.bf16.gmra.mxu0 %v1279
      %v2577 = vpop.f32.mrf.mxu0
      %v2578 = vadd.f32 0.0, %v2577
      %v2579 = vpop.f32.mrf.mxu0
      %v2580 = vadd.f32 0.0, %v2579
      %2581 = vmatmul.bf16.gmra.mxu0 %v1282
      %v2582 = vpop.f32.mrf.mxu0
      %v2583 = vadd.f32 0.0, %v2582
      %v2584 = vpop.f32.mrf.mxu0
      %v2585 = vadd.f32 0.0, %v2584
      %2586 = vmatmul.bf16.gmra.mxu0 %v1285
      %v2587 = vpop.f32.mrf.mxu0
      %v2588 = vadd.f32 0.0, %v2587
      %v2589 = vpop.f32.mrf.mxu0
      %v2590 = vadd.f32 0.0, %v2589
      %2591 = vmatmul.bf16.gmra.mxu0 %v1288
      %v2592 = vpop.f32.mrf.mxu0
      %v2593 = vadd.f32 0.0, %v2592
      %v2594 = vpop.f32.mrf.mxu0
      %v2595 = vadd.f32 0.0, %v2594
      %2596 = vmatmul.bf16.gmra.mxu0 %v1291
      %v2597 = vpop.f32.mrf.mxu0
      %v2598 = vadd.f32 0.0, %v2597
      %v2599 = vpop.f32.mrf.mxu0
      %v2600 = vadd.f32 0.0, %v2599
      %2601 = vmatmul.bf16.gmra.mxu0 %v1294
      %v2602 = vpop.f32.mrf.mxu0
      %v2603 = vadd.f32 0.0, %v2602
      %v2604 = vpop.f32.mrf.mxu0
      %v2605 = vadd.f32 0.0, %v2604
      %2606 = vmatmul.bf16.gmra.mxu0 %v1297
      %v2607 = vpop.f32.mrf.mxu0
      %v2608 = vadd.f32 0.0, %v2607
      %v2609 = vpop.f32.mrf.mxu0
      %v2610 = vadd.f32 0.0, %v2609
      %2611 = vmatmul.bf16.gmra.mxu0 %v1889
      %v2612 = vpop.f32.mrf.mxu0
      %v2613 = vadd.f32 0.0, %v2612
      %v2614 = vpop.f32.mrf.mxu0
      %v2615 = vadd.f32 0.0, %v2614
      %2616 = vmatmul.bf16.gmra.mxu0 %v2466
      %v2617 = vpop.f32.mrf.mxu0
      %v2618 = vadd.f32 0.0, %v2617
      %v2619 = vpop.f32.mrf.mxu0
      %v2620 = vadd.f32 0.0, %v2619
      %2621 = vdwg.mxu0
      %v2622 = vadd.f32 %v2430, %v2543
      %v2623 = vadd.f32 %v2431, %v2545
      %v2624 = vadd.f32 %v2432, %v2548
      %v2625 = vadd.f32 %v2433, %v2550
      %v2626 = vadd.f32 %v2434, %v2553
      %v2627 = vadd.f32 %v2435, %v2555
      %v2628 = vadd.f32 %v2436, %v2558
      %v2629 = vadd.f32 %v2437, %v2560
      %v2630 = vadd.f32 %v2438, %v2563
      %v2631 = vadd.f32 %v2439, %v2565
      %v2632 = vadd.f32 %v2440, %v2568
      %v2633 = vadd.f32 %v2441, %v2570
      %v2634 = vadd.f32 %v2442, %v2573
      %v2635 = vadd.f32 %v2443, %v2575
      %v2636 = vadd.f32 %v2444, %v2578
      %v2637 = vadd.f32 %v2445, %v2580
      %v2638 = vadd.f32 %v2446, %v2583
      %v2639 = vadd.f32 %v2447, %v2585
      %v2640 = vadd.f32 %v2448, %v2588
      %v2641 = vadd.f32 %v2449, %v2590
      %v2642 = vadd.f32 %v2450, %v2593
      %v2643 = vadd.f32 %v2451, %v2595
      %v2644 = vadd.f32 %v2452, %v2598
      %v2645 = vadd.f32 %v2453, %v2600
      %v2646 = vadd.f32 %v2454, %v2603
      %v2647 = vadd.f32 %v2455, %v2605
      %v2648 = vadd.f32 %v2456, %v2608
      %v2649 = vadd.f32 %v2457, %v2610
      %v2650 = vadd.f32 %v2458, %v2613
      %v2651 = vadd.f32 %v2459, %v2615
      %v2652 = vadd.f32 %v2460, %v2618
      %v2653 = vadd.f32 %v2461, %v2620
      %v2654 = vld [vmem:[%s2] sm:$0x1]
      %v2656 = vperm.slane %v2654, 0
      %v2658 = vadd.f32 %v2622, %v2656
      %v2659 = vadd.f32 %v2623, %v2656
      %v2660 = vadd.f32 %v2624, %v2656
      %v2661 = vadd.f32 %v2625, %v2656
      %v2662 = vadd.f32 %v2626, %v2656
      %v2663 = vadd.f32 %v2627, %v2656
      %v2664 = vadd.f32 %v2628, %v2656
      %v2665 = vadd.f32 %v2629, %v2656
      %v2666 = vadd.f32 %v2630, %v2656
      %v2667 = vadd.f32 %v2631, %v2656
      %v2668 = vadd.f32 %v2632, %v2656
      %v2669 = vadd.f32 %v2633, %v2656
      %v2670 = vadd.f32 %v2634, %v2656
      %v2671 = vadd.f32 %v2635, %v2656
      %v2672 = vadd.f32 %v2636, %v2656
      %v2673 = vadd.f32 %v2637, %v2656
      %v2674 = vadd.f32 %v2638, %v2656
      %v2675 = vadd.f32 %v2639, %v2656
      %v2676 = vadd.f32 %v2640, %v2656
      %v2677 = vadd.f32 %v2641, %v2656
      %v2678 = vadd.f32 %v2642, %v2656
      %v2679 = vadd.f32 %v2643, %v2656
      %v2680 = vadd.f32 %v2644, %v2656
      %v2681 = vadd.f32 %v2645, %v2656
      %v2682 = vadd.f32 %v2646, %v2656
      %v2683 = vadd.f32 %v2647, %v2656
      %v2684 = vadd.f32 %v2648, %v2656
      %v2685 = vadd.f32 %v2649, %v2656
      %v2686 = vadd.f32 %v2650, %v2656
      %v2687 = vadd.f32 %v2651, %v2656
      %v2688 = vadd.f32 %v2652, %v2656
      %v2689 = vadd.f32 %v2653, %v2656
      %2690 = vst [vmem:[%s187] sm:$0xff] %v2658
      %2691 = vst [vmem:[%s187 + $0x8] sm:$0xff] %v2659
      %2692 = vst [vmem:[%s187 + $0x10] sm:$0xff] %v2660
      %2693 = vst [vmem:[%s187 + $0x18] sm:$0xff] %v2661
      %2694 = vst [vmem:[%s187 + $0x20] sm:$0xff] %v2662
      %2695 = vst [vmem:[%s187 + $0x28] sm:$0xff] %v2663
      %2696 = vst [vmem:[%s187 + $0x30] sm:$0xff] %v2664
      %2697 = vst [vmem:[%s187 + $0x38] sm:$0xff] %v2665
      %2698 = vst [vmem:[%s187 + $0x40] sm:$0xff] %v2666
      %2699 = vst [vmem:[%s187 + $0x48] sm:$0xff] %v2667
      %2700 = vst [vmem:[%s187 + $0x50] sm:$0xff] %v2668
      %2701 = vst [vmem:[%s187 + $0x58] sm:$0xff] %v2669
      %2702 = vst [vmem:[%s187 + $0x60] sm:$0xff] %v2670
      %2703 = vst [vmem:[%s187 + $0x68] sm:$0xff] %v2671
      %2704 = vst [vmem:[%s187 + $0x70] sm:$0xff] %v2672
      %2705 = vst [vmem:[%s187 + $0x78] sm:$0xff] %v2673
      %2706 = vst [vmem:[%s187 + $0x80] sm:$0xff] %v2674
      %2707 = vst [vmem:[%s187 + $0x88] sm:$0xff] %v2675
      %2708 = vst [vmem:[%s187 + $0x90] sm:$0xff] %v2676
      %2709 = vst [vmem:[%s187 + $0x98] sm:$0xff] %v2677
      %2710 = vst [vmem:[%s187 + $0xa0] sm:$0xff] %v2678
      %2711 = vst [vmem:[%s187 + $0xa8] sm:$0xff] %v2679
      %2712 = vst [vmem:[%s187 + $0xb0] sm:$0xff] %v2680
      %2713 = vst [vmem:[%s187 + $0xb8] sm:$0xff] %v2681
      %2714 = vst [vmem:[%s187 + $0xc0] sm:$0xff] %v2682
      %2715 = vst [vmem:[%s187 + $0xc8] sm:$0xff] %v2683
      %2716 = vst [vmem:[%s187 + $0xd0] sm:$0xff] %v2684
      %2717 = vst [vmem:[%s187 + $0xd8] sm:$0xff] %v2685
      %2718 = vst [vmem:[%s187 + $0xe0] sm:$0xff] %v2686
      %2719 = vst [vmem:[%s187 + $0xe8] sm:$0xff] %v2687
      %2720 = vst [vmem:[%s187 + $0xf0] sm:$0xff] %v2688
      %2721 = vst [vmem:[%s187 + $0xf8] sm:$0xff] %v2689
      %v2722 = vadd.f32 %v2658, %v2659
      %v2723 = vadd.f32 %v2722, %v2660
      %v2724 = vadd.f32 %v2723, %v2661
      %v2725 = vadd.f32 %v2724, %v2662
      %v2726 = vadd.f32 %v2725, %v2663
      %v2727 = vadd.f32 %v2726, %v2664
      %v2728 = vadd.f32 %v2727, %v2665
      %v2729 = vadd.f32 %v2728, %v2666
      %v2730 = vadd.f32 %v2729, %v2667
      %v2731 = vadd.f32 %v2730, %v2668
      %v2732 = vadd.f32 %v2731, %v2669
      %v2733 = vadd.f32 %v2732, %v2670
      %v2734 = vadd.f32 %v2733, %v2671
      %v2735 = vadd.f32 %v2734, %v2672
      %v2736 = vadd.f32 %v2735, %v2673
      %v2737 = vadd.f32 %v2736, %v2674
      %v2738 = vadd.f32 %v2737, %v2675
      %v2739 = vadd.f32 %v2738, %v2676
      %v2740 = vadd.f32 %v2739, %v2677
      %v2741 = vadd.f32 %v2740, %v2678
      %v2742 = vadd.f32 %v2741, %v2679
      %v2743 = vadd.f32 %v2742, %v2680
      %v2744 = vadd.f32 %v2743, %v2681
      %v2745 = vadd.f32 %v2744, %v2682
      %v2746 = vadd.f32 %v2745, %v2683
      %v2747 = vadd.f32 %v2746, %v2684
      %v2748 = vadd.f32 %v2747, %v2685
      %v2749 = vadd.f32 %v2748, %v2686
      %v2750 = vadd.f32 %v2749, %v2687
      %v2751 = vadd.f32 %v2750, %v2688
      %v2752 = vadd.f32 %v2751, %v2689
      %v2753 = vrot.slane %v2752, 4
      %v2754 = vadd.f32 %v2752, %v2753
      %v2755 = vrot.slane %v2754, 2
      %v2756 = vadd.f32 %v2754, %v2755
      %v2757 = vrot.slane %v2756, 1
      %v2758 = vadd.f32 %v2756, %v2757
      %v2759 = vmul.f32 %v2658, %v2658
      %v2760 = vmul.f32 %v2659, %v2659
      %v2761 = vmul.f32 %v2660, %v2660
      %v2762 = vmul.f32 %v2661, %v2661
      %v2763 = vmul.f32 %v2662, %v2662
      %v2764 = vmul.f32 %v2663, %v2663
      %v2765 = vmul.f32 %v2664, %v2664
      %v2766 = vmul.f32 %v2665, %v2665
      %v2767 = vmul.f32 %v2666, %v2666
      %v2768 = vmul.f32 %v2667, %v2667
      %v2769 = vmul.f32 %v2668, %v2668
      %v2770 = vmul.f32 %v2669, %v2669
      %v2771 = vmul.f32 %v2670, %v2670
      %v2772 = vmul.f32 %v2671, %v2671
      %v2773 = vmul.f32 %v2672, %v2672
      %v2774 = vmul.f32 %v2673, %v2673
      %v2775 = vmul.f32 %v2674, %v2674
      %v2776 = vmul.f32 %v2675, %v2675
      %v2777 = vmul.f32 %v2676, %v2676
      %v2778 = vmul.f32 %v2677, %v2677
      %v2779 = vmul.f32 %v2678, %v2678
      %v2780 = vmul.f32 %v2679, %v2679
      %v2781 = vmul.f32 %v2680, %v2680
      %v2782 = vmul.f32 %v2681, %v2681
      %v2783 = vmul.f32 %v2682, %v2682
      %v2784 = vmul.f32 %v2683, %v2683
      %v2785 = vmul.f32 %v2684, %v2684
      %v2786 = vmul.f32 %v2685, %v2685
      %v2787 = vmul.f32 %v2686, %v2686
      %v2788 = vmul.f32 %v2687, %v2687
      %v2789 = vmul.f32 %v2688, %v2688
      %v2790 = vmul.f32 %v2689, %v2689
      %v2791 = vadd.f32 %v2759, %v2760
      %v2792 = vadd.f32 %v2791, %v2761
      %v2793 = vadd.f32 %v2792, %v2762
      %v2794 = vadd.f32 %v2793, %v2763
      %v2795 = vadd.f32 %v2794, %v2764
      %v2796 = vadd.f32 %v2795, %v2765
      %v2797 = vadd.f32 %v2796, %v2766
      %v2798 = vadd.f32 %v2797, %v2767
      %v2799 = vadd.f32 %v2798, %v2768
      %v2800 = vadd.f32 %v2799, %v2769
      %v2801 = vadd.f32 %v2800, %v2770
      %v2802 = vadd.f32 %v2801, %v2771
      %v2803 = vadd.f32 %v2802, %v2772
      %v2804 = vadd.f32 %v2803, %v2773
      %v2805 = vadd.f32 %v2804, %v2774
      %v2806 = vadd.f32 %v2805, %v2775
      %v2807 = vadd.f32 %v2806, %v2776
      %v2808 = vadd.f32 %v2807, %v2777
      %v2809 = vadd.f32 %v2808, %v2778
      %v2810 = vadd.f32 %v2809, %v2779
      %v2811 = vadd.f32 %v2810, %v2780
      %v2812 = vadd.f32 %v2811, %v2781
      %v2813 = vadd.f32 %v2812, %v2782
      %v2814 = vadd.f32 %v2813, %v2783
      %v2815 = vadd.f32 %v2814, %v2784
      %v2816 = vadd.f32 %v2815, %v2785
      %v2817 = vadd.f32 %v2816, %v2786
      %v2818 = vadd.f32 %v2817, %v2787
      %v2819 = vadd.f32 %v2818, %v2788
      %v2820 = vadd.f32 %v2819, %v2789
      %v2821 = vadd.f32 %v2820, %v2790
      %v2822 = vrot.slane %v2821, 4
      %v2823 = vadd.f32 %v2821, %v2822
      %v2824 = vrot.slane %v2823, 2
      %v2825 = vadd.f32 %v2823, %v2824
      %v2826 = vrot.slane %v2825, 1
      %v2827 = vadd.f32 %v2825, %v2826
      %vm2828 = vcmask 1040384
      %v2829 = vsel %vm2828, %v2758, %v2827
      %2830 = vst [vmem:[%s195] sm:$0x3] %v2829
      %s2831 = smul.u32 16, %s21
      %p2832 = scmp.lt.s32.totalorder %s20, 1
      %s2833 = scalar_select %p2832, %s20, 1
      %p2834 = scmp.lt.s32.totalorder %s2831, 15
      %s2835 = scalar_select %p2834, %s2831, 15
      %s2836 = smul.addr %s2835, 2
      %s2837 = smul.addr %s2833, 32
      %s2838 = sadd.s32 %s2836, %s2837
      %s2839 = smul.addr %s2838, 8
      %s2840 = scalar_lea.vmem %s3, %s2839
      %p2841 = scmp.lt.s32.totalorder %s20, 1
      %s2842 = scalar_select %p2841, %s20, 1
      %p2843 = scmp.lt.s32.totalorder %s21, 0
      %s2844 = scalar_select %p2843, %s21, 0
      %s2845 = sadd.s32 %s2844, %s2842
      %s2846 = smul.addr %s2845, 2
      %s2847 = scalar_lea.vmem %s4, %s2846
      // Predicated region
      $region132: #{conv_block_nested_forward.4} parent=27 // pred_check
        %p2848 = pneg %p90
      $region133: #{conv_block_nested_forward.4} parent=27 // pred_check_branch
        %2850 = sbr.rel (%p2848) target = $region135
      $region134: #{conv_block_nested_forward.4} parent=27 // pred_region
        %s2851 = smul.u32 16, %s21
      $region135: #{conv_block_nested_forward.4} parent=27 // pred_fallthru
        _
      // Predicated region
      $region136: #{conv_block_nested_forward.4} parent=27 // pred_check
        %p2852 = pneg %p118
      $region137: #{conv_block_nested_forward.4} parent=27 // pred_check_branch
        %2854 = sbr.rel (%p2852) target = $region139
      $region138: #{conv_block_nested_forward.4} parent=27 // pred_region
        _
      $region139: #{conv_block_nested_forward.4} parent=27 // pred_fallthru
        _
    $region28: #{conv_block_nested_forward.4} parent=5 // pred_fallthru
      _
    %p2855 = scmp.le.s32.totalorder 2, %s11
    // Predicated region
    $region140: #{conv_block_nested_forward.4} parent=5 // pred_check
      %p2856 = pneg %p2855
    $region141: #{conv_block_nested_forward.4} parent=5 // pred_check_branch
      %2858 = sbr.rel (%p2856) target = $region143
    $region142: #{conv_block_nested_forward.4} parent=5 // pred_region
      %s2859 = ssub.s32 %s11, 2
      // Predicated region
      $region144: #{conv_block_nested_forward.4} parent=142 // pred_check
        %p2860 = pneg %p96
      $region145: #{conv_block_nested_forward.4} parent=142 // pred_check_branch
        %2862 = sbr.rel (%p2860) target = $region147
      $region146: #{conv_block_nested_forward.4} parent=142 // pred_region
        %s2863 = smul.u32 16, %s23
        %p2864 = scmp.lt.s32.totalorder %s22, 1
        %s2865 = scalar_select %p2864, %s22, 1
        %p2866 = scmp.lt.s32.totalorder %s2863, 15
        %s2867 = scalar_select %p2866, %s2863, 15
        %s2868 = smul.addr %s2867, 2
        %s2869 = smul.addr %s2865, 32
        %s2870 = sadd.s32 %s2868, %s2869
        %s2871 = smul.addr %s2870, 8
        %s2872 = scalar_lea.vmem %s3, %s2871
      $region147: #{conv_block_nested_forward.4} parent=142 // pred_fallthru
        _
      // Predicated region
      $region148: #{conv_block_nested_forward.4} parent=142 // pred_check
        %p2873 = pneg %p124
      $region149: #{conv_block_nested_forward.4} parent=142 // pred_check_branch
        %2875 = sbr.rel (%p2873) target = $region151
      $region150: #{conv_block_nested_forward.4} parent=142 // pred_region
        %p2876 = scmp.lt.s32.totalorder %s22, 1
        %s2877 = scalar_select %p2876, %s22, 1
        %p2878 = scmp.lt.s32.totalorder %s23, 0
        %s2879 = scalar_select %p2878, %s23, 0
        %s2880 = sadd.s32 %s2879, %s2877
        %s2881 = smul.addr %s2880, 2
        %s2882 = scalar_lea.vmem %s4, %s2881
      $region151: #{conv_block_nested_forward.4} parent=142 // pred_fallthru
        _
    $region143: #{conv_block_nested_forward.4} parent=5 // pred_fallthru
      _
  $region6: #{conv_block_nested_forward.4} parent=0 // loop_footer
    %s15 = sadd.s32 1, %s11
  $region7: #{conv_block_nested_forward.4} parent=0 // loop_footer_branch
    %10 = sbr.rel target = $region3
  $region8: #{conv_block_nested_forward.4} parent=0 // loop_exit
    _
  %2883 = vsyncmov [#allocation3]
  %s2884 = vpop.sfrf %2883
  %p2885 = scmp.eq.s32.totalorder %s2884, 0
  %p2886 = pneg %p2885
  %2888 = shalt.err (%p2886)
  %s2889 = scalar_lea.sflag [#allocation3], 1
  %2890 = vsyncmov %s2889
  %s2891 = vpop.sfrf %2890
  %p2892 = scmp.eq.s32.totalorder %s2891, 0
  %p2893 = pneg %p2892
  %2895 = shalt.err (%p2893)
  %s2896 = scalar_lea.sflag [#allocation3], 2
  %2897 = vsyncmov %s2896
  %s2898 = vpop.sfrf %2897
  %p2899 = scmp.eq.s32.totalorder %s2898, 0
  %p2900 = pneg %p2899
  %2902 = shalt.err (%p2900)

</llo_original>
